<compile_context>
chip_gen: v6e
topology: v6e:2x2x1
jax: 0.10.0
libtpu: 0.0.40
codegen_flags: <defaults>
</compile_context>

<pallas_src>
import math
from functools import partial

import jax
import jax.numpy as jnp
from jax.experimental import pallas as pl
from jax.experimental.pallas import tpu as pltpu

LRELU_SLOPE = 0.2
PIXELNORM_EPS = 1e-8


def _mapping_kernel(lat_ref, emb_ref, pn_ref, wx_stack_ref, wx_last_ref,
                    wy_all_ref, b_all_ref, out_ref,
                    *, depth, out_lanes, inv_lat):
    x = lat_ref[...]                                   # (Mt, g*lat) f32

    # PixelNorm per original row == per latent-lane segment of the folded row.
    # Segment sum via block-diagonal ones matmul; hi/lo split keeps it
    # effectively exact through the bf16 MXU input path.
    pn = pn_ref[...]
    x2 = x * x
    x2_hi = x2.astype(pn.dtype)
    x2_lo = (x2 - x2_hi.astype(jnp.float32)).astype(pn.dtype)
    seg = (jnp.dot(x2_hi, pn, preferred_element_type=jnp.float32)
           + jnp.dot(x2_lo, pn, preferred_element_type=jnp.float32))
    x = x * jax.lax.rsqrt(seg * inv_lat + PIXELNORM_EPS)

    # Embedding contribution is identical for every layer -> one wide matmul
    # for all layers' (y @ Wy_i) plus the pre-scaled biases.
    wy = wy_all_ref[...]
    y = emb_ref[...].astype(wy.dtype)
    cb = jnp.dot(y, wy, preferred_element_type=jnp.float32) + b_all_ref[...]

    off = 0
    for i in range(depth):
        n = out_lanes[i]
        wx = wx_stack_ref[i] if i < depth - 1 else wx_last_ref[...]
        # concat(x, y) @ (W * w_mul) + b * lr_mul, with w_mul/lr_mul already
        # folded into wx / cb on the host.
        h = jnp.dot(x.astype(wx.dtype), wx, preferred_element_type=jnp.float32)
        h = h + cb[:, off:off + n]
        x = jnp.maximum(h, LRELU_SLOPE * h)            # LeakyReLU(0.2)
        off += n

    out_ref[...] = x.astype(out_ref.dtype)


def _round_up(x, m):
    return ((x + m - 1) // m) * m


def _fold_block_diag(w, g):
    """(k, n) -> (g*k, g*n) block-diagonal with g copies of w on the diagonal."""
    k, n = w.shape
    out = jnp.zeros((g, k, g, n), w.dtype)
    idx = jnp.arange(g)
    out = out.at[idx, :, idx, :].set(w)
    return out.reshape(g * k, g * n)


def _default_fold():
    # Fill the MXU / vreg lanes with fold-groups of 32-wide features:
    #   v4/v5e (128-wide MXU) -> g=4 ; v6e/v7x (256-wide MXU) -> g=8.
    try:
        kind = jax.devices()[0].device_kind.lower()
    except Exception:
        return 8
    return 4 if ("v4" in kind or "v5" in kind) else 8


def mapping_net_forward(latent, embedding, weights, biases, *,
                        lr_mul=0.01, gain=math.sqrt(2.0),
                        broadcast_output=None, batch_tile=None, fold=None,
                        weights_dtype=jnp.bfloat16):
    """MappingNet forward in one Pallas kernel.

    latent:    (B, L) float32
    embedding: (B, E) float32            (use_labels=True -> L + E == input_dim)
    weights:   list of (in_features_i, out_features_i) float32 (transposed vs torch)
    biases:    list of (out_features_i,) float32
    """
    depth = len(weights)
    assert depth >= 2
    B, lat_dim = latent.shape
    emb_dim = embedding.shape[1]
    out_dims = tuple(int(w.shape[1]) for w in weights)
    hidden = out_dims[0]
    out_dim = out_dims[-1]
    total_out = sum(out_dims)

    x_dims = [lat_dim] + [out_dims[i - 1] for i in range(1, depth)]
    for i, w in enumerate(weights):
        assert w.shape[0] == x_dims[i] + emb_dim
    assert lat_dim == hidden, "stacked-Wx packing assumes latent_dim == hidden"
    # TODO(synk): if latent_dim != hidden, keep layer-0's Wx as its own operand.

    g = int(fold) if fold is not None else _default_fold()
    assert g >= 1

    # ------------- host-side parameter packing (constant-folded under jit) ---
    # Per-layer equalized-lr scale folded into the weights; lr_mul into biases.
    w_muls = [float(gain) / math.sqrt(w.shape[0]) * lr_mul for w in weights]
    wx_blocks, wy_blocks = [], []
    for i in range(depth):
        w = weights[i].astype(jnp.float32) * w_muls[i]
        wx_blocks.append(_fold_block_diag(w[:x_dims[i], :], g).astype(weights_dtype))
        wy_blocks.append(_fold_block_diag(w[x_dims[i]:, :], g).astype(weights_dtype))
    wx_stack = jnp.stack(wx_blocks[:-1])                 # (depth-1, g*lat, g*hid)
    wx_last = wx_blocks[-1]                              # (g*hid, g*out)
    wy_all = jnp.concatenate(wy_blocks, axis=1)          # (g*emb, g*total_out)
    b_all = jnp.concatenate(
        [jnp.tile(b.astype(jnp.float32) * lr_mul, (g,)) for b in biases]
    ).reshape(1, -1)                                     # (1, g*total_out) f32
    pn = _fold_block_diag(jnp.ones((lat_dim, lat_dim), jnp.float32), g)
    pn = pn.astype(jnp.bfloat16)                         # entries 1.0 -> exact

    # ------------- batch folding / tiling -----------------------------------
    bf = pl.cdiv(B, g)                                   # folded rows needed
    max_tile_f = max(8, _round_up(4096 // g, 8))         # ~4096 original rows/step
    if batch_tile is not None:
        tile_f = _round_up(max(1, pl.cdiv(int(batch_tile), g)), 8)
    else:
        tile_f = min(_round_up(bf, 8), max_tile_f)
    tile_f = max(8, _round_up(tile_f, 8))
    grid_n = pl.cdiv(bf, tile_f)
    # v7x megacore: keep the "parallel" batch grid even so both TensorCores get
    # work (harmless extra ~0.35us pipeline step on single-TC v5e/v6e).
    if grid_n == 1 and bf * g >= 2048:
        tile_f = _round_up(pl.cdiv(bf, 2), 8)
        grid_n = pl.cdiv(bf, tile_f)
    if grid_n > 1 and grid_n % 2 == 1:
        tile_f = _round_up(pl.cdiv(bf, grid_n + 1), 8)
        grid_n = pl.cdiv(bf, tile_f)

    padded_bf = grid_n * tile_f
    padded_b = padded_bf * g
    if padded_b != B:
        pad = padded_b - B
        latent = jnp.pad(latent, ((0, pad), (0, 0)))
        embedding = jnp.pad(embedding, ((0, pad), (0, 0)))
    # Free contiguous lane-folding reinterpretation: g rows -> one lane-row.
    lat_f = latent.astype(jnp.float32).reshape(padded_bf, g * lat_dim)
    emb_f = embedding.astype(jnp.float32).reshape(padded_bf, g * emb_dim)

    # ------------- pallas_call ------------------------------------------------
    out_lanes = tuple(d * g for d in out_dims)
    kernel = partial(_mapping_kernel, depth=depth, out_lanes=out_lanes,
                     inv_lat=1.0 / float(lat_dim))

    def const_spec(shape):
        nd = len(shape)
        # Grid-invariant constants; default double-buffering only costs a few
        # MB here, so pipeline_mode=pl.Buffered(1) is intentionally not used.
        return pl.BlockSpec(shape, lambda i, _nd=nd: (0,) * _nd)

    in_specs = [
        pl.BlockSpec((tile_f, g * lat_dim), lambda i: (i, 0)),
        pl.BlockSpec((tile_f, g * emb_dim), lambda i: (i, 0)),
        const_spec(pn.shape),
        const_spec(wx_stack.shape),
        const_spec(wx_last.shape),
        const_spec(wy_all.shape),
        const_spec(b_all.shape),
    ]
    out_specs = pl.BlockSpec((tile_f, g * out_dim), lambda i: (i, 0))

    def _nbytes(a):
        return int(a.size) * a.dtype.itemsize

    const_bytes = sum(_nbytes(a) for a in (pn, wx_stack, wx_last, wy_all, b_all))
    io_bytes = tile_f * 4 * g * (lat_dim + emb_dim + out_dim)
    live_bytes = tile_f * 4 * g * (total_out + 4 * max(lat_dim, hidden, out_dim))
    vmem_limit = int(min(max(2 * io_bytes + 2 * const_bytes + live_bytes
                             + (6 << 20), 8 << 20), 64 << 20))

    flops = 2 * padded_bf * g * g * (
        emb_dim * total_out
        + sum(x_dims[i] * out_dims[i] for i in range(depth))
        + 2 * lat_dim * lat_dim)
    bytes_accessed = (_nbytes(lat_f) + _nbytes(emb_f) + const_bytes
                      + padded_b * out_dim * 4)
    cost = pl.CostEstimate(flops=int(flops),
                           transcendentals=int(padded_b * lat_dim),
                           bytes_accessed=int(bytes_accessed))

    out_f = pl.pallas_call(
        kernel,
        out_shape=jax.ShapeDtypeStruct((padded_bf, g * out_dim), jnp.float32),
        grid_spec=pltpu.PrefetchScalarGridSpec(
            num_scalar_prefetch=0,
            grid=(grid_n,),
            in_specs=in_specs,
            out_specs=out_specs,
        ),
        compiler_params=pltpu.CompilerParams(
            dimension_semantics=("parallel",),
            vmem_limit_bytes=vmem_limit),
        cost_estimate=cost,
    )(lat_f, emb_f, pn, wx_stack, wx_last, wy_all, b_all)

    out = out_f.reshape(padded_b, out_dim)
    if padded_b != B:
        out = out[:B]
    if broadcast_output:
        # glue: dlatent = latent.unsqueeze(1).expand(-1, broadcast_output, -1)
        out = jnp.broadcast_to(out[:, None, :], (B, broadcast_output, out_dim))
    return out


def mapping_net_reference(latent, embedding, weights, biases,
                          *, lr_mul=0.01, gain=math.sqrt(2.0)):
    """Pure-JAX reference matching the PyTorch forward."""
    x = latent * jax.lax.rsqrt(
        jnp.mean(latent * latent, axis=1, keepdims=True) + PIXELNORM_EPS)
    for w, b in zip(weights, biases):
        w_mul = gain / math.sqrt(w.shape[0]) * lr_mul
        inp = jnp.concatenate([x, embedding], axis=1)
        h = inp @ (w * w_mul) + b * lr_mul
        x = jnp.where(h >= 0.0, h, LRELU_SLOPE * h)
    return x


if __name__ == "__main__":
    # Shapes consistent with the module:
    #   latent dim 32 + embedding dim 32 -> input_dim = 64, output_dim = 64,
    #   use_labels=True -> hidden layers output 32, last layer outputs 64.
    B = 16
    LAT_DIM = 32
    EMB_DIM = 32
    INPUT_DIM = LAT_DIM + EMB_DIM   # 64
    OUTPUT_DIM = 64
    HIDDEN_DIM = OUTPUT_DIM // 2    # use_labels=True
    DEPTH = 8
    LR_MUL = 0.01
    GAIN = math.sqrt(2.0)

    key = jax.random.PRNGKey(0)
    k_lat, k_emb, k_w, k_b = jax.random.split(key, 4)

    latent = jax.random.normal(k_lat, (B, LAT_DIM), dtype=jnp.float32)
    embedding = jax.random.normal(k_emb, (B, EMB_DIM), dtype=jnp.float32)

    # EqualizedLinear init (use_wscale=True): weight ~ N(0, 1) / lr_mul, stored
    # transposed as (in_features, out_features). Torch inits biases to zero;
    # small random biases here so the bias path is exercised.
    weights, biases = [], []
    wkeys = jax.random.split(k_w, DEPTH)
    bkeys = jax.random.split(k_b, DEPTH)
    init_std = 1.0 / LR_MUL
    for i in range(DEPTH):
        out_f = HIDDEN_DIM if i < DEPTH - 1 else OUTPUT_DIM
        weights.append(
            jax.random.normal(wkeys[i], (INPUT_DIM, out_f), dtype=jnp.float32) * init_std)
        biases.append(
            jax.random.normal(bkeys[i], (out_f,), dtype=jnp.float32))

    # Tolerance: bf16 single-pass MXU inputs through an 8-layer chained matmul
    # (both kernel and reference round differently); real bugs give O(1) error.
    TOL = 1e-2

    def check(bsz, batch_tile=None):
        lat = latent if bsz == B else jax.random.normal(
            jax.random.PRNGKey(bsz), (bsz, LAT_DIM), dtype=jnp.float32)
        emb = embedding if bsz == B else jax.random.normal(
            jax.random.PRNGKey(bsz + 1), (bsz, EMB_DIM), dtype=jnp.float32)
        out = mapping_net_forward(lat, emb, weights, biases,
                                  lr_mul=LR_MUL, gain=GAIN,
                                  broadcast_output=None, batch_tile=batch_tile)
        out = jax.block_until_ready(out)
        ref = jax.block_until_ready(
            mapping_net_reference(lat, emb, weights, biases,
                                  lr_mul=LR_MUL, gain=GAIN))
        assert out.shape == (bsz, OUTPUT_DIM)
        max_abs = float(jnp.max(jnp.abs(out - ref)))
        rel_err = max_abs / (float(jnp.max(jnp.abs(ref))) + 1e-6)
        assert rel_err < TOL, f"B={bsz}: relative error {rel_err} (abs {max_abs})"

    # Small batch (single grid step) and a padded multi-step grid.
    check(B)
    check(300, batch_tile=64)

    print("KERNEL_OK")
</pallas_src>

<mosaic_0001>
module attributes {stable_mosaic.version = 11 : i64} {
  func.func @_mapping_kernel(%arg0: i32, %arg1: memref<8x256xf32, #tpu.memory_space<vmem>>, %arg2: memref<8x256xf32, #tpu.memory_space<vmem>>, %arg3: memref<256x256xbf16, #tpu.memory_space<vmem>>, %arg4: memref<7x256x256xbf16, #tpu.memory_space<vmem>>, %arg5: memref<256x512xbf16, #tpu.memory_space<vmem>>, %arg6: memref<256x2304xbf16, #tpu.memory_space<vmem>>, %arg7: memref<1x2304xf32, #tpu.memory_space<vmem>>, %arg8: memref<8x512xf32, #tpu.memory_space<vmem>>) attributes {dimension_semantics = [#tpu.dimension_semantics<parallel>], iteration_bounds = array<i64: 1>, scalar_prefetch = 0 : i64, scratch_operands = 0 : i64, tpu.core_type = #tpu.core_type<tc>, window_params = [{transform_indices = @transform_0, window_bounds = array<i64: 8, 256>}, {transform_indices = @transform_1, window_bounds = array<i64: 8, 256>}, {pipeline_mode = #tpu.pipeline_mode<synchronous>, transform_indices = @transform_2, window_bounds = array<i64: 256, 256>}, {pipeline_mode = #tpu.pipeline_mode<synchronous>, transform_indices = @transform_3, window_bounds = array<i64: 7, 256, 256>}, {pipeline_mode = #tpu.pipeline_mode<synchronous>, transform_indices = @transform_4, window_bounds = array<i64: 256, 512>}, {pipeline_mode = #tpu.pipeline_mode<synchronous>, transform_indices = @transform_5, window_bounds = array<i64: 256, 2304>}, {pipeline_mode = #tpu.pipeline_mode<synchronous>, transform_indices = @transform_6, window_bounds = array<i64: 1, 2304>}, {transform_indices = @transform_7, window_bounds = array<i64: 8, 512>}]} {
    %c0 = arith.constant 0 : index
    %c0_0 = arith.constant 0 : index
    %0 = vector.load %arg1[%c0, %c0_0] : memref<8x256xf32, #tpu.memory_space<vmem>>, vector<8x256xf32>
    %c0_1 = arith.constant 0 : index
    %c0_2 = arith.constant 0 : index
    %1 = vector.load %arg3[%c0_1, %c0_2] : memref<256x256xbf16, #tpu.memory_space<vmem>>, vector<256x256xbf16>
    %2 = arith.mulf %0, %0 : vector<8x256xf32>
    %3 = arith.truncf %2 : vector<8x256xf32> to vector<8x256xbf16>
    %4 = arith.extf %3 : vector<8x256xbf16> to vector<8x256xf32>
    %5 = arith.subf %2, %4 : vector<8x256xf32>
    %6 = arith.truncf %5 : vector<8x256xf32> to vector<8x256xbf16>
    %cst = arith.constant dense<0.000000e+00> : vector<8x256xf32>
    %7 = tpu.matmul %3, %1, %cst {dimension_numbers = #tpu.dot_dimension_numbers<[1], [0], [0], [1], [0, 0, 1, 1], [], []>} : vector<8x256xbf16>, vector<256x256xbf16>, vector<8x256xf32> -> vector<8x256xf32>
    %cst_3 = arith.constant dense<0.000000e+00> : vector<8x256xf32>
    %8 = tpu.matmul %6, %1, %cst_3 {dimension_numbers = #tpu.dot_dimension_numbers<[1], [0], [0], [1], [0, 0, 1, 1], [], []>} : vector<8x256xbf16>, vector<256x256xbf16>, vector<8x256xf32> -> vector<8x256xf32>
    %9 = arith.addf %7, %8 : vector<8x256xf32>
    %cst_4 = arith.constant 3.125000e-02 : f32
    %10 = vector.broadcast %cst_4 : f32 to vector<8x256xf32>
    %11 = arith.mulf %9, %10 : vector<8x256xf32>
    %cst_5 = arith.constant 9.99999993E-9 : f32
    %12 = vector.broadcast %cst_5 : f32 to vector<8x256xf32>
    %13 = arith.addf %11, %12 : vector<8x256xf32>
    %14 = math.rsqrt %13 : vector<8x256xf32>
    %15 = arith.mulf %0, %14 : vector<8x256xf32>
    %c0_6 = arith.constant 0 : index
    %c0_7 = arith.constant 0 : index
    %16 = vector.load %arg6[%c0_6, %c0_7] : memref<256x2304xbf16, #tpu.memory_space<vmem>>, vector<256x2304xbf16>
    %c0_8 = arith.constant 0 : index
    %c0_9 = arith.constant 0 : index
    %17 = vector.load %arg2[%c0_8, %c0_9] : memref<8x256xf32, #tpu.memory_space<vmem>>, vector<8x256xf32>
    %18 = arith.truncf %17 : vector<8x256xf32> to vector<8x256xbf16>
    %cst_10 = arith.constant dense<0.000000e+00> : vector<8x2304xf32>
    %19 = tpu.matmul %18, %16, %cst_10 {dimension_numbers = #tpu.dot_dimension_numbers<[1], [0], [0], [1], [0, 0, 1, 1], [], []>} : vector<8x256xbf16>, vector<256x2304xbf16>, vector<8x2304xf32> -> vector<8x2304xf32>
    %c0_11 = arith.constant 0 : index
    %c0_12 = arith.constant 0 : index
    %20 = vector.load %arg7[%c0_11, %c0_12] : memref<1x2304xf32, #tpu.memory_space<vmem>>, vector<1x2304xf32>
    %21 = vector.broadcast %20 : vector<1x2304xf32> to vector<8x2304xf32>
    %22 = arith.addf %19, %21 : vector<8x2304xf32>
    %c0_13 = arith.constant 0 : index
    %c0_14 = arith.constant 0 : index
    %c0_15 = arith.constant 0 : index
    %23 = vector.load %arg4[%c0_13, %c0_14, %c0_15] : memref<7x256x256xbf16, #tpu.memory_space<vmem>>, vector<1x256x256xbf16>
    %24 = vector.shape_cast %23 : vector<1x256x256xbf16> to vector<256x256xbf16>
    %25 = arith.truncf %15 : vector<8x256xf32> to vector<8x256xbf16>
    %cst_16 = arith.constant dense<0.000000e+00> : vector<8x256xf32>
    %26 = tpu.matmul %25, %24, %cst_16 {dimension_numbers = #tpu.dot_dimension_numbers<[1], [0], [0], [1], [0, 0, 1, 1], [], []>} : vector<8x256xbf16>, vector<256x256xbf16>, vector<8x256xf32> -> vector<8x256xf32>
    %27 = vector.extract_strided_slice %22 {offsets = [0, 0], sizes = [8, 256], strides = [1, 1]} : vector<8x2304xf32> to vector<8x256xf32>
    %28 = arith.addf %26, %27 : vector<8x256xf32>
    %cst_17 = arith.constant 2.000000e-01 : f32
    %29 = vector.broadcast %cst_17 : f32 to vector<8x256xf32>
    %30 = arith.mulf %29, %28 : vector<8x256xf32>
    %31 = arith.maximumf %28, %30 : vector<8x256xf32>
    %c1 = arith.constant 1 : index
    %c0_18 = arith.constant 0 : index
    %c0_19 = arith.constant 0 : index
    %32 = vector.load %arg4[%c1, %c0_18, %c0_19] : memref<7x256x256xbf16, #tpu.memory_space<vmem>>, vector<1x256x256xbf16>
    %33 = vector.shape_cast %32 : vector<1x256x256xbf16> to vector<256x256xbf16>
    %34 = arith.truncf %31 : vector<8x256xf32> to vector<8x256xbf16>
    %cst_20 = arith.constant dense<0.000000e+00> : vector<8x256xf32>
    %35 = tpu.matmul %34, %33, %cst_20 {dimension_numbers = #tpu.dot_dimension_numbers<[1], [0], [0], [1], [0, 0, 1, 1], [], []>} : vector<8x256xbf16>, vector<256x256xbf16>, vector<8x256xf32> -> vector<8x256xf32>
    %36 = vector.extract_strided_slice %22 {offsets = [0, 256], sizes = [8, 256], strides = [1, 1]} : vector<8x2304xf32> to vector<8x256xf32>
    %37 = arith.addf %35, %36 : vector<8x256xf32>
    %cst_21 = arith.constant 2.000000e-01 : f32
    %38 = vector.broadcast %cst_21 : f32 to vector<8x256xf32>
    %39 = arith.mulf %38, %37 : vector<8x256xf32>
    %40 = arith.maximumf %37, %39 : vector<8x256xf32>
    %c2 = arith.constant 2 : index
    %c0_22 = arith.constant 0 : index
    %c0_23 = arith.constant 0 : index
    %41 = vector.load %arg4[%c2, %c0_22, %c0_23] : memref<7x256x256xbf16, #tpu.memory_space<vmem>>, vector<1x256x256xbf16>
    %42 = vector.shape_cast %41 : vector<1x256x256xbf16> to vector<256x256xbf16>
    %43 = arith.truncf %40 : vector<8x256xf32> to vector<8x256xbf16>
    %cst_24 = arith.constant dense<0.000000e+00> : vector<8x256xf32>
    %44 = tpu.matmul %43, %42, %cst_24 {dimension_numbers = #tpu.dot_dimension_numbers<[1], [0], [0], [1], [0, 0, 1, 1], [], []>} : vector<8x256xbf16>, vector<256x256xbf16>, vector<8x256xf32> -> vector<8x256xf32>
    %45 = vector.extract_strided_slice %22 {offsets = [0, 512], sizes = [8, 256], strides = [1, 1]} : vector<8x2304xf32> to vector<8x256xf32>
    %46 = arith.addf %44, %45 : vector<8x256xf32>
    %cst_25 = arith.constant 2.000000e-01 : f32
    %47 = vector.broadcast %cst_25 : f32 to vector<8x256xf32>
    %48 = arith.mulf %47, %46 : vector<8x256xf32>
    %49 = arith.maximumf %46, %48 : vector<8x256xf32>
    %c3 = arith.constant 3 : index
    %c0_26 = arith.constant 0 : index
    %c0_27 = arith.constant 0 : index
    %50 = vector.load %arg4[%c3, %c0_26, %c0_27] : memref<7x256x256xbf16, #tpu.memory_space<vmem>>, vector<1x256x256xbf16>
    %51 = vector.shape_cast %50 : vector<1x256x256xbf16> to vector<256x256xbf16>
    %52 = arith.truncf %49 : vector<8x256xf32> to vector<8x256xbf16>
    %cst_28 = arith.constant dense<0.000000e+00> : vector<8x256xf32>
    %53 = tpu.matmul %52, %51, %cst_28 {dimension_numbers = #tpu.dot_dimension_numbers<[1], [0], [0], [1], [0, 0, 1, 1], [], []>} : vector<8x256xbf16>, vector<256x256xbf16>, vector<8x256xf32> -> vector<8x256xf32>
    %54 = vector.extract_strided_slice %22 {offsets = [0, 768], sizes = [8, 256], strides = [1, 1]} : vector<8x2304xf32> to vector<8x256xf32>
    %55 = arith.addf %53, %54 : vector<8x256xf32>
    %cst_29 = arith.constant 2.000000e-01 : f32
    %56 = vector.broadcast %cst_29 : f32 to vector<8x256xf32>
    %57 = arith.mulf %56, %55 : vector<8x256xf32>
    %58 = arith.maximumf %55, %57 : vector<8x256xf32>
    %c4 = arith.constant 4 : index
    %c0_30 = arith.constant 0 : index
    %c0_31 = arith.constant 0 : index
    %59 = vector.load %arg4[%c4, %c0_30, %c0_31] : memref<7x256x256xbf16, #tpu.memory_space<vmem>>, vector<1x256x256xbf16>
    %60 = vector.shape_cast %59 : vector<1x256x256xbf16> to vector<256x256xbf16>
    %61 = arith.truncf %58 : vector<8x256xf32> to vector<8x256xbf16>
    %cst_32 = arith.constant dense<0.000000e+00> : vector<8x256xf32>
    %62 = tpu.matmul %61, %60, %cst_32 {dimension_numbers = #tpu.dot_dimension_numbers<[1], [0], [0], [1], [0, 0, 1, 1], [], []>} : vector<8x256xbf16>, vector<256x256xbf16>, vector<8x256xf32> -> vector<8x256xf32>
    %63 = vector.extract_strided_slice %22 {offsets = [0, 1024], sizes = [8, 256], strides = [1, 1]} : vector<8x2304xf32> to vector<8x256xf32>
    %64 = arith.addf %62, %63 : vector<8x256xf32>
    %cst_33 = arith.constant 2.000000e-01 : f32
    %65 = vector.broadcast %cst_33 : f32 to vector<8x256xf32>
    %66 = arith.mulf %65, %64 : vector<8x256xf32>
    %67 = arith.maximumf %64, %66 : vector<8x256xf32>
    %c5 = arith.constant 5 : index
    %c0_34 = arith.constant 0 : index
    %c0_35 = arith.constant 0 : index
    %68 = vector.load %arg4[%c5, %c0_34, %c0_35] : memref<7x256x256xbf16, #tpu.memory_space<vmem>>, vector<1x256x256xbf16>
    %69 = vector.shape_cast %68 : vector<1x256x256xbf16> to vector<256x256xbf16>
    %70 = arith.truncf %67 : vector<8x256xf32> to vector<8x256xbf16>
    %cst_36 = arith.constant dense<0.000000e+00> : vector<8x256xf32>
    %71 = tpu.matmul %70, %69, %cst_36 {dimension_numbers = #tpu.dot_dimension_numbers<[1], [0], [0], [1], [0, 0, 1, 1], [], []>} : vector<8x256xbf16>, vector<256x256xbf16>, vector<8x256xf32> -> vector<8x256xf32>
    %72 = vector.extract_strided_slice %22 {offsets = [0, 1280], sizes = [8, 256], strides = [1, 1]} : vector<8x2304xf32> to vector<8x256xf32>
    %73 = arith.addf %71, %72 : vector<8x256xf32>
    %cst_37 = arith.constant 2.000000e-01 : f32
    %74 = vector.broadcast %cst_37 : f32 to vector<8x256xf32>
    %75 = arith.mulf %74, %73 : vector<8x256xf32>
    %76 = arith.maximumf %73, %75 : vector<8x256xf32>
    %c6 = arith.constant 6 : index
    %c0_38 = arith.constant 0 : index
    %c0_39 = arith.constant 0 : index
    %77 = vector.load %arg4[%c6, %c0_38, %c0_39] : memref<7x256x256xbf16, #tpu.memory_space<vmem>>, vector<1x256x256xbf16>
    %78 = vector.shape_cast %77 : vector<1x256x256xbf16> to vector<256x256xbf16>
    %79 = arith.truncf %76 : vector<8x256xf32> to vector<8x256xbf16>
    %cst_40 = arith.constant dense<0.000000e+00> : vector<8x256xf32>
    %80 = tpu.matmul %79, %78, %cst_40 {dimension_numbers = #tpu.dot_dimension_numbers<[1], [0], [0], [1], [0, 0, 1, 1], [], []>} : vector<8x256xbf16>, vector<256x256xbf16>, vector<8x256xf32> -> vector<8x256xf32>
    %81 = vector.extract_strided_slice %22 {offsets = [0, 1536], sizes = [8, 256], strides = [1, 1]} : vector<8x2304xf32> to vector<8x256xf32>
    %82 = arith.addf %80, %81 : vector<8x256xf32>
    %cst_41 = arith.constant 2.000000e-01 : f32
    %83 = vector.broadcast %cst_41 : f32 to vector<8x256xf32>
    %84 = arith.mulf %83, %82 : vector<8x256xf32>
    %85 = arith.maximumf %82, %84 : vector<8x256xf32>
    %c0_42 = arith.constant 0 : index
    %c0_43 = arith.constant 0 : index
    %86 = vector.load %arg5[%c0_42, %c0_43] : memref<256x512xbf16, #tpu.memory_space<vmem>>, vector<256x512xbf16>
    %87 = arith.truncf %85 : vector<8x256xf32> to vector<8x256xbf16>
    %cst_44 = arith.constant dense<0.000000e+00> : vector<8x512xf32>
    %88 = tpu.matmul %87, %86, %cst_44 {dimension_numbers = #tpu.dot_dimension_numbers<[1], [0], [0], [1], [0, 0, 1, 1], [], []>} : vector<8x256xbf16>, vector<256x512xbf16>, vector<8x512xf32> -> vector<8x512xf32>
    %89 = vector.extract_strided_slice %22 {offsets = [0, 1792], sizes = [8, 512], strides = [1, 1]} : vector<8x2304xf32> to vector<8x512xf32>
    %90 = arith.addf %88, %89 : vector<8x512xf32>
    %cst_45 = arith.constant 2.000000e-01 : f32
    %91 = vector.broadcast %cst_45 : f32 to vector<8x512xf32>
    %92 = arith.mulf %91, %90 : vector<8x512xf32>
    %93 = arith.maximumf %90, %92 : vector<8x512xf32>
    %c0_46 = arith.constant 0 : index
    %c0_47 = arith.constant 0 : index
    %94 = vector.load %arg8[%c0_46, %c0_47] : memref<8x512xf32, #tpu.memory_space<vmem>>, vector<8x512xf32>
    tpu.vector_store %arg8[%c0_46, %c0_47], %93 {strides = array<i32>} : memref<8x512xf32, #tpu.memory_space<vmem>>, vector<8x512xf32>,
    return
  }
  func.func @transform_0(%arg0: i32) -> (i32, i32) {
    %c0_i32 = arith.constant 0 : i32
    %c0_i32_0 = arith.constant 0 : i32
    return %arg0, %c0_i32 : i32, i32
  }
  func.func @transform_1(%arg0: i32) -> (i32, i32) {
    %c0_i32 = arith.constant 0 : i32
    %c0_i32_0 = arith.constant 0 : i32
    return %arg0, %c0_i32 : i32, i32
  }
  func.func @transform_2(%arg0: i32) -> (i32, i32) {
    %c0_i32 = arith.constant 0 : i32
    %c0_i32_0 = arith.constant 0 : i32
    %c0_i32_1 = arith.constant 0 : i32
    return %c0_i32, %c0_i32_0 : i32, i32
  }
  func.func @transform_3(%arg0: i32) -> (i32, i32, i32) {
    %c0_i32 = arith.constant 0 : i32
    %c0_i32_0 = arith.constant 0 : i32
    %c0_i32_1 = arith.constant 0 : i32
    %c0_i32_2 = arith.constant 0 : i32
    return %c0_i32, %c0_i32_0, %c0_i32_1 : i32, i32, i32
  }
  func.func @transform_4(%arg0: i32) -> (i32, i32) {
    %c0_i32 = arith.constant 0 : i32
    %c0_i32_0 = arith.constant 0 : i32
    %c0_i32_1 = arith.constant 0 : i32
    return %c0_i32, %c0_i32_0 : i32, i32
  }
  func.func @transform_5(%arg0: i32) -> (i32, i32) {
    %c0_i32 = arith.constant 0 : i32
    %c0_i32_0 = arith.constant 0 : i32
    %c0_i32_1 = arith.constant 0 : i32
    return %c0_i32, %c0_i32_0 : i32, i32
  }
  func.func @transform_6(%arg0: i32) -> (i32, i32) {
    %c0_i32 = arith.constant 0 : i32
    %c0_i32_0 = arith.constant 0 : i32
    %c0_i32_1 = arith.constant 0 : i32
    return %c0_i32, %c0_i32_0 : i32, i32
  }
  func.func @transform_7(%arg0: i32) -> (i32, i32) {
    %c0_i32 = arith.constant 0 : i32
    %c0_i32_0 = arith.constant 0 : i32
    return %arg0, %c0_i32 : i32, i32
  }
}

</mosaic_0001>

<llo_original>
// kernel: tpu_custom_call.1
$region0: #{tpu_custom_call.1}
  #allocation0 [shape = 'u32[]', space=smem, size = 0x4, offset = 0x4, fixed_abs, tag = 'smem constant byte address 0x4 - core index']
  #allocation1 [shape = 'u32[144,128]{1,0:T(1,128)}', space=vmem, size = 0x12000, scoped, tag = 'internal scratch']
  %s0 = inlined_call_operand.hbm [shape: f32[8,256], index: 0, kind: input, shape index: {}]
  %s1 = inlined_call_operand.hbm [shape: f32[8,256], index: 1, kind: input, shape index: {}]
  %s2 = inlined_call_operand.hbm [shape: bf16[256,256], index: 2, kind: input, shape index: {}]
  %s3 = inlined_call_operand.hbm [shape: bf16[7,256,256], index: 3, kind: input, shape index: {}]
  %s4 = inlined_call_operand.hbm [shape: bf16[256,512], index: 4, kind: input, shape index: {}]
  %s5 = inlined_call_operand.hbm [shape: bf16[256,2304], index: 5, kind: input, shape index: {}]
  %s6 = inlined_call_operand.hbm [shape: f32[1,2304], index: 6, kind: input, shape index: {}]
  %s7 = inlined_call_operand.hbm [shape: f32[8,512], index: 7, kind: output, shape index: {}]
  %s8 = sld [smem:[#allocation0]]
  $region66: #{tpu_custom_call.1} parent=0
    _
  %s10 = ssub.s32 1, %s8
  %s11 = scalar_select 0, %s10, %s8
  $region1: #{tpu_custom_call.1} parent=0
    #allocation2 [shape = 'u8[8192]{0}', space=vmem, size = 0x2000, scoped, tag = 'input window, operand 0, single buffered']
    #allocation3 [shape = 's32[1]{0}', space=sflag, size = 0x4, scoped, tag = 'scoped memory for tpu_custom_call.1']
    #allocation4 [shape = 's32[1]{0}', space=sflag, size = 0x4, scoped, tag = 'scoped memory for tpu_custom_call.1']
    #allocation5 [shape = 'u8[8192]{0}', space=vmem, size = 0x2000, scoped, tag = 'input window, operand 1, single buffered']
    #allocation6 [shape = 's32[1]{0}', space=sflag, size = 0x4, scoped, tag = 'scoped memory for tpu_custom_call.1']
    #allocation7 [shape = 'u8[131072]{0}', space=vmem, size = 0x20000, scoped, tag = 'input window, operand 2, single buffered']
    #allocation8 [shape = 'u8[917504]{0}', space=vmem, size = 0xe0000, scoped, tag = 'input window, operand 3, single buffered']
    #allocation9 [shape = 's32[1]{0}', space=sflag, size = 0x4, scoped, tag = 'scoped memory for tpu_custom_call.1']
    #allocation10 [shape = 'u8[262144]{0}', space=vmem, size = 0x40000, scoped, tag = 'input window, operand 4, single buffered']
    #allocation11 [shape = 'u8[1179648]{0}', space=vmem, size = 0x120000, scoped, tag = 'input window, operand 5, single buffered']
    #allocation12 [shape = 's32[1]{0}', space=sflag, size = 0x4, scoped, tag = 'scoped memory for tpu_custom_call.1']
    #allocation13 [shape = 'u8[9216]{0}', space=vmem, size = 0x2400, scoped, tag = 'input window, operand 6, single buffered']
    #allocation14 [shape = 'u8[16384]{0}', space=vmem, size = 0x4000, scoped, tag = 'output window, operand 0, single buffered']
    %12 = vsyncpa [#allocation3], 0
    %13 = vsyncpa [#allocation6], 0
    %14 = vsyncpa [#allocation9], 0
    %15 = vsyncpa [#allocation12], 0
    %16 = vsyncpa [#allocation4], 0
    // Predicated region
    $region2: #{tpu_custom_call.1} parent=1 // pred_check
      _
    $region3: #{tpu_custom_call.1} parent=1 // pred_check_branch
      %18 = sbr.rel (0) target = $region5
    $region4: #{tpu_custom_call.1} parent=1 // pred_region
      %s20 = ssub.s32 256, 256
      %21 = vsyncadd [#allocation3], %s20
      %s23 = sshll.u32 [#allocation2], 4
      %s24 = int_to_ptr.vmem [resolvable:$true] %s23
      %26 = dma.hbm_to_vmem [thread:$0]  %s0, 256, %s24, [#allocation3]
    $region5: #{tpu_custom_call.1} parent=1 // pred_fallthru
      _
    // Predicated region
    $region6: #{tpu_custom_call.1} parent=1 // pred_check
      _
    $region7: #{tpu_custom_call.1} parent=1 // pred_check_branch
      %28 = sbr.rel (0) target = $region9
    $region8: #{tpu_custom_call.1} parent=1 // pred_region
      %s30 = ssub.s32 256, 256
      %31 = vsyncadd [#allocation6], %s30
      %s33 = sshll.u32 [#allocation5], 4
      %s34 = int_to_ptr.vmem [resolvable:$true] %s33
      %36 = dma.hbm_to_vmem [thread:$0]  %s1, 256, %s34, [#allocation6]
    $region9: #{tpu_custom_call.1} parent=1 // pred_fallthru
      _
    // Predicated region
    $region10: #{tpu_custom_call.1} parent=1 // pred_check
      _
    $region11: #{tpu_custom_call.1} parent=1 // pred_check_branch
      %38 = sbr.rel (0) target = $region13
    $region12: #{tpu_custom_call.1} parent=1 // pred_region
      %s40 = ssub.s32 4096, 4096
      %41 = vsyncadd [#allocation6], %s40
      %s42 = sshll.u32 [#allocation7], 4
      %s43 = int_to_ptr.vmem [resolvable:$true] %s42
      %48 = dma.hbm_to_vmem [thread:$0]  %s2, 4096, %s43, [#allocation6], 128, 128, 8
    $region13: #{tpu_custom_call.1} parent=1 // pred_fallthru
      _
    // Predicated region
    $region14: #{tpu_custom_call.1} parent=1 // pred_check
      _
    $region15: #{tpu_custom_call.1} parent=1 // pred_check_branch
      %50 = sbr.rel (0) target = $region17
    $region16: #{tpu_custom_call.1} parent=1 // pred_region
      %s52 = ssub.s32 28672, 28672
      %53 = vsyncadd [#allocation9], %s52
      %s54 = sshll.u32 [#allocation8], 4
      %s55 = int_to_ptr.vmem [resolvable:$true] %s54
      %60 = dma.hbm_to_vmem [thread:$0]  %s3, 28672, %s55, [#allocation9], 128, 128, 8
    $region17: #{tpu_custom_call.1} parent=1 // pred_fallthru
      _
    // Predicated region
    $region18: #{tpu_custom_call.1} parent=1 // pred_check
      _
    $region19: #{tpu_custom_call.1} parent=1 // pred_check_branch
      %62 = sbr.rel (0) target = $region21
    $region20: #{tpu_custom_call.1} parent=1 // pred_region
      %s64 = ssub.s32 8192, 8192
      %65 = vsyncadd [#allocation9], %s64
      %s66 = sshll.u32 [#allocation10], 4
      %s67 = int_to_ptr.vmem [resolvable:$true] %s66
      %72 = dma.hbm_to_vmem [thread:$0]  %s4, 8192, %s67, [#allocation9], 256, 256, 16
    $region21: #{tpu_custom_call.1} parent=1 // pred_fallthru
      _
    // Predicated region
    $region22: #{tpu_custom_call.1} parent=1 // pred_check
      _
    $region23: #{tpu_custom_call.1} parent=1 // pred_check_branch
      %74 = sbr.rel (0) target = $region25
    $region24: #{tpu_custom_call.1} parent=1 // pred_region
      %s76 = ssub.s32 36864, 36864
      %77 = vsyncadd [#allocation12], %s76
      %s78 = sshll.u32 [#allocation11], 4
      %s79 = int_to_ptr.vmem [resolvable:$true] %s78
      %84 = dma.hbm_to_vmem [thread:$0]  %s5, 36864, %s79, [#allocation12], 1152, 1152, 72
    $region25: #{tpu_custom_call.1} parent=1 // pred_fallthru
      _
    // Predicated region
    $region26: #{tpu_custom_call.1} parent=1 // pred_check
      _
    $region27: #{tpu_custom_call.1} parent=1 // pred_check_branch
      %86 = sbr.rel (0) target = $region29
    $region28: #{tpu_custom_call.1} parent=1 // pred_region
      %s88 = ssub.s32 288, 288
      %89 = vsyncadd [#allocation12], %s88
      %s91 = sshll.u32 [#allocation13], 4
      %s92 = int_to_ptr.vmem [resolvable:$true] %s91
      %94 = dma.hbm_to_vmem [thread:$0]  %s6, 288, %s92, [#allocation12]
    $region29: #{tpu_custom_call.1} parent=1 // pred_fallthru
      _
    // Predicated region
    $region30: #{tpu_custom_call.1} parent=1 // pred_check
      _
    $region31: #{tpu_custom_call.1} parent=1 // pred_check_branch
      %96 = sbr.rel (0) target = $region33
    $region32: #{tpu_custom_call.1} parent=1 // pred_region
      %97 = dma.done [#allocation3], 256
    $region33: #{tpu_custom_call.1} parent=1 // pred_fallthru
      _
    // Predicated region
    $region34: #{tpu_custom_call.1} parent=1 // pred_check
      _
    $region35: #{tpu_custom_call.1} parent=1 // pred_check_branch
      %99 = sbr.rel (0) target = $region37
    $region36: #{tpu_custom_call.1} parent=1 // pred_region
      %100 = dma.done [#allocation6], 256
    $region37: #{tpu_custom_call.1} parent=1 // pred_fallthru
      _
    // Predicated region
    $region38: #{tpu_custom_call.1} parent=1 // pred_check
      _
    $region39: #{tpu_custom_call.1} parent=1 // pred_check_branch
      %102 = sbr.rel (0) target = $region41
    $region40: #{tpu_custom_call.1} parent=1 // pred_region
      %103 = dma.done [#allocation6], 4096
    $region41: #{tpu_custom_call.1} parent=1 // pred_fallthru
      _
    // Predicated region
    $region42: #{tpu_custom_call.1} parent=1 // pred_check
      _
    $region43: #{tpu_custom_call.1} parent=1 // pred_check_branch
      %105 = sbr.rel (0) target = $region45
    $region44: #{tpu_custom_call.1} parent=1 // pred_region
      %106 = dma.done [#allocation9], 28672
    $region45: #{tpu_custom_call.1} parent=1 // pred_fallthru
      _
    // Predicated region
    $region46: #{tpu_custom_call.1} parent=1 // pred_check
      _
    $region47: #{tpu_custom_call.1} parent=1 // pred_check_branch
      %108 = sbr.rel (0) target = $region49
    $region48: #{tpu_custom_call.1} parent=1 // pred_region
      %109 = dma.done [#allocation9], 8192
    $region49: #{tpu_custom_call.1} parent=1 // pred_fallthru
      _
    // Predicated region
    $region50: #{tpu_custom_call.1} parent=1 // pred_check
      _
    $region51: #{tpu_custom_call.1} parent=1 // pred_check_branch
      %111 = sbr.rel (0) target = $region53
    $region52: #{tpu_custom_call.1} parent=1 // pred_region
      %112 = dma.done [#allocation12], 36864
    $region53: #{tpu_custom_call.1} parent=1 // pred_fallthru
      _
    // Predicated region
    $region54: #{tpu_custom_call.1} parent=1 // pred_check
      _
    $region55: #{tpu_custom_call.1} parent=1 // pred_check_branch
      %114 = sbr.rel (0) target = $region57
    $region56: #{tpu_custom_call.1} parent=1 // pred_region
      %115 = dma.done [#allocation12], 288
    $region57: #{tpu_custom_call.1} parent=1 // pred_fallthru
      _
    %v116 = vld [vmem:[#allocation2] sm:$0xff]
    %v117 = vld [vmem:[#allocation2 + $0x8] sm:$0xff]
    %v118 = vld [vmem:[#allocation7] sm:$0xff]
    %v119 = vld [vmem:[#allocation7 + $0x8] sm:$0xff]
    %v120 = vld [vmem:[#allocation7 + $0x10] sm:$0xff]
    %v121 = vld [vmem:[#allocation7 + $0x18] sm:$0xff]
    %v122 = vld [vmem:[#allocation7 + $0x20] sm:$0xff]
    %v123 = vld [vmem:[#allocation7 + $0x28] sm:$0xff]
    %v124 = vld [vmem:[#allocation7 + $0x30] sm:$0xff]
    %v125 = vld [vmem:[#allocation7 + $0x38] sm:$0xff]
    %v126 = vld [vmem:[#allocation7 + $0x40] sm:$0xff]
    %v127 = vld [vmem:[#allocation7 + $0x48] sm:$0xff]
    %v128 = vld [vmem:[#allocation7 + $0x50] sm:$0xff]
    %v129 = vld [vmem:[#allocation7 + $0x58] sm:$0xff]
    %v130 = vld [vmem:[#allocation7 + $0x60] sm:$0xff]
    %v131 = vld [vmem:[#allocation7 + $0x68] sm:$0xff]
    %v132 = vld [vmem:[#allocation7 + $0x70] sm:$0xff]
    %v133 = vld [vmem:[#allocation7 + $0x78] sm:$0xff]
    %v134 = vld [vmem:[#allocation7 + $0x80] sm:$0xff]
    %v135 = vld [vmem:[#allocation7 + $0x88] sm:$0xff]
    %v136 = vld [vmem:[#allocation7 + $0x90] sm:$0xff]
    %v137 = vld [vmem:[#allocation7 + $0x98] sm:$0xff]
    %v138 = vld [vmem:[#allocation7 + $0xa0] sm:$0xff]
    %v139 = vld [vmem:[#allocation7 + $0xa8] sm:$0xff]
    %v140 = vld [vmem:[#allocation7 + $0xb0] sm:$0xff]
    %v141 = vld [vmem:[#allocation7 + $0xb8] sm:$0xff]
    %v142 = vld [vmem:[#allocation7 + $0xc0] sm:$0xff]
    %v143 = vld [vmem:[#allocation7 + $0xc8] sm:$0xff]
    %v144 = vld [vmem:[#allocation7 + $0xd0] sm:$0xff]
    %v145 = vld [vmem:[#allocation7 + $0xd8] sm:$0xff]
    %v146 = vld [vmem:[#allocation7 + $0xe0] sm:$0xff]
    %v147 = vld [vmem:[#allocation7 + $0xe8] sm:$0xff]
    %v148 = vld [vmem:[#allocation7 + $0xf0] sm:$0xff]
    %v149 = vld [vmem:[#allocation7 + $0xf8] sm:$0xff]
    %v150 = vmul.f32 %v116, %v116
    %v151 = vmul.f32 %v117, %v117
    %v152 = vpack.c.bf16 %v150, %v150
    %v153 = vpack.c.bf16 %v151, %v151
    %v154 = vunpack.c.l.bf16 %v152
    %v155 = vunpack.c.l.bf16 %v153
    %v156 = vsub.f32 %v150, %v154
    %v157 = vsub.f32 %v151, %v155
    %v158 = vpack.c.bf16 %v156, %v156
    %v159 = vpack.c.bf16 %v157, %v157
    %v192 = vunpack.c.l.b16 %v118
    %v193 = vunpack.c.h.b16 %v118
    %v194 = vunpack.c.l.b16 %v119
    %v195 = vunpack.c.h.b16 %v119
    %v196 = vunpack.c.l.b16 %v120
    %v197 = vunpack.c.h.b16 %v120
    %v198 = vunpack.c.l.b16 %v121
    %v199 = vunpack.c.h.b16 %v121
    %v200 = vunpack.c.l.b16 %v122
    %v201 = vunpack.c.h.b16 %v122
    %v202 = vunpack.c.l.b16 %v123
    %v203 = vunpack.c.h.b16 %v123
    %v204 = vunpack.c.l.b16 %v124
    %v205 = vunpack.c.h.b16 %v124
    %v206 = vunpack.c.l.b16 %v125
    %v207 = vunpack.c.h.b16 %v125
    %v208 = vunpack.c.l.b16 %v126
    %v209 = vunpack.c.h.b16 %v126
    %v210 = vunpack.c.l.b16 %v127
    %v211 = vunpack.c.h.b16 %v127
    %v212 = vunpack.c.l.b16 %v128
    %v213 = vunpack.c.h.b16 %v128
    %v214 = vunpack.c.l.b16 %v129
    %v215 = vunpack.c.h.b16 %v129
    %v216 = vunpack.c.l.b16 %v130
    %v217 = vunpack.c.h.b16 %v130
    %v218 = vunpack.c.l.b16 %v131
    %v219 = vunpack.c.h.b16 %v131
    %v220 = vunpack.c.l.b16 %v132
    %v221 = vunpack.c.h.b16 %v132
    %v222 = vunpack.c.l.b16 %v133
    %v223 = vunpack.c.h.b16 %v133
    %v224 = vunpack.c.l.b16 %v134
    %v225 = vunpack.c.h.b16 %v134
    %v226 = vunpack.c.l.b16 %v135
    %v227 = vunpack.c.h.b16 %v135
    %v228 = vunpack.c.l.b16 %v136
    %v229 = vunpack.c.h.b16 %v136
    %v230 = vunpack.c.l.b16 %v137
    %v231 = vunpack.c.h.b16 %v137
    %v232 = vunpack.c.l.b16 %v138
    %v233 = vunpack.c.h.b16 %v138
    %v234 = vunpack.c.l.b16 %v139
    %v235 = vunpack.c.h.b16 %v139
    %v236 = vunpack.c.l.b16 %v140
    %v237 = vunpack.c.h.b16 %v140
    %v238 = vunpack.c.l.b16 %v141
    %v239 = vunpack.c.h.b16 %v141
    %v240 = vunpack.c.l.b16 %v142
    %v241 = vunpack.c.h.b16 %v142
    %v242 = vunpack.c.l.b16 %v143
    %v243 = vunpack.c.h.b16 %v143
    %v244 = vunpack.c.l.b16 %v144
    %v245 = vunpack.c.h.b16 %v144
    %v246 = vunpack.c.l.b16 %v145
    %v247 = vunpack.c.h.b16 %v145
    %v248 = vunpack.c.l.b16 %v146
    %v249 = vunpack.c.h.b16 %v146
    %v250 = vunpack.c.l.b16 %v147
    %v251 = vunpack.c.h.b16 %v147
    %v252 = vunpack.c.l.b16 %v148
    %v253 = vunpack.c.h.b16 %v148
    %v254 = vunpack.c.l.b16 %v149
    %v255 = vunpack.c.h.b16 %v149
    %v256 = vpack.c.b16 %v194, %v192
    %v257 = vpack.c.b16 %v195, %v193
    %v258 = vpack.c.b16 %v198, %v196
    %v259 = vpack.c.b16 %v199, %v197
    %v260 = vpack.c.b16 %v202, %v200
    %v261 = vpack.c.b16 %v203, %v201
    %v262 = vpack.c.b16 %v206, %v204
    %v263 = vpack.c.b16 %v207, %v205
    %v264 = vpack.c.b16 %v210, %v208
    %v265 = vpack.c.b16 %v211, %v209
    %v266 = vpack.c.b16 %v214, %v212
    %v267 = vpack.c.b16 %v215, %v213
    %v268 = vpack.c.b16 %v218, %v216
    %v269 = vpack.c.b16 %v219, %v217
    %v270 = vpack.c.b16 %v222, %v220
    %v271 = vpack.c.b16 %v223, %v221
    %v272 = vpack.c.b16 %v226, %v224
    %v273 = vpack.c.b16 %v227, %v225
    %v274 = vpack.c.b16 %v230, %v228
    %v275 = vpack.c.b16 %v231, %v229
    %v276 = vpack.c.b16 %v234, %v232
    %v277 = vpack.c.b16 %v235, %v233
    %v278 = vpack.c.b16 %v238, %v236
    %v279 = vpack.c.b16 %v239, %v237
    %v280 = vpack.c.b16 %v242, %v240
    %v281 = vpack.c.b16 %v243, %v241
    %v282 = vpack.c.b16 %v246, %v244
    %v283 = vpack.c.b16 %v247, %v245
    %v284 = vpack.c.b16 %v250, %v248
    %v285 = vpack.c.b16 %v251, %v249
    %v286 = vpack.c.b16 %v254, %v252
    %v287 = vpack.c.b16 %v255, %v253
    %320 = vmatprep.subr.bf16.mxu0 %v271
    %321 = vmatpush1.bf16.msra.mxu0 %v270
    %322 = vmatprep.subr.bf16.mxu0 %v269
    %323 = vmatpush1.bf16.msra.mxu0 %v268
    %324 = vmatprep.subr.bf16.mxu0 %v267
    %325 = vmatpush1.bf16.msra.mxu0 %v266
    %326 = vmatprep.subr.bf16.mxu0 %v265
    %327 = vmatpush1.bf16.msra.mxu0 %v264
    %328 = vmatprep.subr.bf16.mxu0 %v263
    %329 = vmatpush1.bf16.msra.mxu0 %v262
    %330 = vmatprep.subr.bf16.mxu0 %v261
    %331 = vmatpush1.bf16.msra.mxu0 %v260
    %332 = vmatprep.subr.bf16.mxu0 %v259
    %333 = vmatpush1.bf16.msra.mxu0 %v258
    %334 = vmatprep.subr.bf16.mxu0 %v257
    %335 = vmatpush1.bf16.msra.mxu0 %v256
    %336 = vmatprep.subr.bf16.mxu0 %v287
    %337 = vmatpush2.bf16.msra.mxu0 %v286
    %338 = vmatprep.subr.bf16.mxu0 %v285
    %339 = vmatpush2.bf16.msra.mxu0 %v284
    %340 = vmatprep.subr.bf16.mxu0 %v283
    %341 = vmatpush2.bf16.msra.mxu0 %v282
    %342 = vmatprep.subr.bf16.mxu0 %v281
    %343 = vmatpush2.bf16.msra.mxu0 %v280
    %344 = vmatprep.subr.bf16.mxu0 %v279
    %345 = vmatpush2.bf16.msra.mxu0 %v278
    %346 = vmatprep.subr.bf16.mxu0 %v277
    %347 = vmatpush2.bf16.msra.mxu0 %v276
    %348 = vmatprep.subr.bf16.mxu0 %v275
    %349 = vmatpush2.bf16.msra.mxu0 %v274
    %350 = vmatprep.subr.bf16.mxu0 %v273
    %351 = vmatpush2.bf16.msra.mxu0 %v272
    %352 = vmatprep.mubr.bf16.mxu0 %v159
    %353 = vmatmul.mubr.bf16.gmra.mxu0 %v158
    %v354 = vpop.f32.mrf.mxu0
    %v355 = vadd.f32 0.0, %v354
    %v356 = vpop.f32.mrf.mxu0
    %v357 = vadd.f32 0.0, %v356
    %v358 = vpop.f32.mrf.mxu0
    %v359 = vpop.f32.mrf.mxu0
    %360 = vdwg.mxu0
    %361 = vmatprep.subr.bf16.mxu0 %v271
    %362 = vmatpush1.bf16.msra.mxu0 %v270
    %363 = vmatprep.subr.bf16.mxu0 %v269
    %364 = vmatpush1.bf16.msra.mxu0 %v268
    %365 = vmatprep.subr.bf16.mxu0 %v267
    %366 = vmatpush1.bf16.msra.mxu0 %v266
    %367 = vmatprep.subr.bf16.mxu0 %v265
    %368 = vmatpush1.bf16.msra.mxu0 %v264
    %369 = vmatprep.subr.bf16.mxu0 %v263
    %370 = vmatpush1.bf16.msra.mxu0 %v262
    %371 = vmatprep.subr.bf16.mxu0 %v261
    %372 = vmatpush1.bf16.msra.mxu0 %v260
    %373 = vmatprep.subr.bf16.mxu0 %v259
    %374 = vmatpush1.bf16.msra.mxu0 %v258
    %375 = vmatprep.subr.bf16.mxu0 %v257
    %376 = vmatpush1.bf16.msra.mxu0 %v256
    %377 = vmatprep.subr.bf16.mxu0 %v287
    %378 = vmatpush2.bf16.msra.mxu0 %v286
    %379 = vmatprep.subr.bf16.mxu0 %v285
    %380 = vmatpush2.bf16.msra.mxu0 %v284
    %381 = vmatprep.subr.bf16.mxu0 %v283
    %382 = vmatpush2.bf16.msra.mxu0 %v282
    %383 = vmatprep.subr.bf16.mxu0 %v281
    %384 = vmatpush2.bf16.msra.mxu0 %v280
    %385 = vmatprep.subr.bf16.mxu0 %v279
    %386 = vmatpush2.bf16.msra.mxu0 %v278
    %387 = vmatprep.subr.bf16.mxu0 %v277
    %388 = vmatpush2.bf16.msra.mxu0 %v276
    %389 = vmatprep.subr.bf16.mxu0 %v275
    %390 = vmatpush2.bf16.msra.mxu0 %v274
    %391 = vmatprep.subr.bf16.mxu0 %v273
    %392 = vmatpush2.bf16.msra.mxu0 %v272
    %393 = vmatprep.mubr.bf16.mxu0 %v153
    %394 = vmatmul.mubr.bf16.gmra.mxu0 %v152
    %v395 = vpop.f32.mrf.mxu0
    %v396 = vadd.f32 %v355, %v395
    %v397 = vpop.f32.mrf.mxu0
    %v398 = vadd.f32 %v357, %v397
    %v399 = vpop.f32.mrf.mxu0
    %v400 = vpop.f32.mrf.mxu0
    %401 = vdwg.mxu0
    %v402 = vmul.f32 %v396, 0.03125
    %v403 = vmul.f32 %v398, 0.03125
    %v404 = vadd.f32 %v402, 1e-08
    %v405 = vadd.f32 %v403, 1e-08
    %v406 = vrsqrt.pop %v404
    %v407 = vrsqrt.pop %v405
    %v408 = vmul.f32 %v116, %v406
    %v409 = vmul.f32 %v117, %v407
    %v410 = vld [vmem:[#allocation11] sm:$0xff]
    %v411 = vld [vmem:[#allocation11 + $0x8] sm:$0xff]
    %v412 = vld [vmem:[#allocation11 + $0x10] sm:$0xff]
    %v413 = vld [vmem:[#allocation11 + $0x18] sm:$0xff]
    %v414 = vld [vmem:[#allocation11 + $0x20] sm:$0xff]
    %v415 = vld [vmem:[#allocation11 + $0x28] sm:$0xff]
    %v416 = vld [vmem:[#allocation11 + $0x30] sm:$0xff]
    %v417 = vld [vmem:[#allocation11 + $0x38] sm:$0xff]
    %v418 = vld [vmem:[#allocation11 + $0x40] sm:$0xff]
    %v419 = vld [vmem:[#allocation11 + $0x48] sm:$0xff]
    %v420 = vld [vmem:[#allocation11 + $0x50] sm:$0xff]
    %v421 = vld [vmem:[#allocation11 + $0x58] sm:$0xff]
    %v422 = vld [vmem:[#allocation11 + $0x60] sm:$0xff]
    %v423 = vld [vmem:[#allocation11 + $0x68] sm:$0xff]
    %v424 = vld [vmem:[#allocation11 + $0x70] sm:$0xff]
    %v425 = vld [vmem:[#allocation11 + $0x78] sm:$0xff]
    %v426 = vld [vmem:[#allocation11 + $0x80] sm:$0xff]
    %v427 = vld [vmem:[#allocation11 + $0x88] sm:$0xff]
    %v428 = vld [vmem:[#allocation11 + $0x90] sm:$0xff]
    %v429 = vld [vmem:[#allocation11 + $0x98] sm:$0xff]
    %v430 = vld [vmem:[#allocation11 + $0xa0] sm:$0xff]
    %v431 = vld [vmem:[#allocation11 + $0xa8] sm:$0xff]
    %v432 = vld [vmem:[#allocation11 + $0xb0] sm:$0xff]
    %v433 = vld [vmem:[#allocation11 + $0xb8] sm:$0xff]
    %v434 = vld [vmem:[#allocation11 + $0xc0] sm:$0xff]
    %v435 = vld [vmem:[#allocation11 + $0xc8] sm:$0xff]
    %v436 = vld [vmem:[#allocation11 + $0xd0] sm:$0xff]
    %v437 = vld [vmem:[#allocation11 + $0xd8] sm:$0xff]
    %v438 = vld [vmem:[#allocation11 + $0xe0] sm:$0xff]
    %v439 = vld [vmem:[#allocation11 + $0xe8] sm:$0xff]
    %v440 = vld [vmem:[#allocation11 + $0xf0] sm:$0xff]
    %v441 = vld [vmem:[#allocation11 + $0xf8] sm:$0xff]
    %v442 = vld [vmem:[#allocation11 + $0x100] sm:$0xff]
    %v443 = vld [vmem:[#allocation11 + $0x108] sm:$0xff]
    %v444 = vld [vmem:[#allocation11 + $0x110] sm:$0xff]
    %v445 = vld [vmem:[#allocation11 + $0x118] sm:$0xff]
    %v446 = vld [vmem:[#allocation11 + $0x120] sm:$0xff]
    %v447 = vld [vmem:[#allocation11 + $0x128] sm:$0xff]
    %v448 = vld [vmem:[#allocation11 + $0x130] sm:$0xff]
    %v449 = vld [vmem:[#allocation11 + $0x138] sm:$0xff]
    %v450 = vld [vmem:[#allocation11 + $0x140] sm:$0xff]
    %v451 = vld [vmem:[#allocation11 + $0x148] sm:$0xff]
    %v452 = vld [vmem:[#allocation11 + $0x150] sm:$0xff]
    %v453 = vld [vmem:[#allocation11 + $0x158] sm:$0xff]
    %v454 = vld [vmem:[#allocation11 + $0x160] sm:$0xff]
    %v455 = vld [vmem:[#allocation11 + $0x168] sm:$0xff]
    %v456 = vld [vmem:[#allocation11 + $0x170] sm:$0xff]
    %v457 = vld [vmem:[#allocation11 + $0x178] sm:$0xff]
    %v458 = vld [vmem:[#allocation11 + $0x180] sm:$0xff]
    %v459 = vld [vmem:[#allocation11 + $0x188] sm:$0xff]
    %v460 = vld [vmem:[#allocation11 + $0x190] sm:$0xff]
    %v461 = vld [vmem:[#allocation11 + $0x198] sm:$0xff]
    %v462 = vld [vmem:[#allocation11 + $0x1a0] sm:$0xff]
    %v463 = vld [vmem:[#allocation11 + $0x1a8] sm:$0xff]
    %v464 = vld [vmem:[#allocation11 + $0x1b0] sm:$0xff]
    %v465 = vld [vmem:[#allocation11 + $0x1b8] sm:$0xff]
    %v466 = vld [vmem:[#allocation11 + $0x1c0] sm:$0xff]
    %v467 = vld [vmem:[#allocation11 + $0x1c8] sm:$0xff]
    %v468 = vld [vmem:[#allocation11 + $0x1d0] sm:$0xff]
    %v469 = vld [vmem:[#allocation11 + $0x1d8] sm:$0xff]
    %v470 = vld [vmem:[#allocation11 + $0x1e0] sm:$0xff]
    %v471 = vld [vmem:[#allocation11 + $0x1e8] sm:$0xff]
    %v472 = vld [vmem:[#allocation11 + $0x1f0] sm:$0xff]
    %v473 = vld [vmem:[#allocation11 + $0x1f8] sm:$0xff]
    %v474 = vld [vmem:[#allocation11 + $0x200] sm:$0xff]
    %v475 = vld [vmem:[#allocation11 + $0x208] sm:$0xff]
    %v476 = vld [vmem:[#allocation11 + $0x210] sm:$0xff]
    %v477 = vld [vmem:[#allocation11 + $0x218] sm:$0xff]
    %v478 = vld [vmem:[#allocation11 + $0x220] sm:$0xff]
    %v479 = vld [vmem:[#allocation11 + $0x228] sm:$0xff]
    %v480 = vld [vmem:[#allocation11 + $0x230] sm:$0xff]
    %v481 = vld [vmem:[#allocation11 + $0x238] sm:$0xff]
    %v482 = vld [vmem:[#allocation11 + $0x240] sm:$0xff]
    %v483 = vld [vmem:[#allocation11 + $0x248] sm:$0xff]
    %v484 = vld [vmem:[#allocation11 + $0x250] sm:$0xff]
    %v485 = vld [vmem:[#allocation11 + $0x258] sm:$0xff]
    %v486 = vld [vmem:[#allocation11 + $0x260] sm:$0xff]
    %v487 = vld [vmem:[#allocation11 + $0x268] sm:$0xff]
    %v488 = vld [vmem:[#allocation11 + $0x270] sm:$0xff]
    %v489 = vld [vmem:[#allocation11 + $0x278] sm:$0xff]
    %v490 = vld [vmem:[#allocation11 + $0x280] sm:$0xff]
    %v491 = vld [vmem:[#allocation11 + $0x288] sm:$0xff]
    %v492 = vld [vmem:[#allocation11 + $0x290] sm:$0xff]
    %v493 = vld [vmem:[#allocation11 + $0x298] sm:$0xff]
    %v494 = vld [vmem:[#allocation11 + $0x2a0] sm:$0xff]
    %v495 = vld [vmem:[#allocation11 + $0x2a8] sm:$0xff]
    %v496 = vld [vmem:[#allocation11 + $0x2b0] sm:$0xff]
    %v497 = vld [vmem:[#allocation11 + $0x2b8] sm:$0xff]
    %v498 = vld [vmem:[#allocation11 + $0x2c0] sm:$0xff]
    %v499 = vld [vmem:[#allocation11 + $0x2c8] sm:$0xff]
    %v500 = vld [vmem:[#allocation11 + $0x2d0] sm:$0xff]
    %v501 = vld [vmem:[#allocation11 + $0x2d8] sm:$0xff]
    %v502 = vld [vmem:[#allocation11 + $0x2e0] sm:$0xff]
    %v503 = vld [vmem:[#allocation11 + $0x2e8] sm:$0xff]
    %v504 = vld [vmem:[#allocation11 + $0x2f0] sm:$0xff]
    %v505 = vld [vmem:[#allocation11 + $0x2f8] sm:$0xff]
    %v506 = vld [vmem:[#allocation11 + $0x300] sm:$0xff]
    %v507 = vld [vmem:[#allocation11 + $0x308] sm:$0xff]
    %v508 = vld [vmem:[#allocation11 + $0x310] sm:$0xff]
    %v509 = vld [vmem:[#allocation11 + $0x318] sm:$0xff]
    %v510 = vld [vmem:[#allocation11 + $0x320] sm:$0xff]
    %v511 = vld [vmem:[#allocation11 + $0x328] sm:$0xff]
    %v512 = vld [vmem:[#allocation11 + $0x330] sm:$0xff]
    %v513 = vld [vmem:[#allocation11 + $0x338] sm:$0xff]
    %v514 = vld [vmem:[#allocation11 + $0x340] sm:$0xff]
    %v515 = vld [vmem:[#allocation11 + $0x348] sm:$0xff]
    %v516 = vld [vmem:[#allocation11 + $0x350] sm:$0xff]
    %v517 = vld [vmem:[#allocation11 + $0x358] sm:$0xff]
    %v518 = vld [vmem:[#allocation11 + $0x360] sm:$0xff]
    %v519 = vld [vmem:[#allocation11 + $0x368] sm:$0xff]
    %v520 = vld [vmem:[#allocation11 + $0x370] sm:$0xff]
    %v521 = vld [vmem:[#allocation11 + $0x378] sm:$0xff]
    %v522 = vld [vmem:[#allocation11 + $0x380] sm:$0xff]
    %v523 = vld [vmem:[#allocation11 + $0x388] sm:$0xff]
    %v524 = vld [vmem:[#allocation11 + $0x390] sm:$0xff]
    %v525 = vld [vmem:[#allocation11 + $0x398] sm:$0xff]
    %v526 = vld [vmem:[#allocation11 + $0x3a0] sm:$0xff]
    %v527 = vld [vmem:[#allocation11 + $0x3a8] sm:$0xff]
    %v528 = vld [vmem:[#allocation11 + $0x3b0] sm:$0xff]
    %v529 = vld [vmem:[#allocation11 + $0x3b8] sm:$0xff]
    %v530 = vld [vmem:[#allocation11 + $0x3c0] sm:$0xff]
    %v531 = vld [vmem:[#allocation11 + $0x3c8] sm:$0xff]
    %v532 = vld [vmem:[#allocation11 + $0x3d0] sm:$0xff]
    %v533 = vld [vmem:[#allocation11 + $0x3d8] sm:$0xff]
    %v534 = vld [vmem:[#allocation11 + $0x3e0] sm:$0xff]
    %v535 = vld [vmem:[#allocation11 + $0x3e8] sm:$0xff]
    %v536 = vld [vmem:[#allocation11 + $0x3f0] sm:$0xff]
    %v537 = vld [vmem:[#allocation11 + $0x3f8] sm:$0xff]
    %v538 = vld [vmem:[#allocation11 + $0x400] sm:$0xff]
    %v539 = vld [vmem:[#allocation11 + $0x408] sm:$0xff]
    %v540 = vld [vmem:[#allocation11 + $0x410] sm:$0xff]
    %v541 = vld [vmem:[#allocation11 + $0x418] sm:$0xff]
    %v542 = vld [vmem:[#allocation11 + $0x420] sm:$0xff]
    %v543 = vld [vmem:[#allocation11 + $0x428] sm:$0xff]
    %v544 = vld [vmem:[#allocation11 + $0x430] sm:$0xff]
    %v545 = vld [vmem:[#allocation11 + $0x438] sm:$0xff]
    %v546 = vld [vmem:[#allocation11 + $0x440] sm:$0xff]
    %v547 = vld [vmem:[#allocation11 + $0x448] sm:$0xff]
    %v548 = vld [vmem:[#allocation11 + $0x450] sm:$0xff]
    %v549 = vld [vmem:[#allocation11 + $0x458] sm:$0xff]
    %v550 = vld [vmem:[#allocation11 + $0x460] sm:$0xff]
    %v551 = vld [vmem:[#allocation11 + $0x468] sm:$0xff]
    %v552 = vld [vmem:[#allocation11 + $0x470] sm:$0xff]
    %v553 = vld [vmem:[#allocation11 + $0x478] sm:$0xff]
    %v554 = vld [vmem:[#allocation11 + $0x480] sm:$0xff]
    %v555 = vld [vmem:[#allocation11 + $0x488] sm:$0xff]
    %v556 = vld [vmem:[#allocation11 + $0x490] sm:$0xff]
    %v557 = vld [vmem:[#allocation11 + $0x498] sm:$0xff]
    %v558 = vld [vmem:[#allocation11 + $0x4a0] sm:$0xff]
    %v559 = vld [vmem:[#allocation11 + $0x4a8] sm:$0xff]
    %v560 = vld [vmem:[#allocation11 + $0x4b0] sm:$0xff]
    %v561 = vld [vmem:[#allocation11 + $0x4b8] sm:$0xff]
    %v562 = vld [vmem:[#allocation11 + $0x4c0] sm:$0xff]
    %v563 = vld [vmem:[#allocation11 + $0x4c8] sm:$0xff]
    %v564 = vld [vmem:[#allocation11 + $0x4d0] sm:$0xff]
    %v565 = vld [vmem:[#allocation11 + $0x4d8] sm:$0xff]
    %v566 = vld [vmem:[#allocation11 + $0x4e0] sm:$0xff]
    %v567 = vld [vmem:[#allocation11 + $0x4e8] sm:$0xff]
    %v568 = vld [vmem:[#allocation11 + $0x4f0] sm:$0xff]
    %v569 = vld [vmem:[#allocation11 + $0x4f8] sm:$0xff]
    %v570 = vld [vmem:[#allocation11 + $0x500] sm:$0xff]
    %v571 = vld [vmem:[#allocation11 + $0x508] sm:$0xff]
    %v572 = vld [vmem:[#allocation11 + $0x510] sm:$0xff]
    %v573 = vld [vmem:[#allocation11 + $0x518] sm:$0xff]
    %v574 = vld [vmem:[#allocation11 + $0x520] sm:$0xff]
    %v575 = vld [vmem:[#allocation11 + $0x528] sm:$0xff]
    %v576 = vld [vmem:[#allocation11 + $0x530] sm:$0xff]
    %v577 = vld [vmem:[#allocation11 + $0x538] sm:$0xff]
    %v578 = vld [vmem:[#allocation11 + $0x540] sm:$0xff]
    %v579 = vld [vmem:[#allocation11 + $0x548] sm:$0xff]
    %v580 = vld [vmem:[#allocation11 + $0x550] sm:$0xff]
    %v581 = vld [vmem:[#allocation11 + $0x558] sm:$0xff]
    %v582 = vld [vmem:[#allocation11 + $0x560] sm:$0xff]
    %v583 = vld [vmem:[#allocation11 + $0x568] sm:$0xff]
    %v584 = vld [vmem:[#allocation11 + $0x570] sm:$0xff]
    %v585 = vld [vmem:[#allocation11 + $0x578] sm:$0xff]
    %v586 = vld [vmem:[#allocation11 + $0x580] sm:$0xff]
    %v587 = vld [vmem:[#allocation11 + $0x588] sm:$0xff]
    %v588 = vld [vmem:[#allocation11 + $0x590] sm:$0xff]
    %v589 = vld [vmem:[#allocation11 + $0x598] sm:$0xff]
    %v590 = vld [vmem:[#allocation11 + $0x5a0] sm:$0xff]
    %v591 = vld [vmem:[#allocation11 + $0x5a8] sm:$0xff]
    %v592 = vld [vmem:[#allocation11 + $0x5b0] sm:$0xff]
    %v593 = vld [vmem:[#allocation11 + $0x5b8] sm:$0xff]
    %v594 = vld [vmem:[#allocation11 + $0x5c0] sm:$0xff]
    %v595 = vld [vmem:[#allocation11 + $0x5c8] sm:$0xff]
    %v596 = vld [vmem:[#allocation11 + $0x5d0] sm:$0xff]
    %v597 = vld [vmem:[#allocation11 + $0x5d8] sm:$0xff]
    %v598 = vld [vmem:[#allocation11 + $0x5e0] sm:$0xff]
    %v599 = vld [vmem:[#allocation11 + $0x5e8] sm:$0xff]
    %v600 = vld [vmem:[#allocation11 + $0x5f0] sm:$0xff]
    %v601 = vld [vmem:[#allocation11 + $0x5f8] sm:$0xff]
    %v602 = vld [vmem:[#allocation11 + $0x600] sm:$0xff]
    %v603 = vld [vmem:[#allocation11 + $0x608] sm:$0xff]
    %v604 = vld [vmem:[#allocation11 + $0x610] sm:$0xff]
    %v605 = vld [vmem:[#allocation11 + $0x618] sm:$0xff]
    %v606 = vld [vmem:[#allocation11 + $0x620] sm:$0xff]
    %v607 = vld [vmem:[#allocation11 + $0x628] sm:$0xff]
    %v608 = vld [vmem:[#allocation11 + $0x630] sm:$0xff]
    %v609 = vld [vmem:[#allocation11 + $0x638] sm:$0xff]
    %v610 = vld [vmem:[#allocation11 + $0x640] sm:$0xff]
    %v611 = vld [vmem:[#allocation11 + $0x648] sm:$0xff]
    %v612 = vld [vmem:[#allocation11 + $0x650] sm:$0xff]
    %v613 = vld [vmem:[#allocation11 + $0x658] sm:$0xff]
    %v614 = vld [vmem:[#allocation11 + $0x660] sm:$0xff]
    %v615 = vld [vmem:[#allocation11 + $0x668] sm:$0xff]
    %v616 = vld [vmem:[#allocation11 + $0x670] sm:$0xff]
    %v617 = vld [vmem:[#allocation11 + $0x678] sm:$0xff]
    %v618 = vld [vmem:[#allocation11 + $0x680] sm:$0xff]
    %v619 = vld [vmem:[#allocation11 + $0x688] sm:$0xff]
    %v620 = vld [vmem:[#allocation11 + $0x690] sm:$0xff]
    %v621 = vld [vmem:[#allocation11 + $0x698] sm:$0xff]
    %v622 = vld [vmem:[#allocation11 + $0x6a0] sm:$0xff]
    %v623 = vld [vmem:[#allocation11 + $0x6a8] sm:$0xff]
    %v624 = vld [vmem:[#allocation11 + $0x6b0] sm:$0xff]
    %v625 = vld [vmem:[#allocation11 + $0x6b8] sm:$0xff]
    %v626 = vld [vmem:[#allocation11 + $0x6c0] sm:$0xff]
    %v627 = vld [vmem:[#allocation11 + $0x6c8] sm:$0xff]
    %v628 = vld [vmem:[#allocation11 + $0x6d0] sm:$0xff]
    %v629 = vld [vmem:[#allocation11 + $0x6d8] sm:$0xff]
    %v630 = vld [vmem:[#allocation11 + $0x6e0] sm:$0xff]
    %v631 = vld [vmem:[#allocation11 + $0x6e8] sm:$0xff]
    %v632 = vld [vmem:[#allocation11 + $0x6f0] sm:$0xff]
    %v633 = vld [vmem:[#allocation11 + $0x6f8] sm:$0xff]
    %v634 = vld [vmem:[#allocation11 + $0x700] sm:$0xff]
    %v635 = vld [vmem:[#allocation11 + $0x708] sm:$0xff]
    %v636 = vld [vmem:[#allocation11 + $0x710] sm:$0xff]
    %v637 = vld [vmem:[#allocation11 + $0x718] sm:$0xff]
    %v638 = vld [vmem:[#allocation11 + $0x720] sm:$0xff]
    %v639 = vld [vmem:[#allocation11 + $0x728] sm:$0xff]
    %v640 = vld [vmem:[#allocation11 + $0x730] sm:$0xff]
    %v641 = vld [vmem:[#allocation11 + $0x738] sm:$0xff]
    %v642 = vld [vmem:[#allocation11 + $0x740] sm:$0xff]
    %v643 = vld [vmem:[#allocation11 + $0x748] sm:$0xff]
    %v644 = vld [vmem:[#allocation11 + $0x750] sm:$0xff]
    %v645 = vld [vmem:[#allocation11 + $0x758] sm:$0xff]
    %v646 = vld [vmem:[#allocation11 + $0x760] sm:$0xff]
    %v647 = vld [vmem:[#allocation11 + $0x768] sm:$0xff]
    %v648 = vld [vmem:[#allocation11 + $0x770] sm:$0xff]
    %v649 = vld [vmem:[#allocation11 + $0x778] sm:$0xff]
    %v650 = vld [vmem:[#allocation11 + $0x780] sm:$0xff]
    %v651 = vld [vmem:[#allocation11 + $0x788] sm:$0xff]
    %v652 = vld [vmem:[#allocation11 + $0x790] sm:$0xff]
    %v653 = vld [vmem:[#allocation11 + $0x798] sm:$0xff]
    %v654 = vld [vmem:[#allocation11 + $0x7a0] sm:$0xff]
    %v655 = vld [vmem:[#allocation11 + $0x7a8] sm:$0xff]
    %v656 = vld [vmem:[#allocation11 + $0x7b0] sm:$0xff]
    %v657 = vld [vmem:[#allocation11 + $0x7b8] sm:$0xff]
    %v658 = vld [vmem:[#allocation11 + $0x7c0] sm:$0xff]
    %v659 = vld [vmem:[#allocation11 + $0x7c8] sm:$0xff]
    %v660 = vld [vmem:[#allocation11 + $0x7d0] sm:$0xff]
    %v661 = vld [vmem:[#allocation11 + $0x7d8] sm:$0xff]
    %v662 = vld [vmem:[#allocation11 + $0x7e0] sm:$0xff]
    %v663 = vld [vmem:[#allocation11 + $0x7e8] sm:$0xff]
    %v664 = vld [vmem:[#allocation11 + $0x7f0] sm:$0xff]
    %v665 = vld [vmem:[#allocation11 + $0x7f8] sm:$0xff]
    %v666 = vld [vmem:[#allocation11 + $0x800] sm:$0xff]
    %v667 = vld [vmem:[#allocation11 + $0x808] sm:$0xff]
    %v668 = vld [vmem:[#allocation11 + $0x810] sm:$0xff]
    %v669 = vld [vmem:[#allocation11 + $0x818] sm:$0xff]
    %v670 = vld [vmem:[#allocation11 + $0x820] sm:$0xff]
    %v671 = vld [vmem:[#allocation11 + $0x828] sm:$0xff]
    %v672 = vld [vmem:[#allocation11 + $0x830] sm:$0xff]
    %v673 = vld [vmem:[#allocation11 + $0x838] sm:$0xff]
    %v674 = vld [vmem:[#allocation11 + $0x840] sm:$0xff]
    %v675 = vld [vmem:[#allocation11 + $0x848] sm:$0xff]
    %v676 = vld [vmem:[#allocation11 + $0x850] sm:$0xff]
    %v677 = vld [vmem:[#allocation11 + $0x858] sm:$0xff]
    %v678 = vld [vmem:[#allocation11 + $0x860] sm:$0xff]
    %v679 = vld [vmem:[#allocation11 + $0x868] sm:$0xff]
    %v680 = vld [vmem:[#allocation11 + $0x870] sm:$0xff]
    %v681 = vld [vmem:[#allocation11 + $0x878] sm:$0xff]
    %v682 = vld [vmem:[#allocation11 + $0x880] sm:$0xff]
    %v683 = vld [vmem:[#allocation11 + $0x888] sm:$0xff]
    %v684 = vld [vmem:[#allocation11 + $0x890] sm:$0xff]
    %v685 = vld [vmem:[#allocation11 + $0x898] sm:$0xff]
    %v686 = vld [vmem:[#allocation11 + $0x8a0] sm:$0xff]
    %v687 = vld [vmem:[#allocation11 + $0x8a8] sm:$0xff]
    %v688 = vld [vmem:[#allocation11 + $0x8b0] sm:$0xff]
    %v689 = vld [vmem:[#allocation11 + $0x8b8] sm:$0xff]
    %v690 = vld [vmem:[#allocation11 + $0x8c0] sm:$0xff]
    %v691 = vld [vmem:[#allocation11 + $0x8c8] sm:$0xff]
    %v692 = vld [vmem:[#allocation11 + $0x8d0] sm:$0xff]
    %v693 = vld [vmem:[#allocation11 + $0x8d8] sm:$0xff]
    %v694 = vld [vmem:[#allocation11 + $0x8e0] sm:$0xff]
    %v695 = vld [vmem:[#allocation11 + $0x8e8] sm:$0xff]
    %v696 = vld [vmem:[#allocation11 + $0x8f0] sm:$0xff]
    %v697 = vld [vmem:[#allocation11 + $0x8f8] sm:$0xff]
    %v698 = vld [vmem:[#allocation5] sm:$0xff]
    %v699 = vld [vmem:[#allocation5 + $0x8] sm:$0xff]
    %v700 = vpack.c.bf16 %v698, %v698
    %v701 = vpack.c.bf16 %v699, %v699
    %v702 = vld [vmem:[#allocation13] sm:$0xff]
    %v703 = vld [vmem:[#allocation13 + $0x8] sm:$0xff]
    %v704 = vld [vmem:[#allocation13 + $0x10] sm:$0x3]
    %v708 = vlaneseq
    %v709 = vshrl.u32 %v708, 7
    %v710 = vsub.s32 0, %v709
    %v711 = vrot.slane %v702, %v710
    %v712 = vlaneseq
    %v713 = vshrl.u32 %v712, 7
    %v714 = vsub.s32 1, %v713
    %v715 = vrot.slane %v702, %v714
    %v716 = vlaneseq
    %v717 = vshrl.u32 %v716, 7
    %v718 = vsub.s32 2, %v717
    %v719 = vrot.slane %v702, %v718
    %v720 = vlaneseq
    %v721 = vshrl.u32 %v720, 7
    %v722 = vsub.s32 3, %v721
    %v723 = vrot.slane %v702, %v722
    %v724 = vlaneseq
    %v725 = vshrl.u32 %v724, 7
    %v726 = vsub.s32 4, %v725
    %v727 = vrot.slane %v702, %v726
    %v728 = vlaneseq
    %v729 = vshrl.u32 %v728, 7
    %v730 = vsub.s32 5, %v729
    %v731 = vrot.slane %v702, %v730
    %v732 = vlaneseq
    %v733 = vshrl.u32 %v732, 7
    %v734 = vsub.s32 6, %v733
    %v735 = vrot.slane %v702, %v734
    %v736 = vlaneseq
    %v737 = vshrl.u32 %v736, 7
    %v738 = vsub.s32 7, %v737
    %v739 = vrot.slane %v702, %v738
    %v740 = vlaneseq
    %v741 = vshrl.u32 %v740, 7
    %v742 = vsub.s32 0, %v741
    %v743 = vrot.slane %v703, %v742
    %v744 = vlaneseq
    %v745 = vshrl.u32 %v744, 7
    %v746 = vsub.s32 1, %v745
    %v747 = vrot.slane %v703, %v746
    %v748 = vlaneseq
    %v749 = vshrl.u32 %v748, 7
    %v750 = vsub.s32 2, %v749
    %v751 = vrot.slane %v703, %v750
    %v752 = vlaneseq
    %v753 = vshrl.u32 %v752, 7
    %v754 = vsub.s32 3, %v753
    %v755 = vrot.slane %v703, %v754
    %v756 = vlaneseq
    %v757 = vshrl.u32 %v756, 7
    %v758 = vsub.s32 4, %v757
    %v759 = vrot.slane %v703, %v758
    %v760 = vlaneseq
    %v761 = vshrl.u32 %v760, 7
    %v762 = vsub.s32 5, %v761
    %v763 = vrot.slane %v703, %v762
    %v764 = vlaneseq
    %v765 = vshrl.u32 %v764, 7
    %v766 = vsub.s32 6, %v765
    %v767 = vrot.slane %v703, %v766
    %v768 = vlaneseq
    %v769 = vshrl.u32 %v768, 7
    %v770 = vsub.s32 7, %v769
    %v771 = vrot.slane %v703, %v770
    %v772 = vlaneseq
    %v773 = vshrl.u32 %v772, 7
    %v774 = vsub.s32 0, %v773
    %v775 = vrot.slane %v704, %v774
    %v776 = vlaneseq
    %v777 = vshrl.u32 %v776, 7
    %v778 = vsub.s32 1, %v777
    %v779 = vrot.slane %v704, %v778
    %v1086 = vunpack.c.l.b16 %v410
    %v1087 = vunpack.c.h.b16 %v410
    %v1088 = vunpack.c.l.b16 %v411
    %v1089 = vunpack.c.h.b16 %v411
    %v1090 = vunpack.c.l.b16 %v412
    %v1091 = vunpack.c.h.b16 %v412
    %v1092 = vunpack.c.l.b16 %v413
    %v1093 = vunpack.c.h.b16 %v413
    %v1094 = vunpack.c.l.b16 %v414
    %v1095 = vunpack.c.h.b16 %v414
    %v1096 = vunpack.c.l.b16 %v415
    %v1097 = vunpack.c.h.b16 %v415
    %v1098 = vunpack.c.l.b16 %v416
    %v1099 = vunpack.c.h.b16 %v416
    %v1100 = vunpack.c.l.b16 %v417
    %v1101 = vunpack.c.h.b16 %v417
    %v1102 = vunpack.c.l.b16 %v418
    %v1103 = vunpack.c.h.b16 %v418
    %v1104 = vunpack.c.l.b16 %v419
    %v1105 = vunpack.c.h.b16 %v419
    %v1106 = vunpack.c.l.b16 %v420
    %v1107 = vunpack.c.h.b16 %v420
    %v1108 = vunpack.c.l.b16 %v421
    %v1109 = vunpack.c.h.b16 %v421
    %v1110 = vunpack.c.l.b16 %v422
    %v1111 = vunpack.c.h.b16 %v422
    %v1112 = vunpack.c.l.b16 %v423
    %v1113 = vunpack.c.h.b16 %v423
    %v1114 = vunpack.c.l.b16 %v424
    %v1115 = vunpack.c.h.b16 %v424
    %v1116 = vunpack.c.l.b16 %v425
    %v1117 = vunpack.c.h.b16 %v425
    %v1118 = vunpack.c.l.b16 %v426
    %v1119 = vunpack.c.h.b16 %v426
    %v1120 = vunpack.c.l.b16 %v427
    %v1121 = vunpack.c.h.b16 %v427
    %v1122 = vunpack.c.l.b16 %v428
    %v1123 = vunpack.c.h.b16 %v428
    %v1124 = vunpack.c.l.b16 %v429
    %v1125 = vunpack.c.h.b16 %v429
    %v1126 = vunpack.c.l.b16 %v430
    %v1127 = vunpack.c.h.b16 %v430
    %v1128 = vunpack.c.l.b16 %v431
    %v1129 = vunpack.c.h.b16 %v431
    %v1130 = vunpack.c.l.b16 %v432
    %v1131 = vunpack.c.h.b16 %v432
    %v1132 = vunpack.c.l.b16 %v433
    %v1133 = vunpack.c.h.b16 %v433
    %v1134 = vunpack.c.l.b16 %v434
    %v1135 = vunpack.c.h.b16 %v434
    %v1136 = vunpack.c.l.b16 %v435
    %v1137 = vunpack.c.h.b16 %v435
    %v1138 = vunpack.c.l.b16 %v436
    %v1139 = vunpack.c.h.b16 %v436
    %v1140 = vunpack.c.l.b16 %v437
    %v1141 = vunpack.c.h.b16 %v437
    %v1142 = vunpack.c.l.b16 %v438
    %v1143 = vunpack.c.h.b16 %v438
    %v1144 = vunpack.c.l.b16 %v439
    %v1145 = vunpack.c.h.b16 %v439
    %v1146 = vunpack.c.l.b16 %v440
    %v1147 = vunpack.c.h.b16 %v440
    %v1148 = vunpack.c.l.b16 %v441
    %v1149 = vunpack.c.h.b16 %v441
    %v1150 = vunpack.c.l.b16 %v442
    %v1151 = vunpack.c.h.b16 %v442
    %v1152 = vunpack.c.l.b16 %v443
    %v1153 = vunpack.c.h.b16 %v443
    %v1154 = vunpack.c.l.b16 %v444
    %v1155 = vunpack.c.h.b16 %v444
    %v1156 = vunpack.c.l.b16 %v445
    %v1157 = vunpack.c.h.b16 %v445
    %v1158 = vunpack.c.l.b16 %v446
    %v1159 = vunpack.c.h.b16 %v446
    %v1160 = vunpack.c.l.b16 %v447
    %v1161 = vunpack.c.h.b16 %v447
    %v1162 = vunpack.c.l.b16 %v448
    %v1163 = vunpack.c.h.b16 %v448
    %v1164 = vunpack.c.l.b16 %v449
    %v1165 = vunpack.c.h.b16 %v449
    %v1166 = vunpack.c.l.b16 %v450
    %v1167 = vunpack.c.h.b16 %v450
    %v1168 = vunpack.c.l.b16 %v451
    %v1169 = vunpack.c.h.b16 %v451
    %v1170 = vunpack.c.l.b16 %v452
    %v1171 = vunpack.c.h.b16 %v452
    %v1172 = vunpack.c.l.b16 %v453
    %v1173 = vunpack.c.h.b16 %v453
    %v1174 = vunpack.c.l.b16 %v454
    %v1175 = vunpack.c.h.b16 %v454
    %v1176 = vunpack.c.l.b16 %v455
    %v1177 = vunpack.c.h.b16 %v455
    %v1178 = vunpack.c.l.b16 %v456
    %v1179 = vunpack.c.h.b16 %v456
    %v1180 = vunpack.c.l.b16 %v457
    %v1181 = vunpack.c.h.b16 %v457
    %v1182 = vunpack.c.l.b16 %v458
    %v1183 = vunpack.c.h.b16 %v458
    %v1184 = vunpack.c.l.b16 %v459
    %v1185 = vunpack.c.h.b16 %v459
    %v1186 = vunpack.c.l.b16 %v460
    %v1187 = vunpack.c.h.b16 %v460
    %v1188 = vunpack.c.l.b16 %v461
    %v1189 = vunpack.c.h.b16 %v461
    %v1190 = vunpack.c.l.b16 %v462
    %v1191 = vunpack.c.h.b16 %v462
    %v1192 = vunpack.c.l.b16 %v463
    %v1193 = vunpack.c.h.b16 %v463
    %v1194 = vunpack.c.l.b16 %v464
    %v1195 = vunpack.c.h.b16 %v464
    %v1196 = vunpack.c.l.b16 %v465
    %v1197 = vunpack.c.h.b16 %v465
    %v1198 = vunpack.c.l.b16 %v466
    %v1199 = vunpack.c.h.b16 %v466
    %v1200 = vunpack.c.l.b16 %v467
    %v1201 = vunpack.c.h.b16 %v467
    %v1202 = vunpack.c.l.b16 %v468
    %v1203 = vunpack.c.h.b16 %v468
    %v1204 = vunpack.c.l.b16 %v469
    %v1205 = vunpack.c.h.b16 %v469
    %v1206 = vunpack.c.l.b16 %v470
    %v1207 = vunpack.c.h.b16 %v470
    %v1208 = vunpack.c.l.b16 %v471
    %v1209 = vunpack.c.h.b16 %v471
    %v1210 = vunpack.c.l.b16 %v472
    %v1211 = vunpack.c.h.b16 %v472
    %v1212 = vunpack.c.l.b16 %v473
    %v1213 = vunpack.c.h.b16 %v473
    %v1214 = vunpack.c.l.b16 %v474
    %v1215 = vunpack.c.h.b16 %v474
    %v1216 = vunpack.c.l.b16 %v475
    %v1217 = vunpack.c.h.b16 %v475
    %v1218 = vunpack.c.l.b16 %v476
    %v1219 = vunpack.c.h.b16 %v476
    %v1220 = vunpack.c.l.b16 %v477
    %v1221 = vunpack.c.h.b16 %v477
    %v1222 = vunpack.c.l.b16 %v478
    %v1223 = vunpack.c.h.b16 %v478
    %v1224 = vunpack.c.l.b16 %v479
    %v1225 = vunpack.c.h.b16 %v479
    %v1226 = vunpack.c.l.b16 %v480
    %v1227 = vunpack.c.h.b16 %v480
    %v1228 = vunpack.c.l.b16 %v481
    %v1229 = vunpack.c.h.b16 %v481
    %v1230 = vunpack.c.l.b16 %v482
    %v1231 = vunpack.c.h.b16 %v482
    %v1232 = vunpack.c.l.b16 %v483
    %v1233 = vunpack.c.h.b16 %v483
    %v1234 = vunpack.c.l.b16 %v484
    %v1235 = vunpack.c.h.b16 %v484
    %v1236 = vunpack.c.l.b16 %v485
    %v1237 = vunpack.c.h.b16 %v485
    %v1238 = vunpack.c.l.b16 %v486
    %v1239 = vunpack.c.h.b16 %v486
    %v1240 = vunpack.c.l.b16 %v487
    %v1241 = vunpack.c.h.b16 %v487
    %v1242 = vunpack.c.l.b16 %v488
    %v1243 = vunpack.c.h.b16 %v488
    %v1244 = vunpack.c.l.b16 %v489
    %v1245 = vunpack.c.h.b16 %v489
    %v1246 = vunpack.c.l.b16 %v490
    %v1247 = vunpack.c.h.b16 %v490
    %v1248 = vunpack.c.l.b16 %v491
    %v1249 = vunpack.c.h.b16 %v491
    %v1250 = vunpack.c.l.b16 %v492
    %v1251 = vunpack.c.h.b16 %v492
    %v1252 = vunpack.c.l.b16 %v493
    %v1253 = vunpack.c.h.b16 %v493
    %v1254 = vunpack.c.l.b16 %v494
    %v1255 = vunpack.c.h.b16 %v494
    %v1256 = vunpack.c.l.b16 %v495
    %v1257 = vunpack.c.h.b16 %v495
    %v1258 = vunpack.c.l.b16 %v496
    %v1259 = vunpack.c.h.b16 %v496
    %v1260 = vunpack.c.l.b16 %v497
    %v1261 = vunpack.c.h.b16 %v497
    %v1262 = vunpack.c.l.b16 %v498
    %v1263 = vunpack.c.h.b16 %v498
    %v1264 = vunpack.c.l.b16 %v499
    %v1265 = vunpack.c.h.b16 %v499
    %v1266 = vunpack.c.l.b16 %v500
    %v1267 = vunpack.c.h.b16 %v500
    %v1268 = vunpack.c.l.b16 %v501
    %v1269 = vunpack.c.h.b16 %v501
    %v1270 = vunpack.c.l.b16 %v502
    %v1271 = vunpack.c.h.b16 %v502
    %v1272 = vunpack.c.l.b16 %v503
    %v1273 = vunpack.c.h.b16 %v503
    %v1274 = vunpack.c.l.b16 %v504
    %v1275 = vunpack.c.h.b16 %v504
    %v1276 = vunpack.c.l.b16 %v505
    %v1277 = vunpack.c.h.b16 %v505
    %v1278 = vunpack.c.l.b16 %v506
    %v1279 = vunpack.c.h.b16 %v506
    %v1280 = vunpack.c.l.b16 %v507
    %v1281 = vunpack.c.h.b16 %v507
    %v1282 = vunpack.c.l.b16 %v508
    %v1283 = vunpack.c.h.b16 %v508
    %v1284 = vunpack.c.l.b16 %v509
    %v1285 = vunpack.c.h.b16 %v509
    %v1286 = vunpack.c.l.b16 %v510
    %v1287 = vunpack.c.h.b16 %v510
    %v1288 = vunpack.c.l.b16 %v511
    %v1289 = vunpack.c.h.b16 %v511
    %v1290 = vunpack.c.l.b16 %v512
    %v1291 = vunpack.c.h.b16 %v512
    %v1292 = vunpack.c.l.b16 %v513
    %v1293 = vunpack.c.h.b16 %v513
    %v1294 = vunpack.c.l.b16 %v514
    %v1295 = vunpack.c.h.b16 %v514
    %v1296 = vunpack.c.l.b16 %v515
    %v1297 = vunpack.c.h.b16 %v515
    %v1298 = vunpack.c.l.b16 %v516
    %v1299 = vunpack.c.h.b16 %v516
    %v1300 = vunpack.c.l.b16 %v517
    %v1301 = vunpack.c.h.b16 %v517
    %v1302 = vunpack.c.l.b16 %v518
    %v1303 = vunpack.c.h.b16 %v518
    %v1304 = vunpack.c.l.b16 %v519
    %v1305 = vunpack.c.h.b16 %v519
    %v1306 = vunpack.c.l.b16 %v520
    %v1307 = vunpack.c.h.b16 %v520
    %v1308 = vunpack.c.l.b16 %v521
    %v1309 = vunpack.c.h.b16 %v521
    %v1310 = vunpack.c.l.b16 %v522
    %v1311 = vunpack.c.h.b16 %v522
    %v1312 = vunpack.c.l.b16 %v523
    %v1313 = vunpack.c.h.b16 %v523
    %v1314 = vunpack.c.l.b16 %v524
    %v1315 = vunpack.c.h.b16 %v524
    %v1316 = vunpack.c.l.b16 %v525
    %v1317 = vunpack.c.h.b16 %v525
    %v1318 = vunpack.c.l.b16 %v526
    %v1319 = vunpack.c.h.b16 %v526
    %v1320 = vunpack.c.l.b16 %v527
    %v1321 = vunpack.c.h.b16 %v527
    %v1322 = vunpack.c.l.b16 %v528
    %v1323 = vunpack.c.h.b16 %v528
    %v1324 = vunpack.c.l.b16 %v529
    %v1325 = vunpack.c.h.b16 %v529
    %v1326 = vunpack.c.l.b16 %v530
    %v1327 = vunpack.c.h.b16 %v530
    %v1328 = vunpack.c.l.b16 %v531
    %v1329 = vunpack.c.h.b16 %v531
    %v1330 = vunpack.c.l.b16 %v532
    %v1331 = vunpack.c.h.b16 %v532
    %v1332 = vunpack.c.l.b16 %v533
    %v1333 = vunpack.c.h.b16 %v533
    %v1334 = vunpack.c.l.b16 %v534
    %v1335 = vunpack.c.h.b16 %v534
    %v1336 = vunpack.c.l.b16 %v535
    %v1337 = vunpack.c.h.b16 %v535
    %v1338 = vunpack.c.l.b16 %v536
    %v1339 = vunpack.c.h.b16 %v536
    %v1340 = vunpack.c.l.b16 %v537
    %v1341 = vunpack.c.h.b16 %v537
    %v1342 = vunpack.c.l.b16 %v538
    %v1343 = vunpack.c.h.b16 %v538
    %v1344 = vunpack.c.l.b16 %v539
    %v1345 = vunpack.c.h.b16 %v539
    %v1346 = vunpack.c.l.b16 %v540
    %v1347 = vunpack.c.h.b16 %v540
    %v1348 = vunpack.c.l.b16 %v541
    %v1349 = vunpack.c.h.b16 %v541
    %v1350 = vunpack.c.l.b16 %v542
    %v1351 = vunpack.c.h.b16 %v542
    %v1352 = vunpack.c.l.b16 %v543
    %v1353 = vunpack.c.h.b16 %v543
    %v1354 = vunpack.c.l.b16 %v544
    %v1355 = vunpack.c.h.b16 %v544
    %v1356 = vunpack.c.l.b16 %v545
    %v1357 = vunpack.c.h.b16 %v545
    %v1358 = vunpack.c.l.b16 %v546
    %v1359 = vunpack.c.h.b16 %v546
    %v1360 = vunpack.c.l.b16 %v547
    %v1361 = vunpack.c.h.b16 %v547
    %v1362 = vunpack.c.l.b16 %v548
    %v1363 = vunpack.c.h.b16 %v548
    %v1364 = vunpack.c.l.b16 %v549
    %v1365 = vunpack.c.h.b16 %v549
    %v1366 = vunpack.c.l.b16 %v550
    %v1367 = vunpack.c.h.b16 %v550
    %v1368 = vunpack.c.l.b16 %v551
    %v1369 = vunpack.c.h.b16 %v551
    %v1370 = vunpack.c.l.b16 %v552
    %v1371 = vunpack.c.h.b16 %v552
    %v1372 = vunpack.c.l.b16 %v553
    %v1373 = vunpack.c.h.b16 %v553
    %v1374 = vunpack.c.l.b16 %v554
    %v1375 = vunpack.c.h.b16 %v554
    %v1376 = vunpack.c.l.b16 %v555
    %v1377 = vunpack.c.h.b16 %v555
    %v1378 = vunpack.c.l.b16 %v556
    %v1379 = vunpack.c.h.b16 %v556
    %v1380 = vunpack.c.l.b16 %v557
    %v1381 = vunpack.c.h.b16 %v557
    %v1382 = vunpack.c.l.b16 %v558
    %v1383 = vunpack.c.h.b16 %v558
    %v1384 = vunpack.c.l.b16 %v559
    %v1385 = vunpack.c.h.b16 %v559
    %v1386 = vunpack.c.l.b16 %v560
    %v1387 = vunpack.c.h.b16 %v560
    %v1388 = vunpack.c.l.b16 %v561
    %v1389 = vunpack.c.h.b16 %v561
    %v1390 = vunpack.c.l.b16 %v562
    %v1391 = vunpack.c.h.b16 %v562
    %v1392 = vunpack.c.l.b16 %v563
    %v1393 = vunpack.c.h.b16 %v563
    %v1394 = vunpack.c.l.b16 %v564
    %v1395 = vunpack.c.h.b16 %v564
    %v1396 = vunpack.c.l.b16 %v565
    %v1397 = vunpack.c.h.b16 %v565
    %v1398 = vunpack.c.l.b16 %v566
    %v1399 = vunpack.c.h.b16 %v566
    %v1400 = vunpack.c.l.b16 %v567
    %v1401 = vunpack.c.h.b16 %v567
    %v1402 = vunpack.c.l.b16 %v568
    %v1403 = vunpack.c.h.b16 %v568
    %v1404 = vunpack.c.l.b16 %v569
    %v1405 = vunpack.c.h.b16 %v569
    %v1406 = vunpack.c.l.b16 %v570
    %v1407 = vunpack.c.h.b16 %v570
    %v1408 = vunpack.c.l.b16 %v571
    %v1409 = vunpack.c.h.b16 %v571
    %v1410 = vunpack.c.l.b16 %v572
    %v1411 = vunpack.c.h.b16 %v572
    %v1412 = vunpack.c.l.b16 %v573
    %v1413 = vunpack.c.h.b16 %v573
    %v1414 = vunpack.c.l.b16 %v574
    %v1415 = vunpack.c.h.b16 %v574
    %v1416 = vunpack.c.l.b16 %v575
    %v1417 = vunpack.c.h.b16 %v575
    %v1418 = vunpack.c.l.b16 %v576
    %v1419 = vunpack.c.h.b16 %v576
    %v1420 = vunpack.c.l.b16 %v577
    %v1421 = vunpack.c.h.b16 %v577
    %v1422 = vunpack.c.l.b16 %v578
    %v1423 = vunpack.c.h.b16 %v578
    %v1424 = vunpack.c.l.b16 %v579
    %v1425 = vunpack.c.h.b16 %v579
    %v1426 = vunpack.c.l.b16 %v580
    %v1427 = vunpack.c.h.b16 %v580
    %v1428 = vunpack.c.l.b16 %v581
    %v1429 = vunpack.c.h.b16 %v581
    %v1430 = vunpack.c.l.b16 %v582
    %v1431 = vunpack.c.h.b16 %v582
    %v1432 = vunpack.c.l.b16 %v583
    %v1433 = vunpack.c.h.b16 %v583
    %v1434 = vunpack.c.l.b16 %v584
    %v1435 = vunpack.c.h.b16 %v584
    %v1436 = vunpack.c.l.b16 %v585
    %v1437 = vunpack.c.h.b16 %v585
    %v1438 = vunpack.c.l.b16 %v586
    %v1439 = vunpack.c.h.b16 %v586
    %v1440 = vunpack.c.l.b16 %v587
    %v1441 = vunpack.c.h.b16 %v587
    %v1442 = vunpack.c.l.b16 %v588
    %v1443 = vunpack.c.h.b16 %v588
    %v1444 = vunpack.c.l.b16 %v589
    %v1445 = vunpack.c.h.b16 %v589
    %v1446 = vunpack.c.l.b16 %v590
    %v1447 = vunpack.c.h.b16 %v590
    %v1448 = vunpack.c.l.b16 %v591
    %v1449 = vunpack.c.h.b16 %v591
    %v1450 = vunpack.c.l.b16 %v592
    %v1451 = vunpack.c.h.b16 %v592
    %v1452 = vunpack.c.l.b16 %v593
    %v1453 = vunpack.c.h.b16 %v593
    %v1454 = vunpack.c.l.b16 %v594
    %v1455 = vunpack.c.h.b16 %v594
    %v1456 = vunpack.c.l.b16 %v595
    %v1457 = vunpack.c.h.b16 %v595
    %v1458 = vunpack.c.l.b16 %v596
    %v1459 = vunpack.c.h.b16 %v596
    %v1460 = vunpack.c.l.b16 %v597
    %v1461 = vunpack.c.h.b16 %v597
    %v1462 = vunpack.c.l.b16 %v598
    %v1463 = vunpack.c.h.b16 %v598
    %v1464 = vunpack.c.l.b16 %v599
    %v1465 = vunpack.c.h.b16 %v599
    %v1466 = vunpack.c.l.b16 %v600
    %v1467 = vunpack.c.h.b16 %v600
    %v1468 = vunpack.c.l.b16 %v601
    %v1469 = vunpack.c.h.b16 %v601
    %v1470 = vunpack.c.l.b16 %v602
    %v1471 = vunpack.c.h.b16 %v602
    %v1472 = vunpack.c.l.b16 %v603
    %v1473 = vunpack.c.h.b16 %v603
    %v1474 = vunpack.c.l.b16 %v604
    %v1475 = vunpack.c.h.b16 %v604
    %v1476 = vunpack.c.l.b16 %v605
    %v1477 = vunpack.c.h.b16 %v605
    %v1478 = vunpack.c.l.b16 %v606
    %v1479 = vunpack.c.h.b16 %v606
    %v1480 = vunpack.c.l.b16 %v607
    %v1481 = vunpack.c.h.b16 %v607
    %v1482 = vunpack.c.l.b16 %v608
    %v1483 = vunpack.c.h.b16 %v608
    %v1484 = vunpack.c.l.b16 %v609
    %v1485 = vunpack.c.h.b16 %v609
    %v1486 = vunpack.c.l.b16 %v610
    %v1487 = vunpack.c.h.b16 %v610
    %v1488 = vunpack.c.l.b16 %v611
    %v1489 = vunpack.c.h.b16 %v611
    %v1490 = vunpack.c.l.b16 %v612
    %v1491 = vunpack.c.h.b16 %v612
    %v1492 = vunpack.c.l.b16 %v613
    %v1493 = vunpack.c.h.b16 %v613
    %v1494 = vunpack.c.l.b16 %v614
    %v1495 = vunpack.c.h.b16 %v614
    %v1496 = vunpack.c.l.b16 %v615
    %v1497 = vunpack.c.h.b16 %v615
    %v1498 = vunpack.c.l.b16 %v616
    %v1499 = vunpack.c.h.b16 %v616
    %v1500 = vunpack.c.l.b16 %v617
    %v1501 = vunpack.c.h.b16 %v617
    %v1502 = vunpack.c.l.b16 %v618
    %v1503 = vunpack.c.h.b16 %v618
    %v1504 = vunpack.c.l.b16 %v619
    %v1505 = vunpack.c.h.b16 %v619
    %v1506 = vunpack.c.l.b16 %v620
    %v1507 = vunpack.c.h.b16 %v620
    %v1508 = vunpack.c.l.b16 %v621
    %v1509 = vunpack.c.h.b16 %v621
    %v1510 = vunpack.c.l.b16 %v622
    %v1511 = vunpack.c.h.b16 %v622
    %v1512 = vunpack.c.l.b16 %v623
    %v1513 = vunpack.c.h.b16 %v623
    %v1514 = vunpack.c.l.b16 %v624
    %v1515 = vunpack.c.h.b16 %v624
    %v1516 = vunpack.c.l.b16 %v625
    %v1517 = vunpack.c.h.b16 %v625
    %v1518 = vunpack.c.l.b16 %v626
    %v1519 = vunpack.c.h.b16 %v626
    %v1520 = vunpack.c.l.b16 %v627
    %v1521 = vunpack.c.h.b16 %v627
    %v1522 = vunpack.c.l.b16 %v628
    %v1523 = vunpack.c.h.b16 %v628
    %v1524 = vunpack.c.l.b16 %v629
    %v1525 = vunpack.c.h.b16 %v629
    %v1526 = vunpack.c.l.b16 %v630
    %v1527 = vunpack.c.h.b16 %v630
    %v1528 = vunpack.c.l.b16 %v631
    %v1529 = vunpack.c.h.b16 %v631
    %v1530 = vunpack.c.l.b16 %v632
    %v1531 = vunpack.c.h.b16 %v632
    %v1532 = vunpack.c.l.b16 %v633
    %v1533 = vunpack.c.h.b16 %v633
    %v1534 = vunpack.c.l.b16 %v634
    %v1535 = vunpack.c.h.b16 %v634
    %v1536 = vunpack.c.l.b16 %v635
    %v1537 = vunpack.c.h.b16 %v635
    %v1538 = vunpack.c.l.b16 %v636
    %v1539 = vunpack.c.h.b16 %v636
    %v1540 = vunpack.c.l.b16 %v637
    %v1541 = vunpack.c.h.b16 %v637
    %v1542 = vunpack.c.l.b16 %v638
    %v1543 = vunpack.c.h.b16 %v638
    %v1544 = vunpack.c.l.b16 %v639
    %v1545 = vunpack.c.h.b16 %v639
    %v1546 = vunpack.c.l.b16 %v640
    %v1547 = vunpack.c.h.b16 %v640
    %v1548 = vunpack.c.l.b16 %v641
    %v1549 = vunpack.c.h.b16 %v641
    %v1550 = vunpack.c.l.b16 %v642
    %v1551 = vunpack.c.h.b16 %v642
    %v1552 = vunpack.c.l.b16 %v643
    %v1553 = vunpack.c.h.b16 %v643
    %v1554 = vunpack.c.l.b16 %v644
    %v1555 = vunpack.c.h.b16 %v644
    %v1556 = vunpack.c.l.b16 %v645
    %v1557 = vunpack.c.h.b16 %v645
    %v1558 = vunpack.c.l.b16 %v646
    %v1559 = vunpack.c.h.b16 %v646
    %v1560 = vunpack.c.l.b16 %v647
    %v1561 = vunpack.c.h.b16 %v647
    %v1562 = vunpack.c.l.b16 %v648
    %v1563 = vunpack.c.h.b16 %v648
    %v1564 = vunpack.c.l.b16 %v649
    %v1565 = vunpack.c.h.b16 %v649
    %v1566 = vunpack.c.l.b16 %v650
    %v1567 = vunpack.c.h.b16 %v650
    %v1568 = vunpack.c.l.b16 %v651
    %v1569 = vunpack.c.h.b16 %v651
    %v1570 = vunpack.c.l.b16 %v652
    %v1571 = vunpack.c.h.b16 %v652
    %v1572 = vunpack.c.l.b16 %v653
    %v1573 = vunpack.c.h.b16 %v653
    %v1574 = vunpack.c.l.b16 %v654
    %v1575 = vunpack.c.h.b16 %v654
    %v1576 = vunpack.c.l.b16 %v655
    %v1577 = vunpack.c.h.b16 %v655
    %v1578 = vunpack.c.l.b16 %v656
    %v1579 = vunpack.c.h.b16 %v656
    %v1580 = vunpack.c.l.b16 %v657
    %v1581 = vunpack.c.h.b16 %v657
    %v1582 = vunpack.c.l.b16 %v658
    %v1583 = vunpack.c.h.b16 %v658
    %v1584 = vunpack.c.l.b16 %v659
    %v1585 = vunpack.c.h.b16 %v659
    %v1586 = vunpack.c.l.b16 %v660
    %v1587 = vunpack.c.h.b16 %v660
    %v1588 = vunpack.c.l.b16 %v661
    %v1589 = vunpack.c.h.b16 %v661
    %v1590 = vunpack.c.l.b16 %v662
    %v1591 = vunpack.c.h.b16 %v662
    %v1592 = vunpack.c.l.b16 %v663
    %v1593 = vunpack.c.h.b16 %v663
    %v1594 = vunpack.c.l.b16 %v664
    %v1595 = vunpack.c.h.b16 %v664
    %v1596 = vunpack.c.l.b16 %v665
    %v1597 = vunpack.c.h.b16 %v665
    %v1598 = vunpack.c.l.b16 %v666
    %v1599 = vunpack.c.h.b16 %v666
    %v1600 = vunpack.c.l.b16 %v667
    %v1601 = vunpack.c.h.b16 %v667
    %v1602 = vunpack.c.l.b16 %v668
    %v1603 = vunpack.c.h.b16 %v668
    %v1604 = vunpack.c.l.b16 %v669
    %v1605 = vunpack.c.h.b16 %v669
    %v1606 = vunpack.c.l.b16 %v670
    %v1607 = vunpack.c.h.b16 %v670
    %v1608 = vunpack.c.l.b16 %v671
    %v1609 = vunpack.c.h.b16 %v671
    %v1610 = vunpack.c.l.b16 %v672
    %v1611 = vunpack.c.h.b16 %v672
    %v1612 = vunpack.c.l.b16 %v673
    %v1613 = vunpack.c.h.b16 %v673
    %v1614 = vunpack.c.l.b16 %v674
    %v1615 = vunpack.c.h.b16 %v674
    %v1616 = vunpack.c.l.b16 %v675
    %v1617 = vunpack.c.h.b16 %v675
    %v1618 = vunpack.c.l.b16 %v676
    %v1619 = vunpack.c.h.b16 %v676
    %v1620 = vunpack.c.l.b16 %v677
    %v1621 = vunpack.c.h.b16 %v677
    %v1622 = vunpack.c.l.b16 %v678
    %v1623 = vunpack.c.h.b16 %v678
    %v1624 = vunpack.c.l.b16 %v679
    %v1625 = vunpack.c.h.b16 %v679
    %v1626 = vunpack.c.l.b16 %v680
    %v1627 = vunpack.c.h.b16 %v680
    %v1628 = vunpack.c.l.b16 %v681
    %v1629 = vunpack.c.h.b16 %v681
    %v1630 = vunpack.c.l.b16 %v682
    %v1631 = vunpack.c.h.b16 %v682
    %v1632 = vunpack.c.l.b16 %v683
    %v1633 = vunpack.c.h.b16 %v683
    %v1634 = vunpack.c.l.b16 %v684
    %v1635 = vunpack.c.h.b16 %v684
    %v1636 = vunpack.c.l.b16 %v685
    %v1637 = vunpack.c.h.b16 %v685
    %v1638 = vunpack.c.l.b16 %v686
    %v1639 = vunpack.c.h.b16 %v686
    %v1640 = vunpack.c.l.b16 %v687
    %v1641 = vunpack.c.h.b16 %v687
    %v1642 = vunpack.c.l.b16 %v688
    %v1643 = vunpack.c.h.b16 %v688
    %v1644 = vunpack.c.l.b16 %v689
    %v1645 = vunpack.c.h.b16 %v689
    %v1646 = vunpack.c.l.b16 %v690
    %v1647 = vunpack.c.h.b16 %v690
    %v1648 = vunpack.c.l.b16 %v691
    %v1649 = vunpack.c.h.b16 %v691
    %v1650 = vunpack.c.l.b16 %v692
    %v1651 = vunpack.c.h.b16 %v692
    %v1652 = vunpack.c.l.b16 %v693
    %v1653 = vunpack.c.h.b16 %v693
    %v1654 = vunpack.c.l.b16 %v694
    %v1655 = vunpack.c.h.b16 %v694
    %v1656 = vunpack.c.l.b16 %v695
    %v1657 = vunpack.c.h.b16 %v695
    %v1658 = vunpack.c.l.b16 %v696
    %v1659 = vunpack.c.h.b16 %v696
    %v1660 = vunpack.c.l.b16 %v697
    %v1661 = vunpack.c.h.b16 %v697
    %v1662 = vpack.c.b16 %v1104, %v1086
    %v1663 = vpack.c.b16 %v1105, %v1087
    %v1664 = vpack.c.b16 %v1106, %v1088
    %v1665 = vpack.c.b16 %v1107, %v1089
    %v1666 = vpack.c.b16 %v1108, %v1090
    %v1667 = vpack.c.b16 %v1109, %v1091
    %v1668 = vpack.c.b16 %v1110, %v1092
    %v1669 = vpack.c.b16 %v1111, %v1093
    %v1670 = vpack.c.b16 %v1112, %v1094
    %v1671 = vpack.c.b16 %v1113, %v1095
    %v1672 = vpack.c.b16 %v1114, %v1096
    %v1673 = vpack.c.b16 %v1115, %v1097
    %v1674 = vpack.c.b16 %v1116, %v1098
    %v1675 = vpack.c.b16 %v1117, %v1099
    %v1676 = vpack.c.b16 %v1118, %v1100
    %v1677 = vpack.c.b16 %v1119, %v1101
    %v1678 = vpack.c.b16 %v1120, %v1102
    %v1679 = vpack.c.b16 %v1121, %v1103
    %v1680 = vpack.c.b16 %v1140, %v1122
    %v1681 = vpack.c.b16 %v1141, %v1123
    %v1682 = vpack.c.b16 %v1142, %v1124
    %v1683 = vpack.c.b16 %v1143, %v1125
    %v1684 = vpack.c.b16 %v1144, %v1126
    %v1685 = vpack.c.b16 %v1145, %v1127
    %v1686 = vpack.c.b16 %v1146, %v1128
    %v1687 = vpack.c.b16 %v1147, %v1129
    %v1688 = vpack.c.b16 %v1148, %v1130
    %v1689 = vpack.c.b16 %v1149, %v1131
    %v1690 = vpack.c.b16 %v1150, %v1132
    %v1691 = vpack.c.b16 %v1151, %v1133
    %v1692 = vpack.c.b16 %v1152, %v1134
    %v1693 = vpack.c.b16 %v1153, %v1135
    %v1694 = vpack.c.b16 %v1154, %v1136
    %v1695 = vpack.c.b16 %v1155, %v1137
    %v1696 = vpack.c.b16 %v1156, %v1138
    %v1697 = vpack.c.b16 %v1157, %v1139
    %v1698 = vpack.c.b16 %v1176, %v1158
    %v1699 = vpack.c.b16 %v1177, %v1159
    %v1700 = vpack.c.b16 %v1178, %v1160
    %v1701 = vpack.c.b16 %v1179, %v1161
    %v1702 = vpack.c.b16 %v1180, %v1162
    %v1703 = vpack.c.b16 %v1181, %v1163
    %v1704 = vpack.c.b16 %v1182, %v1164
    %v1705 = vpack.c.b16 %v1183, %v1165
    %v1706 = vpack.c.b16 %v1184, %v1166
    %v1707 = vpack.c.b16 %v1185, %v1167
    %v1708 = vpack.c.b16 %v1186, %v1168
    %v1709 = vpack.c.b16 %v1187, %v1169
    %v1710 = vpack.c.b16 %v1188, %v1170
    %v1711 = vpack.c.b16 %v1189, %v1171
    %v1712 = vpack.c.b16 %v1190, %v1172
    %v1713 = vpack.c.b16 %v1191, %v1173
    %v1714 = vpack.c.b16 %v1192, %v1174
    %v1715 = vpack.c.b16 %v1193, %v1175
    %v1716 = vpack.c.b16 %v1212, %v1194
    %v1717 = vpack.c.b16 %v1213, %v1195
    %v1718 = vpack.c.b16 %v1214, %v1196
    %v1719 = vpack.c.b16 %v1215, %v1197
    %v1720 = vpack.c.b16 %v1216, %v1198
    %v1721 = vpack.c.b16 %v1217, %v1199
    %v1722 = vpack.c.b16 %v1218, %v1200
    %v1723 = vpack.c.b16 %v1219, %v1201
    %v1724 = vpack.c.b16 %v1220, %v1202
    %v1725 = vpack.c.b16 %v1221, %v1203
    %v1726 = vpack.c.b16 %v1222, %v1204
    %v1727 = vpack.c.b16 %v1223, %v1205
    %v1728 = vpack.c.b16 %v1224, %v1206
    %v1729 = vpack.c.b16 %v1225, %v1207
    %v1730 = vpack.c.b16 %v1226, %v1208
    %v1731 = vpack.c.b16 %v1227, %v1209
    %v1732 = vpack.c.b16 %v1228, %v1210
    %v1733 = vpack.c.b16 %v1229, %v1211
    %v1734 = vpack.c.b16 %v1248, %v1230
    %v1735 = vpack.c.b16 %v1249, %v1231
    %v1736 = vpack.c.b16 %v1250, %v1232
    %v1737 = vpack.c.b16 %v1251, %v1233
    %v1738 = vpack.c.b16 %v1252, %v1234
    %v1739 = vpack.c.b16 %v1253, %v1235
    %v1740 = vpack.c.b16 %v1254, %v1236
    %v1741 = vpack.c.b16 %v1255, %v1237
    %v1742 = vpack.c.b16 %v1256, %v1238
    %v1743 = vpack.c.b16 %v1257, %v1239
    %v1744 = vpack.c.b16 %v1258, %v1240
    %v1745 = vpack.c.b16 %v1259, %v1241
    %v1746 = vpack.c.b16 %v1260, %v1242
    %v1747 = vpack.c.b16 %v1261, %v1243
    %v1748 = vpack.c.b16 %v1262, %v1244
    %v1749 = vpack.c.b16 %v1263, %v1245
    %v1750 = vpack.c.b16 %v1264, %v1246
    %v1751 = vpack.c.b16 %v1265, %v1247
    %v1752 = vpack.c.b16 %v1284, %v1266
    %v1753 = vpack.c.b16 %v1285, %v1267
    %v1754 = vpack.c.b16 %v1286, %v1268
    %v1755 = vpack.c.b16 %v1287, %v1269
    %v1756 = vpack.c.b16 %v1288, %v1270
    %v1757 = vpack.c.b16 %v1289, %v1271
    %v1758 = vpack.c.b16 %v1290, %v1272
    %v1759 = vpack.c.b16 %v1291, %v1273
    %v1760 = vpack.c.b16 %v1292, %v1274
    %v1761 = vpack.c.b16 %v1293, %v1275
    %v1762 = vpack.c.b16 %v1294, %v1276
    %v1763 = vpack.c.b16 %v1295, %v1277
    %v1764 = vpack.c.b16 %v1296, %v1278
    %v1765 = vpack.c.b16 %v1297, %v1279
    %v1766 = vpack.c.b16 %v1298, %v1280
    %v1767 = vpack.c.b16 %v1299, %v1281
    %v1768 = vpack.c.b16 %v1300, %v1282
    %v1769 = vpack.c.b16 %v1301, %v1283
    %v1770 = vpack.c.b16 %v1320, %v1302
    %v1771 = vpack.c.b16 %v1321, %v1303
    %v1772 = vpack.c.b16 %v1322, %v1304
    %v1773 = vpack.c.b16 %v1323, %v1305
    %v1774 = vpack.c.b16 %v1324, %v1306
    %v1775 = vpack.c.b16 %v1325, %v1307
    %v1776 = vpack.c.b16 %v1326, %v1308
    %v1777 = vpack.c.b16 %v1327, %v1309
    %v1778 = vpack.c.b16 %v1328, %v1310
    %v1779 = vpack.c.b16 %v1329, %v1311
    %v1780 = vpack.c.b16 %v1330, %v1312
    %v1781 = vpack.c.b16 %v1331, %v1313
    %v1782 = vpack.c.b16 %v1332, %v1314
    %v1783 = vpack.c.b16 %v1333, %v1315
    %v1784 = vpack.c.b16 %v1334, %v1316
    %v1785 = vpack.c.b16 %v1335, %v1317
    %v1786 = vpack.c.b16 %v1336, %v1318
    %v1787 = vpack.c.b16 %v1337, %v1319
    %v1788 = vpack.c.b16 %v1356, %v1338
    %v1789 = vpack.c.b16 %v1357, %v1339
    %v1790 = vpack.c.b16 %v1358, %v1340
    %v1791 = vpack.c.b16 %v1359, %v1341
    %v1792 = vpack.c.b16 %v1360, %v1342
    %v1793 = vpack.c.b16 %v1361, %v1343
    %v1794 = vpack.c.b16 %v1362, %v1344
    %v1795 = vpack.c.b16 %v1363, %v1345
    %v1796 = vpack.c.b16 %v1364, %v1346
    %v1797 = vpack.c.b16 %v1365, %v1347
    %v1798 = vpack.c.b16 %v1366, %v1348
    %v1799 = vpack.c.b16 %v1367, %v1349
    %v1800 = vpack.c.b16 %v1368, %v1350
    %v1801 = vpack.c.b16 %v1369, %v1351
    %v1802 = vpack.c.b16 %v1370, %v1352
    %v1803 = vpack.c.b16 %v1371, %v1353
    %v1804 = vpack.c.b16 %v1372, %v1354
    %v1805 = vpack.c.b16 %v1373, %v1355
    %v1806 = vpack.c.b16 %v1392, %v1374
    %v1807 = vpack.c.b16 %v1393, %v1375
    %v1808 = vpack.c.b16 %v1394, %v1376
    %v1809 = vpack.c.b16 %v1395, %v1377
    %v1810 = vpack.c.b16 %v1396, %v1378
    %v1811 = vpack.c.b16 %v1397, %v1379
    %v1812 = vpack.c.b16 %v1398, %v1380
    %v1813 = vpack.c.b16 %v1399, %v1381
    %v1814 = vpack.c.b16 %v1400, %v1382
    %v1815 = vpack.c.b16 %v1401, %v1383
    %v1816 = vpack.c.b16 %v1402, %v1384
    %v1817 = vpack.c.b16 %v1403, %v1385
    %v1818 = vpack.c.b16 %v1404, %v1386
    %v1819 = vpack.c.b16 %v1405, %v1387
    %v1820 = vpack.c.b16 %v1406, %v1388
    %v1821 = vpack.c.b16 %v1407, %v1389
    %v1822 = vpack.c.b16 %v1408, %v1390
    %v1823 = vpack.c.b16 %v1409, %v1391
    %v1824 = vpack.c.b16 %v1428, %v1410
    %v1825 = vpack.c.b16 %v1429, %v1411
    %v1826 = vpack.c.b16 %v1430, %v1412
    %v1827 = vpack.c.b16 %v1431, %v1413
    %v1828 = vpack.c.b16 %v1432, %v1414
    %v1829 = vpack.c.b16 %v1433, %v1415
    %v1830 = vpack.c.b16 %v1434, %v1416
    %v1831 = vpack.c.b16 %v1435, %v1417
    %v1832 = vpack.c.b16 %v1436, %v1418
    %v1833 = vpack.c.b16 %v1437, %v1419
    %v1834 = vpack.c.b16 %v1438, %v1420
    %v1835 = vpack.c.b16 %v1439, %v1421
    %v1836 = vpack.c.b16 %v1440, %v1422
    %v1837 = vpack.c.b16 %v1441, %v1423
    %v1838 = vpack.c.b16 %v1442, %v1424
    %v1839 = vpack.c.b16 %v1443, %v1425
    %v1840 = vpack.c.b16 %v1444, %v1426
    %v1841 = vpack.c.b16 %v1445, %v1427
    %v1842 = vpack.c.b16 %v1464, %v1446
    %v1843 = vpack.c.b16 %v1465, %v1447
    %v1844 = vpack.c.b16 %v1466, %v1448
    %v1845 = vpack.c.b16 %v1467, %v1449
    %v1846 = vpack.c.b16 %v1468, %v1450
    %v1847 = vpack.c.b16 %v1469, %v1451
    %v1848 = vpack.c.b16 %v1470, %v1452
    %v1849 = vpack.c.b16 %v1471, %v1453
    %v1850 = vpack.c.b16 %v1472, %v1454
    %v1851 = vpack.c.b16 %v1473, %v1455
    %v1852 = vpack.c.b16 %v1474, %v1456
    %v1853 = vpack.c.b16 %v1475, %v1457
    %v1854 = vpack.c.b16 %v1476, %v1458
    %v1855 = vpack.c.b16 %v1477, %v1459
    %v1856 = vpack.c.b16 %v1478, %v1460
    %v1857 = vpack.c.b16 %v1479, %v1461
    %v1858 = vpack.c.b16 %v1480, %v1462
    %v1859 = vpack.c.b16 %v1481, %v1463
    %v1860 = vpack.c.b16 %v1500, %v1482
    %v1861 = vpack.c.b16 %v1501, %v1483
    %v1862 = vpack.c.b16 %v1502, %v1484
    %v1863 = vpack.c.b16 %v1503, %v1485
    %v1864 = vpack.c.b16 %v1504, %v1486
    %v1865 = vpack.c.b16 %v1505, %v1487
    %v1866 = vpack.c.b16 %v1506, %v1488
    %v1867 = vpack.c.b16 %v1507, %v1489
    %v1868 = vpack.c.b16 %v1508, %v1490
    %v1869 = vpack.c.b16 %v1509, %v1491
    %v1870 = vpack.c.b16 %v1510, %v1492
    %v1871 = vpack.c.b16 %v1511, %v1493
    %v1872 = vpack.c.b16 %v1512, %v1494
    %v1873 = vpack.c.b16 %v1513, %v1495
    %v1874 = vpack.c.b16 %v1514, %v1496
    %v1875 = vpack.c.b16 %v1515, %v1497
    %v1876 = vpack.c.b16 %v1516, %v1498
    %v1877 = vpack.c.b16 %v1517, %v1499
    %v1878 = vpack.c.b16 %v1536, %v1518
    %v1879 = vpack.c.b16 %v1537, %v1519
    %v1880 = vpack.c.b16 %v1538, %v1520
    %v1881 = vpack.c.b16 %v1539, %v1521
    %v1882 = vpack.c.b16 %v1540, %v1522
    %v1883 = vpack.c.b16 %v1541, %v1523
    %v1884 = vpack.c.b16 %v1542, %v1524
    %v1885 = vpack.c.b16 %v1543, %v1525
    %v1886 = vpack.c.b16 %v1544, %v1526
    %v1887 = vpack.c.b16 %v1545, %v1527
    %v1888 = vpack.c.b16 %v1546, %v1528
    %v1889 = vpack.c.b16 %v1547, %v1529
    %v1890 = vpack.c.b16 %v1548, %v1530
    %v1891 = vpack.c.b16 %v1549, %v1531
    %v1892 = vpack.c.b16 %v1550, %v1532
    %v1893 = vpack.c.b16 %v1551, %v1533
    %v1894 = vpack.c.b16 %v1552, %v1534
    %v1895 = vpack.c.b16 %v1553, %v1535
    %v1896 = vpack.c.b16 %v1572, %v1554
    %v1897 = vpack.c.b16 %v1573, %v1555
    %v1898 = vpack.c.b16 %v1574, %v1556
    %v1899 = vpack.c.b16 %v1575, %v1557
    %v1900 = vpack.c.b16 %v1576, %v1558
    %v1901 = vpack.c.b16 %v1577, %v1559
    %v1902 = vpack.c.b16 %v1578, %v1560
    %v1903 = vpack.c.b16 %v1579, %v1561
    %v1904 = vpack.c.b16 %v1580, %v1562
    %v1905 = vpack.c.b16 %v1581, %v1563
    %v1906 = vpack.c.b16 %v1582, %v1564
    %v1907 = vpack.c.b16 %v1583, %v1565
    %v1908 = vpack.c.b16 %v1584, %v1566
    %v1909 = vpack.c.b16 %v1585, %v1567
    %v1910 = vpack.c.b16 %v1586, %v1568
    %v1911 = vpack.c.b16 %v1587, %v1569
    %v1912 = vpack.c.b16 %v1588, %v1570
    %v1913 = vpack.c.b16 %v1589, %v1571
    %v1914 = vpack.c.b16 %v1608, %v1590
    %v1915 = vpack.c.b16 %v1609, %v1591
    %v1916 = vpack.c.b16 %v1610, %v1592
    %v1917 = vpack.c.b16 %v1611, %v1593
    %v1918 = vpack.c.b16 %v1612, %v1594
    %v1919 = vpack.c.b16 %v1613, %v1595
    %v1920 = vpack.c.b16 %v1614, %v1596
    %v1921 = vpack.c.b16 %v1615, %v1597
    %v1922 = vpack.c.b16 %v1616, %v1598
    %v1923 = vpack.c.b16 %v1617, %v1599
    %v1924 = vpack.c.b16 %v1618, %v1600
    %v1925 = vpack.c.b16 %v1619, %v1601
    %v1926 = vpack.c.b16 %v1620, %v1602
    %v1927 = vpack.c.b16 %v1621, %v1603
    %v1928 = vpack.c.b16 %v1622, %v1604
    %v1929 = vpack.c.b16 %v1623, %v1605
    %v1930 = vpack.c.b16 %v1624, %v1606
    %v1931 = vpack.c.b16 %v1625, %v1607
    %v1932 = vpack.c.b16 %v1644, %v1626
    %v1933 = vpack.c.b16 %v1645, %v1627
    %v1934 = vpack.c.b16 %v1646, %v1628
    %v1935 = vpack.c.b16 %v1647, %v1629
    %v1936 = vpack.c.b16 %v1648, %v1630
    %v1937 = vpack.c.b16 %v1649, %v1631
    %v1938 = vpack.c.b16 %v1650, %v1632
    %v1939 = vpack.c.b16 %v1651, %v1633
    %v1940 = vpack.c.b16 %v1652, %v1634
    %v1941 = vpack.c.b16 %v1653, %v1635
    %v1942 = vpack.c.b16 %v1654, %v1636
    %v1943 = vpack.c.b16 %v1655, %v1637
    %v1944 = vpack.c.b16 %v1656, %v1638
    %v1945 = vpack.c.b16 %v1657, %v1639
    %v1946 = vpack.c.b16 %v1658, %v1640
    %v1947 = vpack.c.b16 %v1659, %v1641
    %v1948 = vpack.c.b16 %v1660, %v1642
    %v1949 = vpack.c.b16 %v1661, %v1643
    %2238 = vmatprep.subr.bf16.mxu0 %v1789
    %2239 = vmatpush1.bf16.msra.mxu0 %v1788
    %2240 = vmatprep.subr.bf16.mxu0 %v1771
    %2241 = vmatpush1.bf16.msra.mxu0 %v1770
    %2242 = vmatprep.subr.bf16.mxu0 %v1753
    %2243 = vmatpush1.bf16.msra.mxu0 %v1752
    %2244 = vmatprep.subr.bf16.mxu0 %v1735
    %2245 = vmatpush1.bf16.msra.mxu0 %v1734
    %2246 = vmatprep.subr.bf16.mxu0 %v1717
    %2247 = vmatpush1.bf16.msra.mxu0 %v1716
    %2248 = vmatprep.subr.bf16.mxu0 %v1699
    %2249 = vmatpush1.bf16.msra.mxu0 %v1698
    %2250 = vmatprep.subr.bf16.mxu0 %v1681
    %2251 = vmatpush1.bf16.msra.mxu0 %v1680
    %2252 = vmatprep.subr.bf16.mxu0 %v1663
    %2253 = vmatpush1.bf16.msra.mxu0 %v1662
    %2254 = vmatprep.subr.bf16.mxu0 %v1933
    %2255 = vmatpush2.bf16.msra.mxu0 %v1932
    %2256 = vmatprep.subr.bf16.mxu0 %v1915
    %2257 = vmatpush2.bf16.msra.mxu0 %v1914
    %2258 = vmatprep.subr.bf16.mxu0 %v1897
    %2259 = vmatpush2.bf16.msra.mxu0 %v1896
    %2260 = vmatprep.subr.bf16.mxu0 %v1879
    %2261 = vmatpush2.bf16.msra.mxu0 %v1878
    %2262 = vmatprep.subr.bf16.mxu0 %v1861
    %2263 = vmatpush2.bf16.msra.mxu0 %v1860
    %2264 = vmatprep.subr.bf16.mxu0 %v1843
    %2265 = vmatpush2.bf16.msra.mxu0 %v1842
    %2266 = vmatprep.subr.bf16.mxu0 %v1825
    %2267 = vmatpush2.bf16.msra.mxu0 %v1824
    %2268 = vmatprep.subr.bf16.mxu0 %v1807
    %2269 = vmatpush2.bf16.msra.mxu0 %v1806
    %2270 = vmatprep.mubr.bf16.mxu0 %v701
    %2271 = vmatmul.mubr.bf16.gmra.mxu0 %v700
    %v2272 = vpop.f32.mrf.mxu0
    %v2273 = vadd.f32 %v711, %v2272
    %v2274 = vpop.f32.mrf.mxu0
    %v2275 = vadd.f32 %v715, %v2274
    %v2276 = vpop.f32.mrf.mxu0
    %v2277 = vpop.f32.mrf.mxu0
    %2278 = vdwg.mxu0
    %2279 = vmatprep.subr.bf16.mxu0 %v1791
    %2280 = vmatpush1.bf16.msra.mxu0 %v1790
    %2281 = vmatprep.subr.bf16.mxu0 %v1773
    %2282 = vmatpush1.bf16.msra.mxu0 %v1772
    %2283 = vmatprep.subr.bf16.mxu0 %v1755
    %2284 = vmatpush1.bf16.msra.mxu0 %v1754
    %2285 = vmatprep.subr.bf16.mxu0 %v1737
    %2286 = vmatpush1.bf16.msra.mxu0 %v1736
    %2287 = vmatprep.subr.bf16.mxu0 %v1719
    %2288 = vmatpush1.bf16.msra.mxu0 %v1718
    %2289 = vmatprep.subr.bf16.mxu0 %v1701
    %2290 = vmatpush1.bf16.msra.mxu0 %v1700
    %2291 = vmatprep.subr.bf16.mxu0 %v1683
    %2292 = vmatpush1.bf16.msra.mxu0 %v1682
    %2293 = vmatprep.subr.bf16.mxu0 %v1665
    %2294 = vmatpush1.bf16.msra.mxu0 %v1664
    %2295 = vmatprep.subr.bf16.mxu0 %v1935
    %2296 = vmatpush2.bf16.msra.mxu0 %v1934
    %2297 = vmatprep.subr.bf16.mxu0 %v1917
    %2298 = vmatpush2.bf16.msra.mxu0 %v1916
    %2299 = vmatprep.subr.bf16.mxu0 %v1899
    %2300 = vmatpush2.bf16.msra.mxu0 %v1898
    %2301 = vmatprep.subr.bf16.mxu0 %v1881
    %2302 = vmatpush2.bf16.msra.mxu0 %v1880
    %2303 = vmatprep.subr.bf16.mxu0 %v1863
    %2304 = vmatpush2.bf16.msra.mxu0 %v1862
    %2305 = vmatprep.subr.bf16.mxu0 %v1845
    %2306 = vmatpush2.bf16.msra.mxu0 %v1844
    %2307 = vmatprep.subr.bf16.mxu0 %v1827
    %2308 = vmatpush2.bf16.msra.mxu0 %v1826
    %2309 = vmatprep.subr.bf16.mxu0 %v1809
    %2310 = vmatpush2.bf16.msra.mxu0 %v1808
    %2311 = vmatprep.mubr.bf16.mxu0 %v701
    %2312 = vmatmul.mubr.bf16.gmra.mxu0 %v700
    %v2313 = vpop.f32.mrf.mxu0
    %v2314 = vadd.f32 %v719, %v2313
    %v2315 = vpop.f32.mrf.mxu0
    %v2316 = vadd.f32 %v723, %v2315
    %v2317 = vpop.f32.mrf.mxu0
    %v2318 = vpop.f32.mrf.mxu0
    %2319 = vdwg.mxu0
    %2320 = vmatprep.subr.bf16.mxu0 %v1793
    %2321 = vmatpush1.bf16.msra.mxu0 %v1792
    %2322 = vmatprep.subr.bf16.mxu0 %v1775
    %2323 = vmatpush1.bf16.msra.mxu0 %v1774
    %2324 = vmatprep.subr.bf16.mxu0 %v1757
    %2325 = vmatpush1.bf16.msra.mxu0 %v1756
    %2326 = vmatprep.subr.bf16.mxu0 %v1739
    %2327 = vmatpush1.bf16.msra.mxu0 %v1738
    %2328 = vmatprep.subr.bf16.mxu0 %v1721
    %2329 = vmatpush1.bf16.msra.mxu0 %v1720
    %2330 = vmatprep.subr.bf16.mxu0 %v1703
    %2331 = vmatpush1.bf16.msra.mxu0 %v1702
    %2332 = vmatprep.subr.bf16.mxu0 %v1685
    %2333 = vmatpush1.bf16.msra.mxu0 %v1684
    %2334 = vmatprep.subr.bf16.mxu0 %v1667
    %2335 = vmatpush1.bf16.msra.mxu0 %v1666
    %2336 = vmatprep.subr.bf16.mxu0 %v1937
    %2337 = vmatpush2.bf16.msra.mxu0 %v1936
    %2338 = vmatprep.subr.bf16.mxu0 %v1919
    %2339 = vmatpush2.bf16.msra.mxu0 %v1918
    %2340 = vmatprep.subr.bf16.mxu0 %v1901
    %2341 = vmatpush2.bf16.msra.mxu0 %v1900
    %2342 = vmatprep.subr.bf16.mxu0 %v1883
    %2343 = vmatpush2.bf16.msra.mxu0 %v1882
    %2344 = vmatprep.subr.bf16.mxu0 %v1865
    %2345 = vmatpush2.bf16.msra.mxu0 %v1864
    %2346 = vmatprep.subr.bf16.mxu0 %v1847
    %2347 = vmatpush2.bf16.msra.mxu0 %v1846
    %2348 = vmatprep.subr.bf16.mxu0 %v1829
    %2349 = vmatpush2.bf16.msra.mxu0 %v1828
    %2350 = vmatprep.subr.bf16.mxu0 %v1811
    %2351 = vmatpush2.bf16.msra.mxu0 %v1810
    %2352 = vmatprep.mubr.bf16.mxu0 %v701
    %2353 = vmatmul.mubr.bf16.gmra.mxu0 %v700
    %v2354 = vpop.f32.mrf.mxu0
    %v2355 = vadd.f32 %v727, %v2354
    %v2356 = vpop.f32.mrf.mxu0
    %v2357 = vadd.f32 %v731, %v2356
    %v2358 = vpop.f32.mrf.mxu0
    %v2359 = vpop.f32.mrf.mxu0
    %2360 = vdwg.mxu0
    %2361 = vmatprep.subr.bf16.mxu0 %v1795
    %2362 = vmatpush1.bf16.msra.mxu0 %v1794
    %2363 = vmatprep.subr.bf16.mxu0 %v1777
    %2364 = vmatpush1.bf16.msra.mxu0 %v1776
    %2365 = vmatprep.subr.bf16.mxu0 %v1759
    %2366 = vmatpush1.bf16.msra.mxu0 %v1758
    %2367 = vmatprep.subr.bf16.mxu0 %v1741
    %2368 = vmatpush1.bf16.msra.mxu0 %v1740
    %2369 = vmatprep.subr.bf16.mxu0 %v1723
    %2370 = vmatpush1.bf16.msra.mxu0 %v1722
    %2371 = vmatprep.subr.bf16.mxu0 %v1705
    %2372 = vmatpush1.bf16.msra.mxu0 %v1704
    %2373 = vmatprep.subr.bf16.mxu0 %v1687
    %2374 = vmatpush1.bf16.msra.mxu0 %v1686
    %2375 = vmatprep.subr.bf16.mxu0 %v1669
    %2376 = vmatpush1.bf16.msra.mxu0 %v1668
    %2377 = vmatprep.subr.bf16.mxu0 %v1939
    %2378 = vmatpush2.bf16.msra.mxu0 %v1938
    %2379 = vmatprep.subr.bf16.mxu0 %v1921
    %2380 = vmatpush2.bf16.msra.mxu0 %v1920
    %2381 = vmatprep.subr.bf16.mxu0 %v1903
    %2382 = vmatpush2.bf16.msra.mxu0 %v1902
    %2383 = vmatprep.subr.bf16.mxu0 %v1885
    %2384 = vmatpush2.bf16.msra.mxu0 %v1884
    %2385 = vmatprep.subr.bf16.mxu0 %v1867
    %2386 = vmatpush2.bf16.msra.mxu0 %v1866
    %2387 = vmatprep.subr.bf16.mxu0 %v1849
    %2388 = vmatpush2.bf16.msra.mxu0 %v1848
    %2389 = vmatprep.subr.bf16.mxu0 %v1831
    %2390 = vmatpush2.bf16.msra.mxu0 %v1830
    %2391 = vmatprep.subr.bf16.mxu0 %v1813
    %2392 = vmatpush2.bf16.msra.mxu0 %v1812
    %2393 = vmatprep.mubr.bf16.mxu0 %v701
    %2394 = vmatmul.mubr.bf16.gmra.mxu0 %v700
    %v2395 = vpop.f32.mrf.mxu0
    %v2396 = vadd.f32 %v735, %v2395
    %v2397 = vpop.f32.mrf.mxu0
    %v2398 = vadd.f32 %v739, %v2397
    %v2399 = vpop.f32.mrf.mxu0
    %v2400 = vpop.f32.mrf.mxu0
    %2401 = vdwg.mxu0
    %2402 = vmatprep.subr.bf16.mxu0 %v1797
    %2403 = vmatpush1.bf16.msra.mxu0 %v1796
    %2404 = vmatprep.subr.bf16.mxu0 %v1779
    %2405 = vmatpush1.bf16.msra.mxu0 %v1778
    %2406 = vmatprep.subr.bf16.mxu0 %v1761
    %2407 = vmatpush1.bf16.msra.mxu0 %v1760
    %2408 = vmatprep.subr.bf16.mxu0 %v1743
    %2409 = vmatpush1.bf16.msra.mxu0 %v1742
    %2410 = vmatprep.subr.bf16.mxu0 %v1725
    %2411 = vmatpush1.bf16.msra.mxu0 %v1724
    %2412 = vmatprep.subr.bf16.mxu0 %v1707
    %2413 = vmatpush1.bf16.msra.mxu0 %v1706
    %2414 = vmatprep.subr.bf16.mxu0 %v1689
    %2415 = vmatpush1.bf16.msra.mxu0 %v1688
    %2416 = vmatprep.subr.bf16.mxu0 %v1671
    %2417 = vmatpush1.bf16.msra.mxu0 %v1670
    %2418 = vmatprep.subr.bf16.mxu0 %v1941
    %2419 = vmatpush2.bf16.msra.mxu0 %v1940
    %2420 = vmatprep.subr.bf16.mxu0 %v1923
    %2421 = vmatpush2.bf16.msra.mxu0 %v1922
    %2422 = vmatprep.subr.bf16.mxu0 %v1905
    %2423 = vmatpush2.bf16.msra.mxu0 %v1904
    %2424 = vmatprep.subr.bf16.mxu0 %v1887
    %2425 = vmatpush2.bf16.msra.mxu0 %v1886
    %2426 = vmatprep.subr.bf16.mxu0 %v1869
    %2427 = vmatpush2.bf16.msra.mxu0 %v1868
    %2428 = vmatprep.subr.bf16.mxu0 %v1851
    %2429 = vmatpush2.bf16.msra.mxu0 %v1850
    %2430 = vmatprep.subr.bf16.mxu0 %v1833
    %2431 = vmatpush2.bf16.msra.mxu0 %v1832
    %2432 = vmatprep.subr.bf16.mxu0 %v1815
    %2433 = vmatpush2.bf16.msra.mxu0 %v1814
    %2434 = vmatprep.mubr.bf16.mxu0 %v701
    %2435 = vmatmul.mubr.bf16.gmra.mxu0 %v700
    %v2436 = vpop.f32.mrf.mxu0
    %v2437 = vadd.f32 %v743, %v2436
    %v2438 = vpop.f32.mrf.mxu0
    %v2439 = vadd.f32 %v747, %v2438
    %v2440 = vpop.f32.mrf.mxu0
    %v2441 = vpop.f32.mrf.mxu0
    %2442 = vdwg.mxu0
    %2443 = vmatprep.subr.bf16.mxu0 %v1799
    %2444 = vmatpush1.bf16.msra.mxu0 %v1798
    %2445 = vmatprep.subr.bf16.mxu0 %v1781
    %2446 = vmatpush1.bf16.msra.mxu0 %v1780
    %2447 = vmatprep.subr.bf16.mxu0 %v1763
    %2448 = vmatpush1.bf16.msra.mxu0 %v1762
    %2449 = vmatprep.subr.bf16.mxu0 %v1745
    %2450 = vmatpush1.bf16.msra.mxu0 %v1744
    %2451 = vmatprep.subr.bf16.mxu0 %v1727
    %2452 = vmatpush1.bf16.msra.mxu0 %v1726
    %2453 = vmatprep.subr.bf16.mxu0 %v1709
    %2454 = vmatpush1.bf16.msra.mxu0 %v1708
    %2455 = vmatprep.subr.bf16.mxu0 %v1691
    %2456 = vmatpush1.bf16.msra.mxu0 %v1690
    %2457 = vmatprep.subr.bf16.mxu0 %v1673
    %2458 = vmatpush1.bf16.msra.mxu0 %v1672
    %2459 = vmatprep.subr.bf16.mxu0 %v1943
    %2460 = vmatpush2.bf16.msra.mxu0 %v1942
    %2461 = vmatprep.subr.bf16.mxu0 %v1925
    %2462 = vmatpush2.bf16.msra.mxu0 %v1924
    %2463 = vmatprep.subr.bf16.mxu0 %v1907
    %2464 = vmatpush2.bf16.msra.mxu0 %v1906
    %2465 = vmatprep.subr.bf16.mxu0 %v1889
    %2466 = vmatpush2.bf16.msra.mxu0 %v1888
    %2467 = vmatprep.subr.bf16.mxu0 %v1871
    %2468 = vmatpush2.bf16.msra.mxu0 %v1870
    %2469 = vmatprep.subr.bf16.mxu0 %v1853
    %2470 = vmatpush2.bf16.msra.mxu0 %v1852
    %2471 = vmatprep.subr.bf16.mxu0 %v1835
    %2472 = vmatpush2.bf16.msra.mxu0 %v1834
    %2473 = vmatprep.subr.bf16.mxu0 %v1817
    %2474 = vmatpush2.bf16.msra.mxu0 %v1816
    %2475 = vmatprep.mubr.bf16.mxu0 %v701
    %2476 = vmatmul.mubr.bf16.gmra.mxu0 %v700
    %v2477 = vpop.f32.mrf.mxu0
    %v2478 = vadd.f32 %v751, %v2477
    %v2479 = vpop.f32.mrf.mxu0
    %v2480 = vadd.f32 %v755, %v2479
    %v2481 = vpop.f32.mrf.mxu0
    %v2482 = vpop.f32.mrf.mxu0
    %2483 = vdwg.mxu0
    %2484 = vmatprep.subr.bf16.mxu0 %v1801
    %2485 = vmatpush1.bf16.msra.mxu0 %v1800
    %2486 = vmatprep.subr.bf16.mxu0 %v1783
    %2487 = vmatpush1.bf16.msra.mxu0 %v1782
    %2488 = vmatprep.subr.bf16.mxu0 %v1765
    %2489 = vmatpush1.bf16.msra.mxu0 %v1764
    %2490 = vmatprep.subr.bf16.mxu0 %v1747
    %2491 = vmatpush1.bf16.msra.mxu0 %v1746
    %2492 = vmatprep.subr.bf16.mxu0 %v1729
    %2493 = vmatpush1.bf16.msra.mxu0 %v1728
    %2494 = vmatprep.subr.bf16.mxu0 %v1711
    %2495 = vmatpush1.bf16.msra.mxu0 %v1710
    %2496 = vmatprep.subr.bf16.mxu0 %v1693
    %2497 = vmatpush1.bf16.msra.mxu0 %v1692
    %2498 = vmatprep.subr.bf16.mxu0 %v1675
    %2499 = vmatpush1.bf16.msra.mxu0 %v1674
    %2500 = vmatprep.subr.bf16.mxu0 %v1945
    %2501 = vmatpush2.bf16.msra.mxu0 %v1944
    %2502 = vmatprep.subr.bf16.mxu0 %v1927
    %2503 = vmatpush2.bf16.msra.mxu0 %v1926
    %2504 = vmatprep.subr.bf16.mxu0 %v1909
    %2505 = vmatpush2.bf16.msra.mxu0 %v1908
    %2506 = vmatprep.subr.bf16.mxu0 %v1891
    %2507 = vmatpush2.bf16.msra.mxu0 %v1890
    %2508 = vmatprep.subr.bf16.mxu0 %v1873
    %2509 = vmatpush2.bf16.msra.mxu0 %v1872
    %2510 = vmatprep.subr.bf16.mxu0 %v1855
    %2511 = vmatpush2.bf16.msra.mxu0 %v1854
    %2512 = vmatprep.subr.bf16.mxu0 %v1837
    %2513 = vmatpush2.bf16.msra.mxu0 %v1836
    %2514 = vmatprep.subr.bf16.mxu0 %v1819
    %2515 = vmatpush2.bf16.msra.mxu0 %v1818
    %2516 = vmatprep.mubr.bf16.mxu0 %v701
    %2517 = vmatmul.mubr.bf16.gmra.mxu0 %v700
    %v2518 = vpop.f32.mrf.mxu0
    %v2519 = vadd.f32 %v759, %v2518
    %v2520 = vpop.f32.mrf.mxu0
    %v2521 = vadd.f32 %v763, %v2520
    %v2522 = vpop.f32.mrf.mxu0
    %v2523 = vpop.f32.mrf.mxu0
    %2524 = vdwg.mxu0
    %2525 = vmatprep.subr.bf16.mxu0 %v1803
    %2526 = vmatpush1.bf16.msra.mxu0 %v1802
    %2527 = vmatprep.subr.bf16.mxu0 %v1785
    %2528 = vmatpush1.bf16.msra.mxu0 %v1784
    %2529 = vmatprep.subr.bf16.mxu0 %v1767
    %2530 = vmatpush1.bf16.msra.mxu0 %v1766
    %2531 = vmatprep.subr.bf16.mxu0 %v1749
    %2532 = vmatpush1.bf16.msra.mxu0 %v1748
    %2533 = vmatprep.subr.bf16.mxu0 %v1731
    %2534 = vmatpush1.bf16.msra.mxu0 %v1730
    %2535 = vmatprep.subr.bf16.mxu0 %v1713
    %2536 = vmatpush1.bf16.msra.mxu0 %v1712
    %2537 = vmatprep.subr.bf16.mxu0 %v1695
    %2538 = vmatpush1.bf16.msra.mxu0 %v1694
    %2539 = vmatprep.subr.bf16.mxu0 %v1677
    %2540 = vmatpush1.bf16.msra.mxu0 %v1676
    %2541 = vmatprep.subr.bf16.mxu0 %v1947
    %2542 = vmatpush2.bf16.msra.mxu0 %v1946
    %2543 = vmatprep.subr.bf16.mxu0 %v1929
    %2544 = vmatpush2.bf16.msra.mxu0 %v1928
    %2545 = vmatprep.subr.bf16.mxu0 %v1911
    %2546 = vmatpush2.bf16.msra.mxu0 %v1910
    %2547 = vmatprep.subr.bf16.mxu0 %v1893
    %2548 = vmatpush2.bf16.msra.mxu0 %v1892
    %2549 = vmatprep.subr.bf16.mxu0 %v1875
    %2550 = vmatpush2.bf16.msra.mxu0 %v1874
    %2551 = vmatprep.subr.bf16.mxu0 %v1857
    %2552 = vmatpush2.bf16.msra.mxu0 %v1856
    %2553 = vmatprep.subr.bf16.mxu0 %v1839
    %2554 = vmatpush2.bf16.msra.mxu0 %v1838
    %2555 = vmatprep.subr.bf16.mxu0 %v1821
    %2556 = vmatpush2.bf16.msra.mxu0 %v1820
    %2557 = vmatprep.mubr.bf16.mxu0 %v701
    %2558 = vmatmul.mubr.bf16.gmra.mxu0 %v700
    %v2559 = vpop.f32.mrf.mxu0
    %v2560 = vadd.f32 %v767, %v2559
    %v2561 = vpop.f32.mrf.mxu0
    %v2562 = vadd.f32 %v771, %v2561
    %v2563 = vpop.f32.mrf.mxu0
    %v2564 = vpop.f32.mrf.mxu0
    %2565 = vdwg.mxu0
    %2566 = vmatprep.subr.bf16.mxu0 %v1805
    %2567 = vmatpush1.bf16.msra.mxu0 %v1804
    %2568 = vmatprep.subr.bf16.mxu0 %v1787
    %2569 = vmatpush1.bf16.msra.mxu0 %v1786
    %2570 = vmatprep.subr.bf16.mxu0 %v1769
    %2571 = vmatpush1.bf16.msra.mxu0 %v1768
    %2572 = vmatprep.subr.bf16.mxu0 %v1751
    %2573 = vmatpush1.bf16.msra.mxu0 %v1750
    %2574 = vmatprep.subr.bf16.mxu0 %v1733
    %2575 = vmatpush1.bf16.msra.mxu0 %v1732
    %2576 = vmatprep.subr.bf16.mxu0 %v1715
    %2577 = vmatpush1.bf16.msra.mxu0 %v1714
    %2578 = vmatprep.subr.bf16.mxu0 %v1697
    %2579 = vmatpush1.bf16.msra.mxu0 %v1696
    %2580 = vmatprep.subr.bf16.mxu0 %v1679
    %2581 = vmatpush1.bf16.msra.mxu0 %v1678
    %2582 = vmatprep.subr.bf16.mxu0 %v1949
    %2583 = vmatpush2.bf16.msra.mxu0 %v1948
    %2584 = vmatprep.subr.bf16.mxu0 %v1931
    %2585 = vmatpush2.bf16.msra.mxu0 %v1930
    %2586 = vmatprep.subr.bf16.mxu0 %v1913
    %2587 = vmatpush2.bf16.msra.mxu0 %v1912
    %2588 = vmatprep.subr.bf16.mxu0 %v1895
    %2589 = vmatpush2.bf16.msra.mxu0 %v1894
    %2590 = vmatprep.subr.bf16.mxu0 %v1877
    %2591 = vmatpush2.bf16.msra.mxu0 %v1876
    %2592 = vmatprep.subr.bf16.mxu0 %v1859
    %2593 = vmatpush2.bf16.msra.mxu0 %v1858
    %2594 = vmatprep.subr.bf16.mxu0 %v1841
    %2595 = vmatpush2.bf16.msra.mxu0 %v1840
    %2596 = vmatprep.subr.bf16.mxu0 %v1823
    %2597 = vmatpush2.bf16.msra.mxu0 %v1822
    %2598 = vmatprep.mubr.bf16.mxu0 %v701
    %2599 = vmatmul.mubr.bf16.gmra.mxu0 %v700
    %v2600 = vpop.f32.mrf.mxu0
    %v2601 = vadd.f32 %v775, %v2600
    %v2602 = vpop.f32.mrf.mxu0
    %v2603 = vadd.f32 %v779, %v2602
    %v2604 = vpop.f32.mrf.mxu0
    %v2605 = vpop.f32.mrf.mxu0
    %2606 = vdwg.mxu0
    %v2607 = vld [vmem:[#allocation8] sm:$0xff]
    %v2608 = vld [vmem:[#allocation8 + $0x8] sm:$0xff]
    %v2609 = vld [vmem:[#allocation8 + $0x10] sm:$0xff]
    %v2610 = vld [vmem:[#allocation8 + $0x18] sm:$0xff]
    %v2611 = vld [vmem:[#allocation8 + $0x20] sm:$0xff]
    %v2612 = vld [vmem:[#allocation8 + $0x28] sm:$0xff]
    %v2613 = vld [vmem:[#allocation8 + $0x30] sm:$0xff]
    %v2614 = vld [vmem:[#allocation8 + $0x38] sm:$0xff]
    %v2615 = vld [vmem:[#allocation8 + $0x40] sm:$0xff]
    %v2616 = vld [vmem:[#allocation8 + $0x48] sm:$0xff]
    %v2617 = vld [vmem:[#allocation8 + $0x50] sm:$0xff]
    %v2618 = vld [vmem:[#allocation8 + $0x58] sm:$0xff]
    %v2619 = vld [vmem:[#allocation8 + $0x60] sm:$0xff]
    %v2620 = vld [vmem:[#allocation8 + $0x68] sm:$0xff]
    %v2621 = vld [vmem:[#allocation8 + $0x70] sm:$0xff]
    %v2622 = vld [vmem:[#allocation8 + $0x78] sm:$0xff]
    %v2623 = vld [vmem:[#allocation8 + $0x80] sm:$0xff]
    %v2624 = vld [vmem:[#allocation8 + $0x88] sm:$0xff]
    %v2625 = vld [vmem:[#allocation8 + $0x90] sm:$0xff]
    %v2626 = vld [vmem:[#allocation8 + $0x98] sm:$0xff]
    %v2627 = vld [vmem:[#allocation8 + $0xa0] sm:$0xff]
    %v2628 = vld [vmem:[#allocation8 + $0xa8] sm:$0xff]
    %v2629 = vld [vmem:[#allocation8 + $0xb0] sm:$0xff]
    %v2630 = vld [vmem:[#allocation8 + $0xb8] sm:$0xff]
    %v2631 = vld [vmem:[#allocation8 + $0xc0] sm:$0xff]
    %v2632 = vld [vmem:[#allocation8 + $0xc8] sm:$0xff]
    %v2633 = vld [vmem:[#allocation8 + $0xd0] sm:$0xff]
    %v2634 = vld [vmem:[#allocation8 + $0xd8] sm:$0xff]
    %v2635 = vld [vmem:[#allocation8 + $0xe0] sm:$0xff]
    %v2636 = vld [vmem:[#allocation8 + $0xe8] sm:$0xff]
    %v2637 = vld [vmem:[#allocation8 + $0xf0] sm:$0xff]
    %v2638 = vld [vmem:[#allocation8 + $0xf8] sm:$0xff]
    %v2639 = vpack.c.bf16 %v408, %v408
    %v2640 = vpack.c.bf16 %v409, %v409
    %v2673 = vunpack.c.l.b16 %v2607
    %v2674 = vunpack.c.h.b16 %v2607
    %v2675 = vunpack.c.l.b16 %v2608
    %v2676 = vunpack.c.h.b16 %v2608
    %v2677 = vunpack.c.l.b16 %v2609
    %v2678 = vunpack.c.h.b16 %v2609
    %v2679 = vunpack.c.l.b16 %v2610
    %v2680 = vunpack.c.h.b16 %v2610
    %v2681 = vunpack.c.l.b16 %v2611
    %v2682 = vunpack.c.h.b16 %v2611
    %v2683 = vunpack.c.l.b16 %v2612
    %v2684 = vunpack.c.h.b16 %v2612
    %v2685 = vunpack.c.l.b16 %v2613
    %v2686 = vunpack.c.h.b16 %v2613
    %v2687 = vunpack.c.l.b16 %v2614
    %v2688 = vunpack.c.h.b16 %v2614
    %v2689 = vunpack.c.l.b16 %v2615
    %v2690 = vunpack.c.h.b16 %v2615
    %v2691 = vunpack.c.l.b16 %v2616
    %v2692 = vunpack.c.h.b16 %v2616
    %v2693 = vunpack.c.l.b16 %v2617
    %v2694 = vunpack.c.h.b16 %v2617
    %v2695 = vunpack.c.l.b16 %v2618
    %v2696 = vunpack.c.h.b16 %v2618
    %v2697 = vunpack.c.l.b16 %v2619
    %v2698 = vunpack.c.h.b16 %v2619
    %v2699 = vunpack.c.l.b16 %v2620
    %v2700 = vunpack.c.h.b16 %v2620
    %v2701 = vunpack.c.l.b16 %v2621
    %v2702 = vunpack.c.h.b16 %v2621
    %v2703 = vunpack.c.l.b16 %v2622
    %v2704 = vunpack.c.h.b16 %v2622
    %v2705 = vunpack.c.l.b16 %v2623
    %v2706 = vunpack.c.h.b16 %v2623
    %v2707 = vunpack.c.l.b16 %v2624
    %v2708 = vunpack.c.h.b16 %v2624
    %v2709 = vunpack.c.l.b16 %v2625
    %v2710 = vunpack.c.h.b16 %v2625
    %v2711 = vunpack.c.l.b16 %v2626
    %v2712 = vunpack.c.h.b16 %v2626
    %v2713 = vunpack.c.l.b16 %v2627
    %v2714 = vunpack.c.h.b16 %v2627
    %v2715 = vunpack.c.l.b16 %v2628
    %v2716 = vunpack.c.h.b16 %v2628
    %v2717 = vunpack.c.l.b16 %v2629
    %v2718 = vunpack.c.h.b16 %v2629
    %v2719 = vunpack.c.l.b16 %v2630
    %v2720 = vunpack.c.h.b16 %v2630
    %v2721 = vunpack.c.l.b16 %v2631
    %v2722 = vunpack.c.h.b16 %v2631
    %v2723 = vunpack.c.l.b16 %v2632
    %v2724 = vunpack.c.h.b16 %v2632
    %v2725 = vunpack.c.l.b16 %v2633
    %v2726 = vunpack.c.h.b16 %v2633
    %v2727 = vunpack.c.l.b16 %v2634
    %v2728 = vunpack.c.h.b16 %v2634
    %v2729 = vunpack.c.l.b16 %v2635
    %v2730 = vunpack.c.h.b16 %v2635
    %v2731 = vunpack.c.l.b16 %v2636
    %v2732 = vunpack.c.h.b16 %v2636
    %v2733 = vunpack.c.l.b16 %v2637
    %v2734 = vunpack.c.h.b16 %v2637
    %v2735 = vunpack.c.l.b16 %v2638
    %v2736 = vunpack.c.h.b16 %v2638
    %v2737 = vpack.c.b16 %v2675, %v2673
    %v2738 = vpack.c.b16 %v2676, %v2674
    %v2739 = vpack.c.b16 %v2679, %v2677
    %v2740 = vpack.c.b16 %v2680, %v2678
    %v2741 = vpack.c.b16 %v2683, %v2681
    %v2742 = vpack.c.b16 %v2684, %v2682
    %v2743 = vpack.c.b16 %v2687, %v2685
    %v2744 = vpack.c.b16 %v2688, %v2686
    %v2745 = vpack.c.b16 %v2691, %v2689
    %v2746 = vpack.c.b16 %v2692, %v2690
    %v2747 = vpack.c.b16 %v2695, %v2693
    %v2748 = vpack.c.b16 %v2696, %v2694
    %v2749 = vpack.c.b16 %v2699, %v2697
    %v2750 = vpack.c.b16 %v2700, %v2698
    %v2751 = vpack.c.b16 %v2703, %v2701
    %v2752 = vpack.c.b16 %v2704, %v2702
    %v2753 = vpack.c.b16 %v2707, %v2705
    %v2754 = vpack.c.b16 %v2708, %v2706
    %v2755 = vpack.c.b16 %v2711, %v2709
    %v2756 = vpack.c.b16 %v2712, %v2710
    %v2757 = vpack.c.b16 %v2715, %v2713
    %v2758 = vpack.c.b16 %v2716, %v2714
    %v2759 = vpack.c.b16 %v2719, %v2717
    %v2760 = vpack.c.b16 %v2720, %v2718
    %v2761 = vpack.c.b16 %v2723, %v2721
    %v2762 = vpack.c.b16 %v2724, %v2722
    %v2763 = vpack.c.b16 %v2727, %v2725
    %v2764 = vpack.c.b16 %v2728, %v2726
    %v2765 = vpack.c.b16 %v2731, %v2729
    %v2766 = vpack.c.b16 %v2732, %v2730
    %v2767 = vpack.c.b16 %v2735, %v2733
    %v2768 = vpack.c.b16 %v2736, %v2734
    %2801 = vmatprep.subr.bf16.mxu0 %v2752
    %2802 = vmatpush1.bf16.msra.mxu0 %v2751
    %2803 = vmatprep.subr.bf16.mxu0 %v2750
    %2804 = vmatpush1.bf16.msra.mxu0 %v2749
    %2805 = vmatprep.subr.bf16.mxu0 %v2748
    %2806 = vmatpush1.bf16.msra.mxu0 %v2747
    %2807 = vmatprep.subr.bf16.mxu0 %v2746
    %2808 = vmatpush1.bf16.msra.mxu0 %v2745
    %2809 = vmatprep.subr.bf16.mxu0 %v2744
    %2810 = vmatpush1.bf16.msra.mxu0 %v2743
    %2811 = vmatprep.subr.bf16.mxu0 %v2742
    %2812 = vmatpush1.bf16.msra.mxu0 %v2741
    %2813 = vmatprep.subr.bf16.mxu0 %v2740
    %2814 = vmatpush1.bf16.msra.mxu0 %v2739
    %2815 = vmatprep.subr.bf16.mxu0 %v2738
    %2816 = vmatpush1.bf16.msra.mxu0 %v2737
    %2817 = vmatprep.subr.bf16.mxu0 %v2768
    %2818 = vmatpush2.bf16.msra.mxu0 %v2767
    %2819 = vmatprep.subr.bf16.mxu0 %v2766
    %2820 = vmatpush2.bf16.msra.mxu0 %v2765
    %2821 = vmatprep.subr.bf16.mxu0 %v2764
    %2822 = vmatpush2.bf16.msra.mxu0 %v2763
    %2823 = vmatprep.subr.bf16.mxu0 %v2762
    %2824 = vmatpush2.bf16.msra.mxu0 %v2761
    %2825 = vmatprep.subr.bf16.mxu0 %v2760
    %2826 = vmatpush2.bf16.msra.mxu0 %v2759
    %2827 = vmatprep.subr.bf16.mxu0 %v2758
    %2828 = vmatpush2.bf16.msra.mxu0 %v2757
    %2829 = vmatprep.subr.bf16.mxu0 %v2756
    %2830 = vmatpush2.bf16.msra.mxu0 %v2755
    %2831 = vmatprep.subr.bf16.mxu0 %v2754
    %2832 = vmatpush2.bf16.msra.mxu0 %v2753
    %2833 = vmatprep.mubr.bf16.mxu0 %v2640
    %2834 = vmatmul.mubr.bf16.gmra.mxu0 %v2639
    %v2835 = vpop.f32.mrf.mxu0
    %v2836 = vadd.f32 %v2273, %v2835
    %v2837 = vpop.f32.mrf.mxu0
    %v2838 = vadd.f32 %v2275, %v2837
    %v2839 = vpop.f32.mrf.mxu0
    %v2840 = vpop.f32.mrf.mxu0
    %2841 = vdwg.mxu0
    %v2842 = vmul.f32 %v2836, 0.2
    %v2843 = vmul.f32 %v2838, 0.2
    %v2844 = vmax.f32 %v2836, %v2842
    %v2845 = vmax.f32 %v2838, %v2843
    %s2846 = scalar_lea.vmem [#allocation8], 256
    %v2847 = vld [vmem:[%s2846] sm:$0xff]
    %v2848 = vld [vmem:[%s2846 + $0x8] sm:$0xff]
    %v2849 = vld [vmem:[%s2846 + $0x10] sm:$0xff]
    %v2850 = vld [vmem:[%s2846 + $0x18] sm:$0xff]
    %v2851 = vld [vmem:[%s2846 + $0x20] sm:$0xff]
    %v2852 = vld [vmem:[%s2846 + $0x28] sm:$0xff]
    %v2853 = vld [vmem:[%s2846 + $0x30] sm:$0xff]
    %v2854 = vld [vmem:[%s2846 + $0x38] sm:$0xff]
    %v2855 = vld [vmem:[%s2846 + $0x40] sm:$0xff]
    %v2856 = vld [vmem:[%s2846 + $0x48] sm:$0xff]
    %v2857 = vld [vmem:[%s2846 + $0x50] sm:$0xff]
    %v2858 = vld [vmem:[%s2846 + $0x58] sm:$0xff]
    %v2859 = vld [vmem:[%s2846 + $0x60] sm:$0xff]
    %v2860 = vld [vmem:[%s2846 + $0x68] sm:$0xff]
    %v2861 = vld [vmem:[%s2846 + $0x70] sm:$0xff]
    %v2862 = vld [vmem:[%s2846 + $0x78] sm:$0xff]
    %v2863 = vld [vmem:[%s2846 + $0x80] sm:$0xff]
    %v2864 = vld [vmem:[%s2846 + $0x88] sm:$0xff]
    %v2865 = vld [vmem:[%s2846 + $0x90] sm:$0xff]
    %v2866 = vld [vmem:[%s2846 + $0x98] sm:$0xff]
    %v2867 = vld [vmem:[%s2846 + $0xa0] sm:$0xff]
    %v2868 = vld [vmem:[%s2846 + $0xa8] sm:$0xff]
    %v2869 = vld [vmem:[%s2846 + $0xb0] sm:$0xff]
    %v2870 = vld [vmem:[%s2846 + $0xb8] sm:$0xff]
    %v2871 = vld [vmem:[%s2846 + $0xc0] sm:$0xff]
    %v2872 = vld [vmem:[%s2846 + $0xc8] sm:$0xff]
    %v2873 = vld [vmem:[%s2846 + $0xd0] sm:$0xff]
    %v2874 = vld [vmem:[%s2846 + $0xd8] sm:$0xff]
    %v2875 = vld [vmem:[%s2846 + $0xe0] sm:$0xff]
    %v2876 = vld [vmem:[%s2846 + $0xe8] sm:$0xff]
    %v2877 = vld [vmem:[%s2846 + $0xf0] sm:$0xff]
    %v2878 = vld [vmem:[%s2846 + $0xf8] sm:$0xff]
    %v2879 = vpack.c.bf16 %v2844, %v2844
    %v2880 = vpack.c.bf16 %v2845, %v2845
    %v2913 = vunpack.c.l.b16 %v2847
    %v2914 = vunpack.c.h.b16 %v2847
    %v2915 = vunpack.c.l.b16 %v2848
    %v2916 = vunpack.c.h.b16 %v2848
    %v2917 = vunpack.c.l.b16 %v2849
    %v2918 = vunpack.c.h.b16 %v2849
    %v2919 = vunpack.c.l.b16 %v2850
    %v2920 = vunpack.c.h.b16 %v2850
    %v2921 = vunpack.c.l.b16 %v2851
    %v2922 = vunpack.c.h.b16 %v2851
    %v2923 = vunpack.c.l.b16 %v2852
    %v2924 = vunpack.c.h.b16 %v2852
    %v2925 = vunpack.c.l.b16 %v2853
    %v2926 = vunpack.c.h.b16 %v2853
    %v2927 = vunpack.c.l.b16 %v2854
    %v2928 = vunpack.c.h.b16 %v2854
    %v2929 = vunpack.c.l.b16 %v2855
    %v2930 = vunpack.c.h.b16 %v2855
    %v2931 = vunpack.c.l.b16 %v2856
    %v2932 = vunpack.c.h.b16 %v2856
    %v2933 = vunpack.c.l.b16 %v2857
    %v2934 = vunpack.c.h.b16 %v2857
    %v2935 = vunpack.c.l.b16 %v2858
    %v2936 = vunpack.c.h.b16 %v2858
    %v2937 = vunpack.c.l.b16 %v2859
    %v2938 = vunpack.c.h.b16 %v2859
    %v2939 = vunpack.c.l.b16 %v2860
    %v2940 = vunpack.c.h.b16 %v2860
    %v2941 = vunpack.c.l.b16 %v2861
    %v2942 = vunpack.c.h.b16 %v2861
    %v2943 = vunpack.c.l.b16 %v2862
    %v2944 = vunpack.c.h.b16 %v2862
    %v2945 = vunpack.c.l.b16 %v2863
    %v2946 = vunpack.c.h.b16 %v2863
    %v2947 = vunpack.c.l.b16 %v2864
    %v2948 = vunpack.c.h.b16 %v2864
    %v2949 = vunpack.c.l.b16 %v2865
    %v2950 = vunpack.c.h.b16 %v2865
    %v2951 = vunpack.c.l.b16 %v2866
    %v2952 = vunpack.c.h.b16 %v2866
    %v2953 = vunpack.c.l.b16 %v2867
    %v2954 = vunpack.c.h.b16 %v2867
    %v2955 = vunpack.c.l.b16 %v2868
    %v2956 = vunpack.c.h.b16 %v2868
    %v2957 = vunpack.c.l.b16 %v2869
    %v2958 = vunpack.c.h.b16 %v2869
    %v2959 = vunpack.c.l.b16 %v2870
    %v2960 = vunpack.c.h.b16 %v2870
    %v2961 = vunpack.c.l.b16 %v2871
    %v2962 = vunpack.c.h.b16 %v2871
    %v2963 = vunpack.c.l.b16 %v2872
    %v2964 = vunpack.c.h.b16 %v2872
    %v2965 = vunpack.c.l.b16 %v2873
    %v2966 = vunpack.c.h.b16 %v2873
    %v2967 = vunpack.c.l.b16 %v2874
    %v2968 = vunpack.c.h.b16 %v2874
    %v2969 = vunpack.c.l.b16 %v2875
    %v2970 = vunpack.c.h.b16 %v2875
    %v2971 = vunpack.c.l.b16 %v2876
    %v2972 = vunpack.c.h.b16 %v2876
    %v2973 = vunpack.c.l.b16 %v2877
    %v2974 = vunpack.c.h.b16 %v2877
    %v2975 = vunpack.c.l.b16 %v2878
    %v2976 = vunpack.c.h.b16 %v2878
    %v2977 = vpack.c.b16 %v2915, %v2913
    %v2978 = vpack.c.b16 %v2916, %v2914
    %v2979 = vpack.c.b16 %v2919, %v2917
    %v2980 = vpack.c.b16 %v2920, %v2918
    %v2981 = vpack.c.b16 %v2923, %v2921
    %v2982 = vpack.c.b16 %v2924, %v2922
    %v2983 = vpack.c.b16 %v2927, %v2925
    %v2984 = vpack.c.b16 %v2928, %v2926
    %v2985 = vpack.c.b16 %v2931, %v2929
    %v2986 = vpack.c.b16 %v2932, %v2930
    %v2987 = vpack.c.b16 %v2935, %v2933
    %v2988 = vpack.c.b16 %v2936, %v2934
    %v2989 = vpack.c.b16 %v2939, %v2937
    %v2990 = vpack.c.b16 %v2940, %v2938
    %v2991 = vpack.c.b16 %v2943, %v2941
    %v2992 = vpack.c.b16 %v2944, %v2942
    %v2993 = vpack.c.b16 %v2947, %v2945
    %v2994 = vpack.c.b16 %v2948, %v2946
    %v2995 = vpack.c.b16 %v2951, %v2949
    %v2996 = vpack.c.b16 %v2952, %v2950
    %v2997 = vpack.c.b16 %v2955, %v2953
    %v2998 = vpack.c.b16 %v2956, %v2954
    %v2999 = vpack.c.b16 %v2959, %v2957
    %v3000 = vpack.c.b16 %v2960, %v2958
    %v3001 = vpack.c.b16 %v2963, %v2961
    %v3002 = vpack.c.b16 %v2964, %v2962
    %v3003 = vpack.c.b16 %v2967, %v2965
    %v3004 = vpack.c.b16 %v2968, %v2966
    %v3005 = vpack.c.b16 %v2971, %v2969
    %v3006 = vpack.c.b16 %v2972, %v2970
    %v3007 = vpack.c.b16 %v2975, %v2973
    %v3008 = vpack.c.b16 %v2976, %v2974
    %3041 = vmatprep.subr.bf16.mxu0 %v2992
    %3042 = vmatpush1.bf16.msra.mxu0 %v2991
    %3043 = vmatprep.subr.bf16.mxu0 %v2990
    %3044 = vmatpush1.bf16.msra.mxu0 %v2989
    %3045 = vmatprep.subr.bf16.mxu0 %v2988
    %3046 = vmatpush1.bf16.msra.mxu0 %v2987
    %3047 = vmatprep.subr.bf16.mxu0 %v2986
    %3048 = vmatpush1.bf16.msra.mxu0 %v2985
    %3049 = vmatprep.subr.bf16.mxu0 %v2984
    %3050 = vmatpush1.bf16.msra.mxu0 %v2983
    %3051 = vmatprep.subr.bf16.mxu0 %v2982
    %3052 = vmatpush1.bf16.msra.mxu0 %v2981
    %3053 = vmatprep.subr.bf16.mxu0 %v2980
    %3054 = vmatpush1.bf16.msra.mxu0 %v2979
    %3055 = vmatprep.subr.bf16.mxu0 %v2978
    %3056 = vmatpush1.bf16.msra.mxu0 %v2977
    %3057 = vmatprep.subr.bf16.mxu0 %v3008
    %3058 = vmatpush2.bf16.msra.mxu0 %v3007
    %3059 = vmatprep.subr.bf16.mxu0 %v3006
    %3060 = vmatpush2.bf16.msra.mxu0 %v3005
    %3061 = vmatprep.subr.bf16.mxu0 %v3004
    %3062 = vmatpush2.bf16.msra.mxu0 %v3003
    %3063 = vmatprep.subr.bf16.mxu0 %v3002
    %3064 = vmatpush2.bf16.msra.mxu0 %v3001
    %3065 = vmatprep.subr.bf16.mxu0 %v3000
    %3066 = vmatpush2.bf16.msra.mxu0 %v2999
    %3067 = vmatprep.subr.bf16.mxu0 %v2998
    %3068 = vmatpush2.bf16.msra.mxu0 %v2997
    %3069 = vmatprep.subr.bf16.mxu0 %v2996
    %3070 = vmatpush2.bf16.msra.mxu0 %v2995
    %3071 = vmatprep.subr.bf16.mxu0 %v2994
    %3072 = vmatpush2.bf16.msra.mxu0 %v2993
    %3073 = vmatprep.mubr.bf16.mxu0 %v2880
    %3074 = vmatmul.mubr.bf16.gmra.mxu0 %v2879
    %v3075 = vpop.f32.mrf.mxu0
    %v3076 = vadd.f32 %v2314, %v3075
    %v3077 = vpop.f32.mrf.mxu0
    %v3078 = vadd.f32 %v2316, %v3077
    %v3079 = vpop.f32.mrf.mxu0
    %v3080 = vpop.f32.mrf.mxu0
    %3081 = vdwg.mxu0
    %v3082 = vmul.f32 %v3076, 0.2
    %v3083 = vmul.f32 %v3078, 0.2
    %v3084 = vmax.f32 %v3076, %v3082
    %v3085 = vmax.f32 %v3078, %v3083
    %s3086 = scalar_lea.vmem [#allocation8], 512
    %v3087 = vld [vmem:[%s3086] sm:$0xff]
    %v3088 = vld [vmem:[%s3086 + $0x8] sm:$0xff]
    %v3089 = vld [vmem:[%s3086 + $0x10] sm:$0xff]
    %v3090 = vld [vmem:[%s3086 + $0x18] sm:$0xff]
    %v3091 = vld [vmem:[%s3086 + $0x20] sm:$0xff]
    %v3092 = vld [vmem:[%s3086 + $0x28] sm:$0xff]
    %v3093 = vld [vmem:[%s3086 + $0x30] sm:$0xff]
    %v3094 = vld [vmem:[%s3086 + $0x38] sm:$0xff]
    %v3095 = vld [vmem:[%s3086 + $0x40] sm:$0xff]
    %v3096 = vld [vmem:[%s3086 + $0x48] sm:$0xff]
    %v3097 = vld [vmem:[%s3086 + $0x50] sm:$0xff]
    %v3098 = vld [vmem:[%s3086 + $0x58] sm:$0xff]
    %v3099 = vld [vmem:[%s3086 + $0x60] sm:$0xff]
    %v3100 = vld [vmem:[%s3086 + $0x68] sm:$0xff]
    %v3101 = vld [vmem:[%s3086 + $0x70] sm:$0xff]
    %v3102 = vld [vmem:[%s3086 + $0x78] sm:$0xff]
    %v3103 = vld [vmem:[%s3086 + $0x80] sm:$0xff]
    %v3104 = vld [vmem:[%s3086 + $0x88] sm:$0xff]
    %v3105 = vld [vmem:[%s3086 + $0x90] sm:$0xff]
    %v3106 = vld [vmem:[%s3086 + $0x98] sm:$0xff]
    %v3107 = vld [vmem:[%s3086 + $0xa0] sm:$0xff]
    %v3108 = vld [vmem:[%s3086 + $0xa8] sm:$0xff]
    %v3109 = vld [vmem:[%s3086 + $0xb0] sm:$0xff]
    %v3110 = vld [vmem:[%s3086 + $0xb8] sm:$0xff]
    %v3111 = vld [vmem:[%s3086 + $0xc0] sm:$0xff]
    %v3112 = vld [vmem:[%s3086 + $0xc8] sm:$0xff]
    %v3113 = vld [vmem:[%s3086 + $0xd0] sm:$0xff]
    %v3114 = vld [vmem:[%s3086 + $0xd8] sm:$0xff]
    %v3115 = vld [vmem:[%s3086 + $0xe0] sm:$0xff]
    %v3116 = vld [vmem:[%s3086 + $0xe8] sm:$0xff]
    %v3117 = vld [vmem:[%s3086 + $0xf0] sm:$0xff]
    %v3118 = vld [vmem:[%s3086 + $0xf8] sm:$0xff]
    %v3119 = vpack.c.bf16 %v3084, %v3084
    %v3120 = vpack.c.bf16 %v3085, %v3085
    %v3153 = vunpack.c.l.b16 %v3087
    %v3154 = vunpack.c.h.b16 %v3087
    %v3155 = vunpack.c.l.b16 %v3088
    %v3156 = vunpack.c.h.b16 %v3088
    %v3157 = vunpack.c.l.b16 %v3089
    %v3158 = vunpack.c.h.b16 %v3089
    %v3159 = vunpack.c.l.b16 %v3090
    %v3160 = vunpack.c.h.b16 %v3090
    %v3161 = vunpack.c.l.b16 %v3091
    %v3162 = vunpack.c.h.b16 %v3091
    %v3163 = vunpack.c.l.b16 %v3092
    %v3164 = vunpack.c.h.b16 %v3092
    %v3165 = vunpack.c.l.b16 %v3093
    %v3166 = vunpack.c.h.b16 %v3093
    %v3167 = vunpack.c.l.b16 %v3094
    %v3168 = vunpack.c.h.b16 %v3094
    %v3169 = vunpack.c.l.b16 %v3095
    %v3170 = vunpack.c.h.b16 %v3095
    %v3171 = vunpack.c.l.b16 %v3096
    %v3172 = vunpack.c.h.b16 %v3096
    %v3173 = vunpack.c.l.b16 %v3097
    %v3174 = vunpack.c.h.b16 %v3097
    %v3175 = vunpack.c.l.b16 %v3098
    %v3176 = vunpack.c.h.b16 %v3098
    %v3177 = vunpack.c.l.b16 %v3099
    %v3178 = vunpack.c.h.b16 %v3099
    %v3179 = vunpack.c.l.b16 %v3100
    %v3180 = vunpack.c.h.b16 %v3100
    %v3181 = vunpack.c.l.b16 %v3101
    %v3182 = vunpack.c.h.b16 %v3101
    %v3183 = vunpack.c.l.b16 %v3102
    %v3184 = vunpack.c.h.b16 %v3102
    %v3185 = vunpack.c.l.b16 %v3103
    %v3186 = vunpack.c.h.b16 %v3103
    %v3187 = vunpack.c.l.b16 %v3104
    %v3188 = vunpack.c.h.b16 %v3104
    %v3189 = vunpack.c.l.b16 %v3105
    %v3190 = vunpack.c.h.b16 %v3105
    %v3191 = vunpack.c.l.b16 %v3106
    %v3192 = vunpack.c.h.b16 %v3106
    %v3193 = vunpack.c.l.b16 %v3107
    %v3194 = vunpack.c.h.b16 %v3107
    %v3195 = vunpack.c.l.b16 %v3108
    %v3196 = vunpack.c.h.b16 %v3108
    %v3197 = vunpack.c.l.b16 %v3109
    %v3198 = vunpack.c.h.b16 %v3109
    %v3199 = vunpack.c.l.b16 %v3110
    %v3200 = vunpack.c.h.b16 %v3110
    %v3201 = vunpack.c.l.b16 %v3111
    %v3202 = vunpack.c.h.b16 %v3111
    %v3203 = vunpack.c.l.b16 %v3112
    %v3204 = vunpack.c.h.b16 %v3112
    %v3205 = vunpack.c.l.b16 %v3113
    %v3206 = vunpack.c.h.b16 %v3113
    %v3207 = vunpack.c.l.b16 %v3114
    %v3208 = vunpack.c.h.b16 %v3114
    %v3209 = vunpack.c.l.b16 %v3115
    %v3210 = vunpack.c.h.b16 %v3115
    %v3211 = vunpack.c.l.b16 %v3116
    %v3212 = vunpack.c.h.b16 %v3116
    %v3213 = vunpack.c.l.b16 %v3117
    %v3214 = vunpack.c.h.b16 %v3117
    %v3215 = vunpack.c.l.b16 %v3118
    %v3216 = vunpack.c.h.b16 %v3118
    %v3217 = vpack.c.b16 %v3155, %v3153
    %v3218 = vpack.c.b16 %v3156, %v3154
    %v3219 = vpack.c.b16 %v3159, %v3157
    %v3220 = vpack.c.b16 %v3160, %v3158
    %v3221 = vpack.c.b16 %v3163, %v3161
    %v3222 = vpack.c.b16 %v3164, %v3162
    %v3223 = vpack.c.b16 %v3167, %v3165
    %v3224 = vpack.c.b16 %v3168, %v3166
    %v3225 = vpack.c.b16 %v3171, %v3169
    %v3226 = vpack.c.b16 %v3172, %v3170
    %v3227 = vpack.c.b16 %v3175, %v3173
    %v3228 = vpack.c.b16 %v3176, %v3174
    %v3229 = vpack.c.b16 %v3179, %v3177
    %v3230 = vpack.c.b16 %v3180, %v3178
    %v3231 = vpack.c.b16 %v3183, %v3181
    %v3232 = vpack.c.b16 %v3184, %v3182
    %v3233 = vpack.c.b16 %v3187, %v3185
    %v3234 = vpack.c.b16 %v3188, %v3186
    %v3235 = vpack.c.b16 %v3191, %v3189
    %v3236 = vpack.c.b16 %v3192, %v3190
    %v3237 = vpack.c.b16 %v3195, %v3193
    %v3238 = vpack.c.b16 %v3196, %v3194
    %v3239 = vpack.c.b16 %v3199, %v3197
    %v3240 = vpack.c.b16 %v3200, %v3198
    %v3241 = vpack.c.b16 %v3203, %v3201
    %v3242 = vpack.c.b16 %v3204, %v3202
    %v3243 = vpack.c.b16 %v3207, %v3205
    %v3244 = vpack.c.b16 %v3208, %v3206
    %v3245 = vpack.c.b16 %v3211, %v3209
    %v3246 = vpack.c.b16 %v3212, %v3210
    %v3247 = vpack.c.b16 %v3215, %v3213
    %v3248 = vpack.c.b16 %v3216, %v3214
    %3281 = vmatprep.subr.bf16.mxu0 %v3232
    %3282 = vmatpush1.bf16.msra.mxu0 %v3231
    %3283 = vmatprep.subr.bf16.mxu0 %v3230
    %3284 = vmatpush1.bf16.msra.mxu0 %v3229
    %3285 = vmatprep.subr.bf16.mxu0 %v3228
    %3286 = vmatpush1.bf16.msra.mxu0 %v3227
    %3287 = vmatprep.subr.bf16.mxu0 %v3226
    %3288 = vmatpush1.bf16.msra.mxu0 %v3225
    %3289 = vmatprep.subr.bf16.mxu0 %v3224
    %3290 = vmatpush1.bf16.msra.mxu0 %v3223
    %3291 = vmatprep.subr.bf16.mxu0 %v3222
    %3292 = vmatpush1.bf16.msra.mxu0 %v3221
    %3293 = vmatprep.subr.bf16.mxu0 %v3220
    %3294 = vmatpush1.bf16.msra.mxu0 %v3219
    %3295 = vmatprep.subr.bf16.mxu0 %v3218
    %3296 = vmatpush1.bf16.msra.mxu0 %v3217
    %3297 = vmatprep.subr.bf16.mxu0 %v3248
    %3298 = vmatpush2.bf16.msra.mxu0 %v3247
    %3299 = vmatprep.subr.bf16.mxu0 %v3246
    %3300 = vmatpush2.bf16.msra.mxu0 %v3245
    %3301 = vmatprep.subr.bf16.mxu0 %v3244
    %3302 = vmatpush2.bf16.msra.mxu0 %v3243
    %3303 = vmatprep.subr.bf16.mxu0 %v3242
    %3304 = vmatpush2.bf16.msra.mxu0 %v3241
    %3305 = vmatprep.subr.bf16.mxu0 %v3240
    %3306 = vmatpush2.bf16.msra.mxu0 %v3239
    %3307 = vmatprep.subr.bf16.mxu0 %v3238
    %3308 = vmatpush2.bf16.msra.mxu0 %v3237
    %3309 = vmatprep.subr.bf16.mxu0 %v3236
    %3310 = vmatpush2.bf16.msra.mxu0 %v3235
    %3311 = vmatprep.subr.bf16.mxu0 %v3234
    %3312 = vmatpush2.bf16.msra.mxu0 %v3233
    %3313 = vmatprep.mubr.bf16.mxu0 %v3120
    %3314 = vmatmul.mubr.bf16.gmra.mxu0 %v3119
    %v3315 = vpop.f32.mrf.mxu0
    %v3316 = vadd.f32 %v2355, %v3315
    %v3317 = vpop.f32.mrf.mxu0
    %v3318 = vadd.f32 %v2357, %v3317
    %v3319 = vpop.f32.mrf.mxu0
    %v3320 = vpop.f32.mrf.mxu0
    %3321 = vdwg.mxu0
    %v3322 = vmul.f32 %v3316, 0.2
    %v3323 = vmul.f32 %v3318, 0.2
    %v3324 = vmax.f32 %v3316, %v3322
    %v3325 = vmax.f32 %v3318, %v3323
    %s3326 = scalar_lea.vmem [#allocation8], 768
    %v3327 = vld [vmem:[%s3326] sm:$0xff]
    %v3328 = vld [vmem:[%s3326 + $0x8] sm:$0xff]
    %v3329 = vld [vmem:[%s3326 + $0x10] sm:$0xff]
    %v3330 = vld [vmem:[%s3326 + $0x18] sm:$0xff]
    %v3331 = vld [vmem:[%s3326 + $0x20] sm:$0xff]
    %v3332 = vld [vmem:[%s3326 + $0x28] sm:$0xff]
    %v3333 = vld [vmem:[%s3326 + $0x30] sm:$0xff]
    %v3334 = vld [vmem:[%s3326 + $0x38] sm:$0xff]
    %v3335 = vld [vmem:[%s3326 + $0x40] sm:$0xff]
    %v3336 = vld [vmem:[%s3326 + $0x48] sm:$0xff]
    %v3337 = vld [vmem:[%s3326 + $0x50] sm:$0xff]
    %v3338 = vld [vmem:[%s3326 + $0x58] sm:$0xff]
    %v3339 = vld [vmem:[%s3326 + $0x60] sm:$0xff]
    %v3340 = vld [vmem:[%s3326 + $0x68] sm:$0xff]
    %v3341 = vld [vmem:[%s3326 + $0x70] sm:$0xff]
    %v3342 = vld [vmem:[%s3326 + $0x78] sm:$0xff]
    %v3343 = vld [vmem:[%s3326 + $0x80] sm:$0xff]
    %v3344 = vld [vmem:[%s3326 + $0x88] sm:$0xff]
    %v3345 = vld [vmem:[%s3326 + $0x90] sm:$0xff]
    %v3346 = vld [vmem:[%s3326 + $0x98] sm:$0xff]
    %v3347 = vld [vmem:[%s3326 + $0xa0] sm:$0xff]
    %v3348 = vld [vmem:[%s3326 + $0xa8] sm:$0xff]
    %v3349 = vld [vmem:[%s3326 + $0xb0] sm:$0xff]
    %v3350 = vld [vmem:[%s3326 + $0xb8] sm:$0xff]
    %v3351 = vld [vmem:[%s3326 + $0xc0] sm:$0xff]
    %v3352 = vld [vmem:[%s3326 + $0xc8] sm:$0xff]
    %v3353 = vld [vmem:[%s3326 + $0xd0] sm:$0xff]
    %v3354 = vld [vmem:[%s3326 + $0xd8] sm:$0xff]
    %v3355 = vld [vmem:[%s3326 + $0xe0] sm:$0xff]
    %v3356 = vld [vmem:[%s3326 + $0xe8] sm:$0xff]
    %v3357 = vld [vmem:[%s3326 + $0xf0] sm:$0xff]
    %v3358 = vld [vmem:[%s3326 + $0xf8] sm:$0xff]
    %v3359 = vpack.c.bf16 %v3324, %v3324
    %v3360 = vpack.c.bf16 %v3325, %v3325
    %v3393 = vunpack.c.l.b16 %v3327
    %v3394 = vunpack.c.h.b16 %v3327
    %v3395 = vunpack.c.l.b16 %v3328
    %v3396 = vunpack.c.h.b16 %v3328
    %v3397 = vunpack.c.l.b16 %v3329
    %v3398 = vunpack.c.h.b16 %v3329
    %v3399 = vunpack.c.l.b16 %v3330
    %v3400 = vunpack.c.h.b16 %v3330
    %v3401 = vunpack.c.l.b16 %v3331
    %v3402 = vunpack.c.h.b16 %v3331
    %v3403 = vunpack.c.l.b16 %v3332
    %v3404 = vunpack.c.h.b16 %v3332
    %v3405 = vunpack.c.l.b16 %v3333
    %v3406 = vunpack.c.h.b16 %v3333
    %v3407 = vunpack.c.l.b16 %v3334
    %v3408 = vunpack.c.h.b16 %v3334
    %v3409 = vunpack.c.l.b16 %v3335
    %v3410 = vunpack.c.h.b16 %v3335
    %v3411 = vunpack.c.l.b16 %v3336
    %v3412 = vunpack.c.h.b16 %v3336
    %v3413 = vunpack.c.l.b16 %v3337
    %v3414 = vunpack.c.h.b16 %v3337
    %v3415 = vunpack.c.l.b16 %v3338
    %v3416 = vunpack.c.h.b16 %v3338
    %v3417 = vunpack.c.l.b16 %v3339
    %v3418 = vunpack.c.h.b16 %v3339
    %v3419 = vunpack.c.l.b16 %v3340
    %v3420 = vunpack.c.h.b16 %v3340
    %v3421 = vunpack.c.l.b16 %v3341
    %v3422 = vunpack.c.h.b16 %v3341
    %v3423 = vunpack.c.l.b16 %v3342
    %v3424 = vunpack.c.h.b16 %v3342
    %v3425 = vunpack.c.l.b16 %v3343
    %v3426 = vunpack.c.h.b16 %v3343
    %v3427 = vunpack.c.l.b16 %v3344
    %v3428 = vunpack.c.h.b16 %v3344
    %v3429 = vunpack.c.l.b16 %v3345
    %v3430 = vunpack.c.h.b16 %v3345
    %v3431 = vunpack.c.l.b16 %v3346
    %v3432 = vunpack.c.h.b16 %v3346
    %v3433 = vunpack.c.l.b16 %v3347
    %v3434 = vunpack.c.h.b16 %v3347
    %v3435 = vunpack.c.l.b16 %v3348
    %v3436 = vunpack.c.h.b16 %v3348
    %v3437 = vunpack.c.l.b16 %v3349
    %v3438 = vunpack.c.h.b16 %v3349
    %v3439 = vunpack.c.l.b16 %v3350
    %v3440 = vunpack.c.h.b16 %v3350
    %v3441 = vunpack.c.l.b16 %v3351
    %v3442 = vunpack.c.h.b16 %v3351
    %v3443 = vunpack.c.l.b16 %v3352
    %v3444 = vunpack.c.h.b16 %v3352
    %v3445 = vunpack.c.l.b16 %v3353
    %v3446 = vunpack.c.h.b16 %v3353
    %v3447 = vunpack.c.l.b16 %v3354
    %v3448 = vunpack.c.h.b16 %v3354
    %v3449 = vunpack.c.l.b16 %v3355
    %v3450 = vunpack.c.h.b16 %v3355
    %v3451 = vunpack.c.l.b16 %v3356
    %v3452 = vunpack.c.h.b16 %v3356
    %v3453 = vunpack.c.l.b16 %v3357
    %v3454 = vunpack.c.h.b16 %v3357
    %v3455 = vunpack.c.l.b16 %v3358
    %v3456 = vunpack.c.h.b16 %v3358
    %v3457 = vpack.c.b16 %v3395, %v3393
    %v3458 = vpack.c.b16 %v3396, %v3394
    %v3459 = vpack.c.b16 %v3399, %v3397
    %v3460 = vpack.c.b16 %v3400, %v3398
    %v3461 = vpack.c.b16 %v3403, %v3401
    %v3462 = vpack.c.b16 %v3404, %v3402
    %v3463 = vpack.c.b16 %v3407, %v3405
    %v3464 = vpack.c.b16 %v3408, %v3406
    %v3465 = vpack.c.b16 %v3411, %v3409
    %v3466 = vpack.c.b16 %v3412, %v3410
    %v3467 = vpack.c.b16 %v3415, %v3413
    %v3468 = vpack.c.b16 %v3416, %v3414
    %v3469 = vpack.c.b16 %v3419, %v3417
    %v3470 = vpack.c.b16 %v3420, %v3418
    %v3471 = vpack.c.b16 %v3423, %v3421
    %v3472 = vpack.c.b16 %v3424, %v3422
    %v3473 = vpack.c.b16 %v3427, %v3425
    %v3474 = vpack.c.b16 %v3428, %v3426
    %v3475 = vpack.c.b16 %v3431, %v3429
    %v3476 = vpack.c.b16 %v3432, %v3430
    %v3477 = vpack.c.b16 %v3435, %v3433
    %v3478 = vpack.c.b16 %v3436, %v3434
    %v3479 = vpack.c.b16 %v3439, %v3437
    %v3480 = vpack.c.b16 %v3440, %v3438
    %v3481 = vpack.c.b16 %v3443, %v3441
    %v3482 = vpack.c.b16 %v3444, %v3442
    %v3483 = vpack.c.b16 %v3447, %v3445
    %v3484 = vpack.c.b16 %v3448, %v3446
    %v3485 = vpack.c.b16 %v3451, %v3449
    %v3486 = vpack.c.b16 %v3452, %v3450
    %v3487 = vpack.c.b16 %v3455, %v3453
    %v3488 = vpack.c.b16 %v3456, %v3454
    %3521 = vmatprep.subr.bf16.mxu0 %v3472
    %3522 = vmatpush1.bf16.msra.mxu0 %v3471
    %3523 = vmatprep.subr.bf16.mxu0 %v3470
    %3524 = vmatpush1.bf16.msra.mxu0 %v3469
    %3525 = vmatprep.subr.bf16.mxu0 %v3468
    %3526 = vmatpush1.bf16.msra.mxu0 %v3467
    %3527 = vmatprep.subr.bf16.mxu0 %v3466
    %3528 = vmatpush1.bf16.msra.mxu0 %v3465
    %3529 = vmatprep.subr.bf16.mxu0 %v3464
    %3530 = vmatpush1.bf16.msra.mxu0 %v3463
    %3531 = vmatprep.subr.bf16.mxu0 %v3462
    %3532 = vmatpush1.bf16.msra.mxu0 %v3461
    %3533 = vmatprep.subr.bf16.mxu0 %v3460
    %3534 = vmatpush1.bf16.msra.mxu0 %v3459
    %3535 = vmatprep.subr.bf16.mxu0 %v3458
    %3536 = vmatpush1.bf16.msra.mxu0 %v3457
    %3537 = vmatprep.subr.bf16.mxu0 %v3488
    %3538 = vmatpush2.bf16.msra.mxu0 %v3487
    %3539 = vmatprep.subr.bf16.mxu0 %v3486
    %3540 = vmatpush2.bf16.msra.mxu0 %v3485
    %3541 = vmatprep.subr.bf16.mxu0 %v3484
    %3542 = vmatpush2.bf16.msra.mxu0 %v3483
    %3543 = vmatprep.subr.bf16.mxu0 %v3482
    %3544 = vmatpush2.bf16.msra.mxu0 %v3481
    %3545 = vmatprep.subr.bf16.mxu0 %v3480
    %3546 = vmatpush2.bf16.msra.mxu0 %v3479
    %3547 = vmatprep.subr.bf16.mxu0 %v3478
    %3548 = vmatpush2.bf16.msra.mxu0 %v3477
    %3549 = vmatprep.subr.bf16.mxu0 %v3476
    %3550 = vmatpush2.bf16.msra.mxu0 %v3475
    %3551 = vmatprep.subr.bf16.mxu0 %v3474
    %3552 = vmatpush2.bf16.msra.mxu0 %v3473
    %3553 = vmatprep.mubr.bf16.mxu0 %v3360
    %3554 = vmatmul.mubr.bf16.gmra.mxu0 %v3359
    %v3555 = vpop.f32.mrf.mxu0
    %v3556 = vadd.f32 %v2396, %v3555
    %v3557 = vpop.f32.mrf.mxu0
    %v3558 = vadd.f32 %v2398, %v3557
    %v3559 = vpop.f32.mrf.mxu0
    %v3560 = vpop.f32.mrf.mxu0
    %3561 = vdwg.mxu0
    %v3562 = vmul.f32 %v3556, 0.2
    %v3563 = vmul.f32 %v3558, 0.2
    %v3564 = vmax.f32 %v3556, %v3562
    %v3565 = vmax.f32 %v3558, %v3563
    %s3566 = scalar_lea.vmem [#allocation8], 1024
    %v3567 = vld [vmem:[%s3566] sm:$0xff]
    %v3568 = vld [vmem:[%s3566 + $0x8] sm:$0xff]
    %v3569 = vld [vmem:[%s3566 + $0x10] sm:$0xff]
    %v3570 = vld [vmem:[%s3566 + $0x18] sm:$0xff]
    %v3571 = vld [vmem:[%s3566 + $0x20] sm:$0xff]
    %v3572 = vld [vmem:[%s3566 + $0x28] sm:$0xff]
    %v3573 = vld [vmem:[%s3566 + $0x30] sm:$0xff]
    %v3574 = vld [vmem:[%s3566 + $0x38] sm:$0xff]
    %v3575 = vld [vmem:[%s3566 + $0x40] sm:$0xff]
    %v3576 = vld [vmem:[%s3566 + $0x48] sm:$0xff]
    %v3577 = vld [vmem:[%s3566 + $0x50] sm:$0xff]
    %v3578 = vld [vmem:[%s3566 + $0x58] sm:$0xff]
    %v3579 = vld [vmem:[%s3566 + $0x60] sm:$0xff]
    %v3580 = vld [vmem:[%s3566 + $0x68] sm:$0xff]
    %v3581 = vld [vmem:[%s3566 + $0x70] sm:$0xff]
    %v3582 = vld [vmem:[%s3566 + $0x78] sm:$0xff]
    %v3583 = vld [vmem:[%s3566 + $0x80] sm:$0xff]
    %v3584 = vld [vmem:[%s3566 + $0x88] sm:$0xff]
    %v3585 = vld [vmem:[%s3566 + $0x90] sm:$0xff]
    %v3586 = vld [vmem:[%s3566 + $0x98] sm:$0xff]
    %v3587 = vld [vmem:[%s3566 + $0xa0] sm:$0xff]
    %v3588 = vld [vmem:[%s3566 + $0xa8] sm:$0xff]
    %v3589 = vld [vmem:[%s3566 + $0xb0] sm:$0xff]
    %v3590 = vld [vmem:[%s3566 + $0xb8] sm:$0xff]
    %v3591 = vld [vmem:[%s3566 + $0xc0] sm:$0xff]
    %v3592 = vld [vmem:[%s3566 + $0xc8] sm:$0xff]
    %v3593 = vld [vmem:[%s3566 + $0xd0] sm:$0xff]
    %v3594 = vld [vmem:[%s3566 + $0xd8] sm:$0xff]
    %v3595 = vld [vmem:[%s3566 + $0xe0] sm:$0xff]
    %v3596 = vld [vmem:[%s3566 + $0xe8] sm:$0xff]
    %v3597 = vld [vmem:[%s3566 + $0xf0] sm:$0xff]
    %v3598 = vld [vmem:[%s3566 + $0xf8] sm:$0xff]
    %v3599 = vpack.c.bf16 %v3564, %v3564
    %v3600 = vpack.c.bf16 %v3565, %v3565
    %v3633 = vunpack.c.l.b16 %v3567
    %v3634 = vunpack.c.h.b16 %v3567
    %v3635 = vunpack.c.l.b16 %v3568
    %v3636 = vunpack.c.h.b16 %v3568
    %v3637 = vunpack.c.l.b16 %v3569
    %v3638 = vunpack.c.h.b16 %v3569
    %v3639 = vunpack.c.l.b16 %v3570
    %v3640 = vunpack.c.h.b16 %v3570
    %v3641 = vunpack.c.l.b16 %v3571
    %v3642 = vunpack.c.h.b16 %v3571
    %v3643 = vunpack.c.l.b16 %v3572
    %v3644 = vunpack.c.h.b16 %v3572
    %v3645 = vunpack.c.l.b16 %v3573
    %v3646 = vunpack.c.h.b16 %v3573
    %v3647 = vunpack.c.l.b16 %v3574
    %v3648 = vunpack.c.h.b16 %v3574
    %v3649 = vunpack.c.l.b16 %v3575
    %v3650 = vunpack.c.h.b16 %v3575
    %v3651 = vunpack.c.l.b16 %v3576
    %v3652 = vunpack.c.h.b16 %v3576
    %v3653 = vunpack.c.l.b16 %v3577
    %v3654 = vunpack.c.h.b16 %v3577
    %v3655 = vunpack.c.l.b16 %v3578
    %v3656 = vunpack.c.h.b16 %v3578
    %v3657 = vunpack.c.l.b16 %v3579
    %v3658 = vunpack.c.h.b16 %v3579
    %v3659 = vunpack.c.l.b16 %v3580
    %v3660 = vunpack.c.h.b16 %v3580
    %v3661 = vunpack.c.l.b16 %v3581
    %v3662 = vunpack.c.h.b16 %v3581
    %v3663 = vunpack.c.l.b16 %v3582
    %v3664 = vunpack.c.h.b16 %v3582
    %v3665 = vunpack.c.l.b16 %v3583
    %v3666 = vunpack.c.h.b16 %v3583
    %v3667 = vunpack.c.l.b16 %v3584
    %v3668 = vunpack.c.h.b16 %v3584
    %v3669 = vunpack.c.l.b16 %v3585
    %v3670 = vunpack.c.h.b16 %v3585
    %v3671 = vunpack.c.l.b16 %v3586
    %v3672 = vunpack.c.h.b16 %v3586
    %v3673 = vunpack.c.l.b16 %v3587
    %v3674 = vunpack.c.h.b16 %v3587
    %v3675 = vunpack.c.l.b16 %v3588
    %v3676 = vunpack.c.h.b16 %v3588
    %v3677 = vunpack.c.l.b16 %v3589
    %v3678 = vunpack.c.h.b16 %v3589
    %v3679 = vunpack.c.l.b16 %v3590
    %v3680 = vunpack.c.h.b16 %v3590
    %v3681 = vunpack.c.l.b16 %v3591
    %v3682 = vunpack.c.h.b16 %v3591
    %v3683 = vunpack.c.l.b16 %v3592
    %v3684 = vunpack.c.h.b16 %v3592
    %v3685 = vunpack.c.l.b16 %v3593
    %v3686 = vunpack.c.h.b16 %v3593
    %v3687 = vunpack.c.l.b16 %v3594
    %v3688 = vunpack.c.h.b16 %v3594
    %v3689 = vunpack.c.l.b16 %v3595
    %v3690 = vunpack.c.h.b16 %v3595
    %v3691 = vunpack.c.l.b16 %v3596
    %v3692 = vunpack.c.h.b16 %v3596
    %v3693 = vunpack.c.l.b16 %v3597
    %v3694 = vunpack.c.h.b16 %v3597
    %v3695 = vunpack.c.l.b16 %v3598
    %v3696 = vunpack.c.h.b16 %v3598
    %v3697 = vpack.c.b16 %v3635, %v3633
    %v3698 = vpack.c.b16 %v3636, %v3634
    %v3699 = vpack.c.b16 %v3639, %v3637
    %v3700 = vpack.c.b16 %v3640, %v3638
    %v3701 = vpack.c.b16 %v3643, %v3641
    %v3702 = vpack.c.b16 %v3644, %v3642
    %v3703 = vpack.c.b16 %v3647, %v3645
    %v3704 = vpack.c.b16 %v3648, %v3646
    %v3705 = vpack.c.b16 %v3651, %v3649
    %v3706 = vpack.c.b16 %v3652, %v3650
    %v3707 = vpack.c.b16 %v3655, %v3653
    %v3708 = vpack.c.b16 %v3656, %v3654
    %v3709 = vpack.c.b16 %v3659, %v3657
    %v3710 = vpack.c.b16 %v3660, %v3658
    %v3711 = vpack.c.b16 %v3663, %v3661
    %v3712 = vpack.c.b16 %v3664, %v3662
    %v3713 = vpack.c.b16 %v3667, %v3665
    %v3714 = vpack.c.b16 %v3668, %v3666
    %v3715 = vpack.c.b16 %v3671, %v3669
    %v3716 = vpack.c.b16 %v3672, %v3670
    %v3717 = vpack.c.b16 %v3675, %v3673
    %v3718 = vpack.c.b16 %v3676, %v3674
    %v3719 = vpack.c.b16 %v3679, %v3677
    %v3720 = vpack.c.b16 %v3680, %v3678
    %v3721 = vpack.c.b16 %v3683, %v3681
    %v3722 = vpack.c.b16 %v3684, %v3682
    %v3723 = vpack.c.b16 %v3687, %v3685
    %v3724 = vpack.c.b16 %v3688, %v3686
    %v3725 = vpack.c.b16 %v3691, %v3689
    %v3726 = vpack.c.b16 %v3692, %v3690
    %v3727 = vpack.c.b16 %v3695, %v3693
    %v3728 = vpack.c.b16 %v3696, %v3694
    %3761 = vmatprep.subr.bf16.mxu0 %v3712
    %3762 = vmatpush1.bf16.msra.mxu0 %v3711
    %3763 = vmatprep.subr.bf16.mxu0 %v3710
    %3764 = vmatpush1.bf16.msra.mxu0 %v3709
    %3765 = vmatprep.subr.bf16.mxu0 %v3708
    %3766 = vmatpush1.bf16.msra.mxu0 %v3707
    %3767 = vmatprep.subr.bf16.mxu0 %v3706
    %3768 = vmatpush1.bf16.msra.mxu0 %v3705
    %3769 = vmatprep.subr.bf16.mxu0 %v3704
    %3770 = vmatpush1.bf16.msra.mxu0 %v3703
    %3771 = vmatprep.subr.bf16.mxu0 %v3702
    %3772 = vmatpush1.bf16.msra.mxu0 %v3701
    %3773 = vmatprep.subr.bf16.mxu0 %v3700
    %3774 = vmatpush1.bf16.msra.mxu0 %v3699
    %3775 = vmatprep.subr.bf16.mxu0 %v3698
    %3776 = vmatpush1.bf16.msra.mxu0 %v3697
    %3777 = vmatprep.subr.bf16.mxu0 %v3728
    %3778 = vmatpush2.bf16.msra.mxu0 %v3727
    %3779 = vmatprep.subr.bf16.mxu0 %v3726
    %3780 = vmatpush2.bf16.msra.mxu0 %v3725
    %3781 = vmatprep.subr.bf16.mxu0 %v3724
    %3782 = vmatpush2.bf16.msra.mxu0 %v3723
    %3783 = vmatprep.subr.bf16.mxu0 %v3722
    %3784 = vmatpush2.bf16.msra.mxu0 %v3721
    %3785 = vmatprep.subr.bf16.mxu0 %v3720
    %3786 = vmatpush2.bf16.msra.mxu0 %v3719
    %3787 = vmatprep.subr.bf16.mxu0 %v3718
    %3788 = vmatpush2.bf16.msra.mxu0 %v3717
    %3789 = vmatprep.subr.bf16.mxu0 %v3716
    %3790 = vmatpush2.bf16.msra.mxu0 %v3715
    %3791 = vmatprep.subr.bf16.mxu0 %v3714
    %3792 = vmatpush2.bf16.msra.mxu0 %v3713
    %3793 = vmatprep.mubr.bf16.mxu0 %v3600
    %3794 = vmatmul.mubr.bf16.gmra.mxu0 %v3599
    %v3795 = vpop.f32.mrf.mxu0
    %v3796 = vadd.f32 %v2437, %v3795
    %v3797 = vpop.f32.mrf.mxu0
    %v3798 = vadd.f32 %v2439, %v3797
    %v3799 = vpop.f32.mrf.mxu0
    %v3800 = vpop.f32.mrf.mxu0
    %3801 = vdwg.mxu0
    %v3802 = vmul.f32 %v3796, 0.2
    %v3803 = vmul.f32 %v3798, 0.2
    %v3804 = vmax.f32 %v3796, %v3802
    %v3805 = vmax.f32 %v3798, %v3803
    %s3806 = scalar_lea.vmem [#allocation8], 1280
    %v3807 = vld [vmem:[%s3806] sm:$0xff]
    %v3808 = vld [vmem:[%s3806 + $0x8] sm:$0xff]
    %v3809 = vld [vmem:[%s3806 + $0x10] sm:$0xff]
    %v3810 = vld [vmem:[%s3806 + $0x18] sm:$0xff]
    %v3811 = vld [vmem:[%s3806 + $0x20] sm:$0xff]
    %v3812 = vld [vmem:[%s3806 + $0x28] sm:$0xff]
    %v3813 = vld [vmem:[%s3806 + $0x30] sm:$0xff]
    %v3814 = vld [vmem:[%s3806 + $0x38] sm:$0xff]
    %v3815 = vld [vmem:[%s3806 + $0x40] sm:$0xff]
    %v3816 = vld [vmem:[%s3806 + $0x48] sm:$0xff]
    %v3817 = vld [vmem:[%s3806 + $0x50] sm:$0xff]
    %v3818 = vld [vmem:[%s3806 + $0x58] sm:$0xff]
    %v3819 = vld [vmem:[%s3806 + $0x60] sm:$0xff]
    %v3820 = vld [vmem:[%s3806 + $0x68] sm:$0xff]
    %v3821 = vld [vmem:[%s3806 + $0x70] sm:$0xff]
    %v3822 = vld [vmem:[%s3806 + $0x78] sm:$0xff]
    %v3823 = vld [vmem:[%s3806 + $0x80] sm:$0xff]
    %v3824 = vld [vmem:[%s3806 + $0x88] sm:$0xff]
    %v3825 = vld [vmem:[%s3806 + $0x90] sm:$0xff]
    %v3826 = vld [vmem:[%s3806 + $0x98] sm:$0xff]
    %v3827 = vld [vmem:[%s3806 + $0xa0] sm:$0xff]
    %v3828 = vld [vmem:[%s3806 + $0xa8] sm:$0xff]
    %v3829 = vld [vmem:[%s3806 + $0xb0] sm:$0xff]
    %v3830 = vld [vmem:[%s3806 + $0xb8] sm:$0xff]
    %v3831 = vld [vmem:[%s3806 + $0xc0] sm:$0xff]
    %v3832 = vld [vmem:[%s3806 + $0xc8] sm:$0xff]
    %v3833 = vld [vmem:[%s3806 + $0xd0] sm:$0xff]
    %v3834 = vld [vmem:[%s3806 + $0xd8] sm:$0xff]
    %v3835 = vld [vmem:[%s3806 + $0xe0] sm:$0xff]
    %v3836 = vld [vmem:[%s3806 + $0xe8] sm:$0xff]
    %v3837 = vld [vmem:[%s3806 + $0xf0] sm:$0xff]
    %v3838 = vld [vmem:[%s3806 + $0xf8] sm:$0xff]
    %v3839 = vpack.c.bf16 %v3804, %v3804
    %v3840 = vpack.c.bf16 %v3805, %v3805
    %v3873 = vunpack.c.l.b16 %v3807
    %v3874 = vunpack.c.h.b16 %v3807
    %v3875 = vunpack.c.l.b16 %v3808
    %v3876 = vunpack.c.h.b16 %v3808
    %v3877 = vunpack.c.l.b16 %v3809
    %v3878 = vunpack.c.h.b16 %v3809
    %v3879 = vunpack.c.l.b16 %v3810
    %v3880 = vunpack.c.h.b16 %v3810
    %v3881 = vunpack.c.l.b16 %v3811
    %v3882 = vunpack.c.h.b16 %v3811
    %v3883 = vunpack.c.l.b16 %v3812
    %v3884 = vunpack.c.h.b16 %v3812
    %v3885 = vunpack.c.l.b16 %v3813
    %v3886 = vunpack.c.h.b16 %v3813
    %v3887 = vunpack.c.l.b16 %v3814
    %v3888 = vunpack.c.h.b16 %v3814
    %v3889 = vunpack.c.l.b16 %v3815
    %v3890 = vunpack.c.h.b16 %v3815
    %v3891 = vunpack.c.l.b16 %v3816
    %v3892 = vunpack.c.h.b16 %v3816
    %v3893 = vunpack.c.l.b16 %v3817
    %v3894 = vunpack.c.h.b16 %v3817
    %v3895 = vunpack.c.l.b16 %v3818
    %v3896 = vunpack.c.h.b16 %v3818
    %v3897 = vunpack.c.l.b16 %v3819
    %v3898 = vunpack.c.h.b16 %v3819
    %v3899 = vunpack.c.l.b16 %v3820
    %v3900 = vunpack.c.h.b16 %v3820
    %v3901 = vunpack.c.l.b16 %v3821
    %v3902 = vunpack.c.h.b16 %v3821
    %v3903 = vunpack.c.l.b16 %v3822
    %v3904 = vunpack.c.h.b16 %v3822
    %v3905 = vunpack.c.l.b16 %v3823
    %v3906 = vunpack.c.h.b16 %v3823
    %v3907 = vunpack.c.l.b16 %v3824
    %v3908 = vunpack.c.h.b16 %v3824
    %v3909 = vunpack.c.l.b16 %v3825
    %v3910 = vunpack.c.h.b16 %v3825
    %v3911 = vunpack.c.l.b16 %v3826
    %v3912 = vunpack.c.h.b16 %v3826
    %v3913 = vunpack.c.l.b16 %v3827
    %v3914 = vunpack.c.h.b16 %v3827
    %v3915 = vunpack.c.l.b16 %v3828
    %v3916 = vunpack.c.h.b16 %v3828
    %v3917 = vunpack.c.l.b16 %v3829
    %v3918 = vunpack.c.h.b16 %v3829
    %v3919 = vunpack.c.l.b16 %v3830
    %v3920 = vunpack.c.h.b16 %v3830
    %v3921 = vunpack.c.l.b16 %v3831
    %v3922 = vunpack.c.h.b16 %v3831
    %v3923 = vunpack.c.l.b16 %v3832
    %v3924 = vunpack.c.h.b16 %v3832
    %v3925 = vunpack.c.l.b16 %v3833
    %v3926 = vunpack.c.h.b16 %v3833
    %v3927 = vunpack.c.l.b16 %v3834
    %v3928 = vunpack.c.h.b16 %v3834
    %v3929 = vunpack.c.l.b16 %v3835
    %v3930 = vunpack.c.h.b16 %v3835
    %v3931 = vunpack.c.l.b16 %v3836
    %v3932 = vunpack.c.h.b16 %v3836
    %v3933 = vunpack.c.l.b16 %v3837
    %v3934 = vunpack.c.h.b16 %v3837
    %v3935 = vunpack.c.l.b16 %v3838
    %v3936 = vunpack.c.h.b16 %v3838
    %v3937 = vpack.c.b16 %v3875, %v3873
    %v3938 = vpack.c.b16 %v3876, %v3874
    %v3939 = vpack.c.b16 %v3879, %v3877
    %v3940 = vpack.c.b16 %v3880, %v3878
    %v3941 = vpack.c.b16 %v3883, %v3881
    %v3942 = vpack.c.b16 %v3884, %v3882
    %v3943 = vpack.c.b16 %v3887, %v3885
    %v3944 = vpack.c.b16 %v3888, %v3886
    %v3945 = vpack.c.b16 %v3891, %v3889
    %v3946 = vpack.c.b16 %v3892, %v3890
    %v3947 = vpack.c.b16 %v3895, %v3893
    %v3948 = vpack.c.b16 %v3896, %v3894
    %v3949 = vpack.c.b16 %v3899, %v3897
    %v3950 = vpack.c.b16 %v3900, %v3898
    %v3951 = vpack.c.b16 %v3903, %v3901
    %v3952 = vpack.c.b16 %v3904, %v3902
    %v3953 = vpack.c.b16 %v3907, %v3905
    %v3954 = vpack.c.b16 %v3908, %v3906
    %v3955 = vpack.c.b16 %v3911, %v3909
    %v3956 = vpack.c.b16 %v3912, %v3910
    %v3957 = vpack.c.b16 %v3915, %v3913
    %v3958 = vpack.c.b16 %v3916, %v3914
    %v3959 = vpack.c.b16 %v3919, %v3917
    %v3960 = vpack.c.b16 %v3920, %v3918
    %v3961 = vpack.c.b16 %v3923, %v3921
    %v3962 = vpack.c.b16 %v3924, %v3922
    %v3963 = vpack.c.b16 %v3927, %v3925
    %v3964 = vpack.c.b16 %v3928, %v3926
    %v3965 = vpack.c.b16 %v3931, %v3929
    %v3966 = vpack.c.b16 %v3932, %v3930
    %v3967 = vpack.c.b16 %v3935, %v3933
    %v3968 = vpack.c.b16 %v3936, %v3934
    %4001 = vmatprep.subr.bf16.mxu0 %v3952
    %4002 = vmatpush1.bf16.msra.mxu0 %v3951
    %4003 = vmatprep.subr.bf16.mxu0 %v3950
    %4004 = vmatpush1.bf16.msra.mxu0 %v3949
    %4005 = vmatprep.subr.bf16.mxu0 %v3948
    %4006 = vmatpush1.bf16.msra.mxu0 %v3947
    %4007 = vmatprep.subr.bf16.mxu0 %v3946
    %4008 = vmatpush1.bf16.msra.mxu0 %v3945
    %4009 = vmatprep.subr.bf16.mxu0 %v3944
    %4010 = vmatpush1.bf16.msra.mxu0 %v3943
    %4011 = vmatprep.subr.bf16.mxu0 %v3942
    %4012 = vmatpush1.bf16.msra.mxu0 %v3941
    %4013 = vmatprep.subr.bf16.mxu0 %v3940
    %4014 = vmatpush1.bf16.msra.mxu0 %v3939
    %4015 = vmatprep.subr.bf16.mxu0 %v3938
    %4016 = vmatpush1.bf16.msra.mxu0 %v3937
    %4017 = vmatprep.subr.bf16.mxu0 %v3968
    %4018 = vmatpush2.bf16.msra.mxu0 %v3967
    %4019 = vmatprep.subr.bf16.mxu0 %v3966
    %4020 = vmatpush2.bf16.msra.mxu0 %v3965
    %4021 = vmatprep.subr.bf16.mxu0 %v3964
    %4022 = vmatpush2.bf16.msra.mxu0 %v3963
    %4023 = vmatprep.subr.bf16.mxu0 %v3962
    %4024 = vmatpush2.bf16.msra.mxu0 %v3961
    %4025 = vmatprep.subr.bf16.mxu0 %v3960
    %4026 = vmatpush2.bf16.msra.mxu0 %v3959
    %4027 = vmatprep.subr.bf16.mxu0 %v3958
    %4028 = vmatpush2.bf16.msra.mxu0 %v3957
    %4029 = vmatprep.subr.bf16.mxu0 %v3956
    %4030 = vmatpush2.bf16.msra.mxu0 %v3955
    %4031 = vmatprep.subr.bf16.mxu0 %v3954
    %4032 = vmatpush2.bf16.msra.mxu0 %v3953
    %4033 = vmatprep.mubr.bf16.mxu0 %v3840
    %4034 = vmatmul.mubr.bf16.gmra.mxu0 %v3839
    %v4035 = vpop.f32.mrf.mxu0
    %v4036 = vadd.f32 %v2478, %v4035
    %v4037 = vpop.f32.mrf.mxu0
    %v4038 = vadd.f32 %v2480, %v4037
    %v4039 = vpop.f32.mrf.mxu0
    %v4040 = vpop.f32.mrf.mxu0
    %4041 = vdwg.mxu0
    %v4042 = vmul.f32 %v4036, 0.2
    %v4043 = vmul.f32 %v4038, 0.2
    %v4044 = vmax.f32 %v4036, %v4042
    %v4045 = vmax.f32 %v4038, %v4043
    %s4046 = scalar_lea.vmem [#allocation8], 1536
    %v4047 = vld [vmem:[%s4046] sm:$0xff]
    %v4048 = vld [vmem:[%s4046 + $0x8] sm:$0xff]
    %v4049 = vld [vmem:[%s4046 + $0x10] sm:$0xff]
    %v4050 = vld [vmem:[%s4046 + $0x18] sm:$0xff]
    %v4051 = vld [vmem:[%s4046 + $0x20] sm:$0xff]
    %v4052 = vld [vmem:[%s4046 + $0x28] sm:$0xff]
    %v4053 = vld [vmem:[%s4046 + $0x30] sm:$0xff]
    %v4054 = vld [vmem:[%s4046 + $0x38] sm:$0xff]
    %v4055 = vld [vmem:[%s4046 + $0x40] sm:$0xff]
    %v4056 = vld [vmem:[%s4046 + $0x48] sm:$0xff]
    %v4057 = vld [vmem:[%s4046 + $0x50] sm:$0xff]
    %v4058 = vld [vmem:[%s4046 + $0x58] sm:$0xff]
    %v4059 = vld [vmem:[%s4046 + $0x60] sm:$0xff]
    %v4060 = vld [vmem:[%s4046 + $0x68] sm:$0xff]
    %v4061 = vld [vmem:[%s4046 + $0x70] sm:$0xff]
    %v4062 = vld [vmem:[%s4046 + $0x78] sm:$0xff]
    %v4063 = vld [vmem:[%s4046 + $0x80] sm:$0xff]
    %v4064 = vld [vmem:[%s4046 + $0x88] sm:$0xff]
    %v4065 = vld [vmem:[%s4046 + $0x90] sm:$0xff]
    %v4066 = vld [vmem:[%s4046 + $0x98] sm:$0xff]
    %v4067 = vld [vmem:[%s4046 + $0xa0] sm:$0xff]
    %v4068 = vld [vmem:[%s4046 + $0xa8] sm:$0xff]
    %v4069 = vld [vmem:[%s4046 + $0xb0] sm:$0xff]
    %v4070 = vld [vmem:[%s4046 + $0xb8] sm:$0xff]
    %v4071 = vld [vmem:[%s4046 + $0xc0] sm:$0xff]
    %v4072 = vld [vmem:[%s4046 + $0xc8] sm:$0xff]
    %v4073 = vld [vmem:[%s4046 + $0xd0] sm:$0xff]
    %v4074 = vld [vmem:[%s4046 + $0xd8] sm:$0xff]
    %v4075 = vld [vmem:[%s4046 + $0xe0] sm:$0xff]
    %v4076 = vld [vmem:[%s4046 + $0xe8] sm:$0xff]
    %v4077 = vld [vmem:[%s4046 + $0xf0] sm:$0xff]
    %v4078 = vld [vmem:[%s4046 + $0xf8] sm:$0xff]
    %v4079 = vpack.c.bf16 %v4044, %v4044
    %v4080 = vpack.c.bf16 %v4045, %v4045
    %v4113 = vunpack.c.l.b16 %v4047
    %v4114 = vunpack.c.h.b16 %v4047
    %v4115 = vunpack.c.l.b16 %v4048
    %v4116 = vunpack.c.h.b16 %v4048
    %v4117 = vunpack.c.l.b16 %v4049
    %v4118 = vunpack.c.h.b16 %v4049
    %v4119 = vunpack.c.l.b16 %v4050
    %v4120 = vunpack.c.h.b16 %v4050
    %v4121 = vunpack.c.l.b16 %v4051
    %v4122 = vunpack.c.h.b16 %v4051
    %v4123 = vunpack.c.l.b16 %v4052
    %v4124 = vunpack.c.h.b16 %v4052
    %v4125 = vunpack.c.l.b16 %v4053
    %v4126 = vunpack.c.h.b16 %v4053
    %v4127 = vunpack.c.l.b16 %v4054
    %v4128 = vunpack.c.h.b16 %v4054
    %v4129 = vunpack.c.l.b16 %v4055
    %v4130 = vunpack.c.h.b16 %v4055
    %v4131 = vunpack.c.l.b16 %v4056
    %v4132 = vunpack.c.h.b16 %v4056
    %v4133 = vunpack.c.l.b16 %v4057
    %v4134 = vunpack.c.h.b16 %v4057
    %v4135 = vunpack.c.l.b16 %v4058
    %v4136 = vunpack.c.h.b16 %v4058
    %v4137 = vunpack.c.l.b16 %v4059
    %v4138 = vunpack.c.h.b16 %v4059
    %v4139 = vunpack.c.l.b16 %v4060
    %v4140 = vunpack.c.h.b16 %v4060
    %v4141 = vunpack.c.l.b16 %v4061
    %v4142 = vunpack.c.h.b16 %v4061
    %v4143 = vunpack.c.l.b16 %v4062
    %v4144 = vunpack.c.h.b16 %v4062
    %v4145 = vunpack.c.l.b16 %v4063
    %v4146 = vunpack.c.h.b16 %v4063
    %v4147 = vunpack.c.l.b16 %v4064
    %v4148 = vunpack.c.h.b16 %v4064
    %v4149 = vunpack.c.l.b16 %v4065
    %v4150 = vunpack.c.h.b16 %v4065
    %v4151 = vunpack.c.l.b16 %v4066
    %v4152 = vunpack.c.h.b16 %v4066
    %v4153 = vunpack.c.l.b16 %v4067
    %v4154 = vunpack.c.h.b16 %v4067
    %v4155 = vunpack.c.l.b16 %v4068
    %v4156 = vunpack.c.h.b16 %v4068
    %v4157 = vunpack.c.l.b16 %v4069
    %v4158 = vunpack.c.h.b16 %v4069
    %v4159 = vunpack.c.l.b16 %v4070
    %v4160 = vunpack.c.h.b16 %v4070
    %v4161 = vunpack.c.l.b16 %v4071
    %v4162 = vunpack.c.h.b16 %v4071
    %v4163 = vunpack.c.l.b16 %v4072
    %v4164 = vunpack.c.h.b16 %v4072
    %v4165 = vunpack.c.l.b16 %v4073
    %v4166 = vunpack.c.h.b16 %v4073
    %v4167 = vunpack.c.l.b16 %v4074
    %v4168 = vunpack.c.h.b16 %v4074
    %v4169 = vunpack.c.l.b16 %v4075
    %v4170 = vunpack.c.h.b16 %v4075
    %v4171 = vunpack.c.l.b16 %v4076
    %v4172 = vunpack.c.h.b16 %v4076
    %v4173 = vunpack.c.l.b16 %v4077
    %v4174 = vunpack.c.h.b16 %v4077
    %v4175 = vunpack.c.l.b16 %v4078
    %v4176 = vunpack.c.h.b16 %v4078
    %v4177 = vpack.c.b16 %v4115, %v4113
    %v4178 = vpack.c.b16 %v4116, %v4114
    %v4179 = vpack.c.b16 %v4119, %v4117
    %v4180 = vpack.c.b16 %v4120, %v4118
    %v4181 = vpack.c.b16 %v4123, %v4121
    %v4182 = vpack.c.b16 %v4124, %v4122
    %v4183 = vpack.c.b16 %v4127, %v4125
    %v4184 = vpack.c.b16 %v4128, %v4126
    %v4185 = vpack.c.b16 %v4131, %v4129
    %v4186 = vpack.c.b16 %v4132, %v4130
    %v4187 = vpack.c.b16 %v4135, %v4133
    %v4188 = vpack.c.b16 %v4136, %v4134
    %v4189 = vpack.c.b16 %v4139, %v4137
    %v4190 = vpack.c.b16 %v4140, %v4138
    %v4191 = vpack.c.b16 %v4143, %v4141
    %v4192 = vpack.c.b16 %v4144, %v4142
    %v4193 = vpack.c.b16 %v4147, %v4145
    %v4194 = vpack.c.b16 %v4148, %v4146
    %v4195 = vpack.c.b16 %v4151, %v4149
    %v4196 = vpack.c.b16 %v4152, %v4150
    %v4197 = vpack.c.b16 %v4155, %v4153
    %v4198 = vpack.c.b16 %v4156, %v4154
    %v4199 = vpack.c.b16 %v4159, %v4157
    %v4200 = vpack.c.b16 %v4160, %v4158
    %v4201 = vpack.c.b16 %v4163, %v4161
    %v4202 = vpack.c.b16 %v4164, %v4162
    %v4203 = vpack.c.b16 %v4167, %v4165
    %v4204 = vpack.c.b16 %v4168, %v4166
    %v4205 = vpack.c.b16 %v4171, %v4169
    %v4206 = vpack.c.b16 %v4172, %v4170
    %v4207 = vpack.c.b16 %v4175, %v4173
    %v4208 = vpack.c.b16 %v4176, %v4174
    %4241 = vmatprep.subr.bf16.mxu0 %v4192
    %4242 = vmatpush1.bf16.msra.mxu0 %v4191
    %4243 = vmatprep.subr.bf16.mxu0 %v4190
    %4244 = vmatpush1.bf16.msra.mxu0 %v4189
    %4245 = vmatprep.subr.bf16.mxu0 %v4188
    %4246 = vmatpush1.bf16.msra.mxu0 %v4187
    %4247 = vmatprep.subr.bf16.mxu0 %v4186
    %4248 = vmatpush1.bf16.msra.mxu0 %v4185
    %4249 = vmatprep.subr.bf16.mxu0 %v4184
    %4250 = vmatpush1.bf16.msra.mxu0 %v4183
    %4251 = vmatprep.subr.bf16.mxu0 %v4182
    %4252 = vmatpush1.bf16.msra.mxu0 %v4181
    %4253 = vmatprep.subr.bf16.mxu0 %v4180
    %4254 = vmatpush1.bf16.msra.mxu0 %v4179
    %4255 = vmatprep.subr.bf16.mxu0 %v4178
    %4256 = vmatpush1.bf16.msra.mxu0 %v4177
    %4257 = vmatprep.subr.bf16.mxu0 %v4208
    %4258 = vmatpush2.bf16.msra.mxu0 %v4207
    %4259 = vmatprep.subr.bf16.mxu0 %v4206
    %4260 = vmatpush2.bf16.msra.mxu0 %v4205
    %4261 = vmatprep.subr.bf16.mxu0 %v4204
    %4262 = vmatpush2.bf16.msra.mxu0 %v4203
    %4263 = vmatprep.subr.bf16.mxu0 %v4202
    %4264 = vmatpush2.bf16.msra.mxu0 %v4201
    %4265 = vmatprep.subr.bf16.mxu0 %v4200
    %4266 = vmatpush2.bf16.msra.mxu0 %v4199
    %4267 = vmatprep.subr.bf16.mxu0 %v4198
    %4268 = vmatpush2.bf16.msra.mxu0 %v4197
    %4269 = vmatprep.subr.bf16.mxu0 %v4196
    %4270 = vmatpush2.bf16.msra.mxu0 %v4195
    %4271 = vmatprep.subr.bf16.mxu0 %v4194
    %4272 = vmatpush2.bf16.msra.mxu0 %v4193
    %4273 = vmatprep.mubr.bf16.mxu0 %v4080
    %4274 = vmatmul.mubr.bf16.gmra.mxu0 %v4079
    %v4275 = vpop.f32.mrf.mxu0
    %v4276 = vadd.f32 %v2519, %v4275
    %v4277 = vpop.f32.mrf.mxu0
    %v4278 = vadd.f32 %v2521, %v4277
    %v4279 = vpop.f32.mrf.mxu0
    %v4280 = vpop.f32.mrf.mxu0
    %4281 = vdwg.mxu0
    %v4282 = vmul.f32 %v4276, 0.2
    %v4283 = vmul.f32 %v4278, 0.2
    %v4284 = vmax.f32 %v4276, %v4282
    %v4285 = vmax.f32 %v4278, %v4283
    %v4286 = vld [vmem:[#allocation10] sm:$0xff]
    %v4287 = vld [vmem:[#allocation10 + $0x8] sm:$0xff]
    %v4288 = vld [vmem:[#allocation10 + $0x10] sm:$0xff]
    %v4289 = vld [vmem:[#allocation10 + $0x18] sm:$0xff]
    %v4290 = vld [vmem:[#allocation10 + $0x20] sm:$0xff]
    %v4291 = vld [vmem:[#allocation10 + $0x28] sm:$0xff]
    %v4292 = vld [vmem:[#allocation10 + $0x30] sm:$0xff]
    %v4293 = vld [vmem:[#allocation10 + $0x38] sm:$0xff]
    %v4294 = vld [vmem:[#allocation10 + $0x40] sm:$0xff]
    %v4295 = vld [vmem:[#allocation10 + $0x48] sm:$0xff]
    %v4296 = vld [vmem:[#allocation10 + $0x50] sm:$0xff]
    %v4297 = vld [vmem:[#allocation10 + $0x58] sm:$0xff]
    %v4298 = vld [vmem:[#allocation10 + $0x60] sm:$0xff]
    %v4299 = vld [vmem:[#allocation10 + $0x68] sm:$0xff]
    %v4300 = vld [vmem:[#allocation10 + $0x70] sm:$0xff]
    %v4301 = vld [vmem:[#allocation10 + $0x78] sm:$0xff]
    %v4302 = vld [vmem:[#allocation10 + $0x80] sm:$0xff]
    %v4303 = vld [vmem:[#allocation10 + $0x88] sm:$0xff]
    %v4304 = vld [vmem:[#allocation10 + $0x90] sm:$0xff]
    %v4305 = vld [vmem:[#allocation10 + $0x98] sm:$0xff]
    %v4306 = vld [vmem:[#allocation10 + $0xa0] sm:$0xff]
    %v4307 = vld [vmem:[#allocation10 + $0xa8] sm:$0xff]
    %v4308 = vld [vmem:[#allocation10 + $0xb0] sm:$0xff]
    %v4309 = vld [vmem:[#allocation10 + $0xb8] sm:$0xff]
    %v4310 = vld [vmem:[#allocation10 + $0xc0] sm:$0xff]
    %v4311 = vld [vmem:[#allocation10 + $0xc8] sm:$0xff]
    %v4312 = vld [vmem:[#allocation10 + $0xd0] sm:$0xff]
    %v4313 = vld [vmem:[#allocation10 + $0xd8] sm:$0xff]
    %v4314 = vld [vmem:[#allocation10 + $0xe0] sm:$0xff]
    %v4315 = vld [vmem:[#allocation10 + $0xe8] sm:$0xff]
    %v4316 = vld [vmem:[#allocation10 + $0xf0] sm:$0xff]
    %v4317 = vld [vmem:[#allocation10 + $0xf8] sm:$0xff]
    %v4318 = vld [vmem:[#allocation10 + $0x100] sm:$0xff]
    %v4319 = vld [vmem:[#allocation10 + $0x108] sm:$0xff]
    %v4320 = vld [vmem:[#allocation10 + $0x110] sm:$0xff]
    %v4321 = vld [vmem:[#allocation10 + $0x118] sm:$0xff]
    %v4322 = vld [vmem:[#allocation10 + $0x120] sm:$0xff]
    %v4323 = vld [vmem:[#allocation10 + $0x128] sm:$0xff]
    %v4324 = vld [vmem:[#allocation10 + $0x130] sm:$0xff]
    %v4325 = vld [vmem:[#allocation10 + $0x138] sm:$0xff]
    %v4326 = vld [vmem:[#allocation10 + $0x140] sm:$0xff]
    %v4327 = vld [vmem:[#allocation10 + $0x148] sm:$0xff]
    %v4328 = vld [vmem:[#allocation10 + $0x150] sm:$0xff]
    %v4329 = vld [vmem:[#allocation10 + $0x158] sm:$0xff]
    %v4330 = vld [vmem:[#allocation10 + $0x160] sm:$0xff]
    %v4331 = vld [vmem:[#allocation10 + $0x168] sm:$0xff]
    %v4332 = vld [vmem:[#allocation10 + $0x170] sm:$0xff]
    %v4333 = vld [vmem:[#allocation10 + $0x178] sm:$0xff]
    %v4334 = vld [vmem:[#allocation10 + $0x180] sm:$0xff]
    %v4335 = vld [vmem:[#allocation10 + $0x188] sm:$0xff]
    %v4336 = vld [vmem:[#allocation10 + $0x190] sm:$0xff]
    %v4337 = vld [vmem:[#allocation10 + $0x198] sm:$0xff]
    %v4338 = vld [vmem:[#allocation10 + $0x1a0] sm:$0xff]
    %v4339 = vld [vmem:[#allocation10 + $0x1a8] sm:$0xff]
    %v4340 = vld [vmem:[#allocation10 + $0x1b0] sm:$0xff]
    %v4341 = vld [vmem:[#allocation10 + $0x1b8] sm:$0xff]
    %v4342 = vld [vmem:[#allocation10 + $0x1c0] sm:$0xff]
    %v4343 = vld [vmem:[#allocation10 + $0x1c8] sm:$0xff]
    %v4344 = vld [vmem:[#allocation10 + $0x1d0] sm:$0xff]
    %v4345 = vld [vmem:[#allocation10 + $0x1d8] sm:$0xff]
    %v4346 = vld [vmem:[#allocation10 + $0x1e0] sm:$0xff]
    %v4347 = vld [vmem:[#allocation10 + $0x1e8] sm:$0xff]
    %v4348 = vld [vmem:[#allocation10 + $0x1f0] sm:$0xff]
    %v4349 = vld [vmem:[#allocation10 + $0x1f8] sm:$0xff]
    %v4350 = vpack.c.bf16 %v4284, %v4284
    %v4351 = vpack.c.bf16 %v4285, %v4285
    %v4416 = vunpack.c.l.b16 %v4286
    %v4417 = vunpack.c.h.b16 %v4286
    %v4418 = vunpack.c.l.b16 %v4287
    %v4419 = vunpack.c.h.b16 %v4287
    %v4420 = vunpack.c.l.b16 %v4288
    %v4421 = vunpack.c.h.b16 %v4288
    %v4422 = vunpack.c.l.b16 %v4289
    %v4423 = vunpack.c.h.b16 %v4289
    %v4424 = vunpack.c.l.b16 %v4290
    %v4425 = vunpack.c.h.b16 %v4290
    %v4426 = vunpack.c.l.b16 %v4291
    %v4427 = vunpack.c.h.b16 %v4291
    %v4428 = vunpack.c.l.b16 %v4292
    %v4429 = vunpack.c.h.b16 %v4292
    %v4430 = vunpack.c.l.b16 %v4293
    %v4431 = vunpack.c.h.b16 %v4293
    %v4432 = vunpack.c.l.b16 %v4294
    %v4433 = vunpack.c.h.b16 %v4294
    %v4434 = vunpack.c.l.b16 %v4295
    %v4435 = vunpack.c.h.b16 %v4295
    %v4436 = vunpack.c.l.b16 %v4296
    %v4437 = vunpack.c.h.b16 %v4296
    %v4438 = vunpack.c.l.b16 %v4297
    %v4439 = vunpack.c.h.b16 %v4297
    %v4440 = vunpack.c.l.b16 %v4298
    %v4441 = vunpack.c.h.b16 %v4298
    %v4442 = vunpack.c.l.b16 %v4299
    %v4443 = vunpack.c.h.b16 %v4299
    %v4444 = vunpack.c.l.b16 %v4300
    %v4445 = vunpack.c.h.b16 %v4300
    %v4446 = vunpack.c.l.b16 %v4301
    %v4447 = vunpack.c.h.b16 %v4301
    %v4448 = vunpack.c.l.b16 %v4302
    %v4449 = vunpack.c.h.b16 %v4302
    %v4450 = vunpack.c.l.b16 %v4303
    %v4451 = vunpack.c.h.b16 %v4303
    %v4452 = vunpack.c.l.b16 %v4304
    %v4453 = vunpack.c.h.b16 %v4304
    %v4454 = vunpack.c.l.b16 %v4305
    %v4455 = vunpack.c.h.b16 %v4305
    %v4456 = vunpack.c.l.b16 %v4306
    %v4457 = vunpack.c.h.b16 %v4306
    %v4458 = vunpack.c.l.b16 %v4307
    %v4459 = vunpack.c.h.b16 %v4307
    %v4460 = vunpack.c.l.b16 %v4308
    %v4461 = vunpack.c.h.b16 %v4308
    %v4462 = vunpack.c.l.b16 %v4309
    %v4463 = vunpack.c.h.b16 %v4309
    %v4464 = vunpack.c.l.b16 %v4310
    %v4465 = vunpack.c.h.b16 %v4310
    %v4466 = vunpack.c.l.b16 %v4311
    %v4467 = vunpack.c.h.b16 %v4311
    %v4468 = vunpack.c.l.b16 %v4312
    %v4469 = vunpack.c.h.b16 %v4312
    %v4470 = vunpack.c.l.b16 %v4313
    %v4471 = vunpack.c.h.b16 %v4313
    %v4472 = vunpack.c.l.b16 %v4314
    %v4473 = vunpack.c.h.b16 %v4314
    %v4474 = vunpack.c.l.b16 %v4315
    %v4475 = vunpack.c.h.b16 %v4315
    %v4476 = vunpack.c.l.b16 %v4316
    %v4477 = vunpack.c.h.b16 %v4316
    %v4478 = vunpack.c.l.b16 %v4317
    %v4479 = vunpack.c.h.b16 %v4317
    %v4480 = vunpack.c.l.b16 %v4318
    %v4481 = vunpack.c.h.b16 %v4318
    %v4482 = vunpack.c.l.b16 %v4319
    %v4483 = vunpack.c.h.b16 %v4319
    %v4484 = vunpack.c.l.b16 %v4320
    %v4485 = vunpack.c.h.b16 %v4320
    %v4486 = vunpack.c.l.b16 %v4321
    %v4487 = vunpack.c.h.b16 %v4321
    %v4488 = vunpack.c.l.b16 %v4322
    %v4489 = vunpack.c.h.b16 %v4322
    %v4490 = vunpack.c.l.b16 %v4323
    %v4491 = vunpack.c.h.b16 %v4323
    %v4492 = vunpack.c.l.b16 %v4324
    %v4493 = vunpack.c.h.b16 %v4324
    %v4494 = vunpack.c.l.b16 %v4325
    %v4495 = vunpack.c.h.b16 %v4325
    %v4496 = vunpack.c.l.b16 %v4326
    %v4497 = vunpack.c.h.b16 %v4326
    %v4498 = vunpack.c.l.b16 %v4327
    %v4499 = vunpack.c.h.b16 %v4327
    %v4500 = vunpack.c.l.b16 %v4328
    %v4501 = vunpack.c.h.b16 %v4328
    %v4502 = vunpack.c.l.b16 %v4329
    %v4503 = vunpack.c.h.b16 %v4329
    %v4504 = vunpack.c.l.b16 %v4330
    %v4505 = vunpack.c.h.b16 %v4330
    %v4506 = vunpack.c.l.b16 %v4331
    %v4507 = vunpack.c.h.b16 %v4331
    %v4508 = vunpack.c.l.b16 %v4332
    %v4509 = vunpack.c.h.b16 %v4332
    %v4510 = vunpack.c.l.b16 %v4333
    %v4511 = vunpack.c.h.b16 %v4333
    %v4512 = vunpack.c.l.b16 %v4334
    %v4513 = vunpack.c.h.b16 %v4334
    %v4514 = vunpack.c.l.b16 %v4335
    %v4515 = vunpack.c.h.b16 %v4335
    %v4516 = vunpack.c.l.b16 %v4336
    %v4517 = vunpack.c.h.b16 %v4336
    %v4518 = vunpack.c.l.b16 %v4337
    %v4519 = vunpack.c.h.b16 %v4337
    %v4520 = vunpack.c.l.b16 %v4338
    %v4521 = vunpack.c.h.b16 %v4338
    %v4522 = vunpack.c.l.b16 %v4339
    %v4523 = vunpack.c.h.b16 %v4339
    %v4524 = vunpack.c.l.b16 %v4340
    %v4525 = vunpack.c.h.b16 %v4340
    %v4526 = vunpack.c.l.b16 %v4341
    %v4527 = vunpack.c.h.b16 %v4341
    %v4528 = vunpack.c.l.b16 %v4342
    %v4529 = vunpack.c.h.b16 %v4342
    %v4530 = vunpack.c.l.b16 %v4343
    %v4531 = vunpack.c.h.b16 %v4343
    %v4532 = vunpack.c.l.b16 %v4344
    %v4533 = vunpack.c.h.b16 %v4344
    %v4534 = vunpack.c.l.b16 %v4345
    %v4535 = vunpack.c.h.b16 %v4345
    %v4536 = vunpack.c.l.b16 %v4346
    %v4537 = vunpack.c.h.b16 %v4346
    %v4538 = vunpack.c.l.b16 %v4347
    %v4539 = vunpack.c.h.b16 %v4347
    %v4540 = vunpack.c.l.b16 %v4348
    %v4541 = vunpack.c.h.b16 %v4348
    %v4542 = vunpack.c.l.b16 %v4349
    %v4543 = vunpack.c.h.b16 %v4349
    %v4544 = vpack.c.b16 %v4420, %v4416
    %v4545 = vpack.c.b16 %v4421, %v4417
    %v4546 = vpack.c.b16 %v4422, %v4418
    %v4547 = vpack.c.b16 %v4423, %v4419
    %v4548 = vpack.c.b16 %v4428, %v4424
    %v4549 = vpack.c.b16 %v4429, %v4425
    %v4550 = vpack.c.b16 %v4430, %v4426
    %v4551 = vpack.c.b16 %v4431, %v4427
    %v4552 = vpack.c.b16 %v4436, %v4432
    %v4553 = vpack.c.b16 %v4437, %v4433
    %v4554 = vpack.c.b16 %v4438, %v4434
    %v4555 = vpack.c.b16 %v4439, %v4435
    %v4556 = vpack.c.b16 %v4444, %v4440
    %v4557 = vpack.c.b16 %v4445, %v4441
    %v4558 = vpack.c.b16 %v4446, %v4442
    %v4559 = vpack.c.b16 %v4447, %v4443
    %v4560 = vpack.c.b16 %v4452, %v4448
    %v4561 = vpack.c.b16 %v4453, %v4449
    %v4562 = vpack.c.b16 %v4454, %v4450
    %v4563 = vpack.c.b16 %v4455, %v4451
    %v4564 = vpack.c.b16 %v4460, %v4456
    %v4565 = vpack.c.b16 %v4461, %v4457
    %v4566 = vpack.c.b16 %v4462, %v4458
    %v4567 = vpack.c.b16 %v4463, %v4459
    %v4568 = vpack.c.b16 %v4468, %v4464
    %v4569 = vpack.c.b16 %v4469, %v4465
    %v4570 = vpack.c.b16 %v4470, %v4466
    %v4571 = vpack.c.b16 %v4471, %v4467
    %v4572 = vpack.c.b16 %v4476, %v4472
    %v4573 = vpack.c.b16 %v4477, %v4473
    %v4574 = vpack.c.b16 %v4478, %v4474
    %v4575 = vpack.c.b16 %v4479, %v4475
    %v4576 = vpack.c.b16 %v4484, %v4480
    %v4577 = vpack.c.b16 %v4485, %v4481
    %v4578 = vpack.c.b16 %v4486, %v4482
    %v4579 = vpack.c.b16 %v4487, %v4483
    %v4580 = vpack.c.b16 %v4492, %v4488
    %v4581 = vpack.c.b16 %v4493, %v4489
    %v4582 = vpack.c.b16 %v4494, %v4490
    %v4583 = vpack.c.b16 %v4495, %v4491
    %v4584 = vpack.c.b16 %v4500, %v4496
    %v4585 = vpack.c.b16 %v4501, %v4497
    %v4586 = vpack.c.b16 %v4502, %v4498
    %v4587 = vpack.c.b16 %v4503, %v4499
    %v4588 = vpack.c.b16 %v4508, %v4504
    %v4589 = vpack.c.b16 %v4509, %v4505
    %v4590 = vpack.c.b16 %v4510, %v4506
    %v4591 = vpack.c.b16 %v4511, %v4507
    %v4592 = vpack.c.b16 %v4516, %v4512
    %v4593 = vpack.c.b16 %v4517, %v4513
    %v4594 = vpack.c.b16 %v4518, %v4514
    %v4595 = vpack.c.b16 %v4519, %v4515
    %v4596 = vpack.c.b16 %v4524, %v4520
    %v4597 = vpack.c.b16 %v4525, %v4521
    %v4598 = vpack.c.b16 %v4526, %v4522
    %v4599 = vpack.c.b16 %v4527, %v4523
    %v4600 = vpack.c.b16 %v4532, %v4528
    %v4601 = vpack.c.b16 %v4533, %v4529
    %v4602 = vpack.c.b16 %v4534, %v4530
    %v4603 = vpack.c.b16 %v4535, %v4531
    %v4604 = vpack.c.b16 %v4540, %v4536
    %v4605 = vpack.c.b16 %v4541, %v4537
    %v4606 = vpack.c.b16 %v4542, %v4538
    %v4607 = vpack.c.b16 %v4543, %v4539
    %4672 = vmatprep.subr.bf16.mxu0 %v4573
    %4673 = vmatpush1.bf16.msra.mxu0 %v4572
    %4674 = vmatprep.subr.bf16.mxu0 %v4569
    %4675 = vmatpush1.bf16.msra.mxu0 %v4568
    %4676 = vmatprep.subr.bf16.mxu0 %v4565
    %4677 = vmatpush1.bf16.msra.mxu0 %v4564
    %4678 = vmatprep.subr.bf16.mxu0 %v4561
    %4679 = vmatpush1.bf16.msra.mxu0 %v4560
    %4680 = vmatprep.subr.bf16.mxu0 %v4557
    %4681 = vmatpush1.bf16.msra.mxu0 %v4556
    %4682 = vmatprep.subr.bf16.mxu0 %v4553
    %4683 = vmatpush1.bf16.msra.mxu0 %v4552
    %4684 = vmatprep.subr.bf16.mxu0 %v4549
    %4685 = vmatpush1.bf16.msra.mxu0 %v4548
    %4686 = vmatprep.subr.bf16.mxu0 %v4545
    %4687 = vmatpush1.bf16.msra.mxu0 %v4544
    %4688 = vmatprep.subr.bf16.mxu0 %v4605
    %4689 = vmatpush2.bf16.msra.mxu0 %v4604
    %4690 = vmatprep.subr.bf16.mxu0 %v4601
    %4691 = vmatpush2.bf16.msra.mxu0 %v4600
    %4692 = vmatprep.subr.bf16.mxu0 %v4597
    %4693 = vmatpush2.bf16.msra.mxu0 %v4596
    %4694 = vmatprep.subr.bf16.mxu0 %v4593
    %4695 = vmatpush2.bf16.msra.mxu0 %v4592
    %4696 = vmatprep.subr.bf16.mxu0 %v4589
    %4697 = vmatpush2.bf16.msra.mxu0 %v4588
    %4698 = vmatprep.subr.bf16.mxu0 %v4585
    %4699 = vmatpush2.bf16.msra.mxu0 %v4584
    %4700 = vmatprep.subr.bf16.mxu0 %v4581
    %4701 = vmatpush2.bf16.msra.mxu0 %v4580
    %4702 = vmatprep.subr.bf16.mxu0 %v4577
    %4703 = vmatpush2.bf16.msra.mxu0 %v4576
    %4704 = vmatprep.mubr.bf16.mxu0 %v4351
    %4705 = vmatmul.mubr.bf16.gmra.mxu0 %v4350
    %v4706 = vpop.f32.mrf.mxu0
    %v4707 = vadd.f32 %v2560, %v4706
    %v4708 = vpop.f32.mrf.mxu0
    %v4709 = vadd.f32 %v2562, %v4708
    %v4710 = vpop.f32.mrf.mxu0
    %v4711 = vpop.f32.mrf.mxu0
    %4712 = vdwg.mxu0
    %4713 = vmatprep.subr.bf16.mxu0 %v4575
    %4714 = vmatpush1.bf16.msra.mxu0 %v4574
    %4715 = vmatprep.subr.bf16.mxu0 %v4571
    %4716 = vmatpush1.bf16.msra.mxu0 %v4570
    %4717 = vmatprep.subr.bf16.mxu0 %v4567
    %4718 = vmatpush1.bf16.msra.mxu0 %v4566
    %4719 = vmatprep.subr.bf16.mxu0 %v4563
    %4720 = vmatpush1.bf16.msra.mxu0 %v4562
    %4721 = vmatprep.subr.bf16.mxu0 %v4559
    %4722 = vmatpush1.bf16.msra.mxu0 %v4558
    %4723 = vmatprep.subr.bf16.mxu0 %v4555
    %4724 = vmatpush1.bf16.msra.mxu0 %v4554
    %4725 = vmatprep.subr.bf16.mxu0 %v4551
    %4726 = vmatpush1.bf16.msra.mxu0 %v4550
    %4727 = vmatprep.subr.bf16.mxu0 %v4547
    %4728 = vmatpush1.bf16.msra.mxu0 %v4546
    %4729 = vmatprep.subr.bf16.mxu0 %v4607
    %4730 = vmatpush2.bf16.msra.mxu0 %v4606
    %4731 = vmatprep.subr.bf16.mxu0 %v4603
    %4732 = vmatpush2.bf16.msra.mxu0 %v4602
    %4733 = vmatprep.subr.bf16.mxu0 %v4599
    %4734 = vmatpush2.bf16.msra.mxu0 %v4598
    %4735 = vmatprep.subr.bf16.mxu0 %v4595
    %4736 = vmatpush2.bf16.msra.mxu0 %v4594
    %4737 = vmatprep.subr.bf16.mxu0 %v4591
    %4738 = vmatpush2.bf16.msra.mxu0 %v4590
    %4739 = vmatprep.subr.bf16.mxu0 %v4587
    %4740 = vmatpush2.bf16.msra.mxu0 %v4586
    %4741 = vmatprep.subr.bf16.mxu0 %v4583
    %4742 = vmatpush2.bf16.msra.mxu0 %v4582
    %4743 = vmatprep.subr.bf16.mxu0 %v4579
    %4744 = vmatpush2.bf16.msra.mxu0 %v4578
    %4745 = vmatprep.mubr.bf16.mxu0 %v4351
    %4746 = vmatmul.mubr.bf16.gmra.mxu0 %v4350
    %v4747 = vpop.f32.mrf.mxu0
    %v4748 = vadd.f32 %v2601, %v4747
    %v4749 = vpop.f32.mrf.mxu0
    %v4750 = vadd.f32 %v2603, %v4749
    %v4751 = vpop.f32.mrf.mxu0
    %v4752 = vpop.f32.mrf.mxu0
    %4753 = vdwg.mxu0
    %v4754 = vmul.f32 %v4707, 0.2
    %v4755 = vmul.f32 %v4709, 0.2
    %v4756 = vmul.f32 %v4748, 0.2
    %v4757 = vmul.f32 %v4750, 0.2
    %v4758 = vmax.f32 %v4707, %v4754
    %v4759 = vmax.f32 %v4709, %v4755
    %v4760 = vmax.f32 %v4748, %v4756
    %v4761 = vmax.f32 %v4750, %v4757
    %4762 = vst [vmem:[#allocation14] sm:$0xff] %v4758
    %4763 = vst [vmem:[#allocation14 + $0x8] sm:$0xff] %v4759
    %4764 = vst [vmem:[#allocation14 + $0x10] sm:$0xff] %v4760
    %4765 = vst [vmem:[#allocation14 + $0x18] sm:$0xff] %v4761
    // Predicated region
    $region58: #{tpu_custom_call.1} parent=1 // pred_check
      _
    $region59: #{tpu_custom_call.1} parent=1 // pred_check_branch
      %4767 = sbr.rel (0) target = $region61
    $region60: #{tpu_custom_call.1} parent=1 // pred_region
      %s4769 = ssub.s32 512, 512
      %4770 = vsyncadd [#allocation4], %s4769
      %s4772 = sshll.u32 [#allocation14], 4
      %s4773 = int_to_ptr.vmem [resolvable:$true] %s4772
      %4775 = dma.vmem_to_hbm [thread:$0]  %s4773, 512, %s7, [#allocation4]
    $region61: #{tpu_custom_call.1} parent=1 // pred_fallthru
      _
    // Predicated region
    $region62: #{tpu_custom_call.1} parent=1 // pred_check
      _
    $region63: #{tpu_custom_call.1} parent=1 // pred_check_branch
      %4777 = sbr.rel (0) target = $region65
    $region64: #{tpu_custom_call.1} parent=1 // pred_region
      %4778 = dma.done [#allocation4], 512
    $region65: #{tpu_custom_call.1} parent=1 // pred_fallthru
      _
    %4779 = vsyncpa [#allocation3], 1
    %4780 = vsyncpa [#allocation6], 1
    %4781 = vsyncpa [#allocation9], 1
    %4782 = vsyncpa [#allocation12], 1
    %4783 = vsyncpa [#allocation4], 1

</llo_original>
